<compile_context>
chip_gen: v5e
topology: v5e:2x2
jax: 0.10.0
libtpu: 0.0.40
codegen_flags: <defaults>
</compile_context>

<pallas_src>
import math
from functools import partial

import jax
import jax.numpy as jnp
from jax.experimental import pallas as pl
from jax.experimental.pallas import tpu as pltpu


def _make_fourier_kernel(L: int, include_X: bool, D: int, use_recurrence: bool):
    """Kernel with the frequency loop unrolled at trace time (L, D static)."""

    def kernel(x_ref, o_ref):
        # x_ref: (D, tn), o_ref: (out_D, tn); the long axis N sits on lanes.
        x = x_ref[...]
        parts = []
        if use_recurrence:
            # Base octave a = pi*x; higher octaves via double-angle identities
            # (3-4 VPU ops per octave instead of 2 transcendentals).
            s = jnp.sin(x * math.pi)
            c = jnp.cos(x * math.pi)
            for l in range(L):
                parts += [s, c]
                if l + 1 < L:
                    s, c = 2.0 * s * c, c * c - s * s
        else:
            for l in range(L):
                xl = x * float((2.0 ** l) * math.pi)
                parts += [jnp.sin(xl), jnp.cos(xl)]
        if include_X:
            parts.append(x)
        # One packed store: concat along the sublane axis at trace time and
        # write the full (out_D, tn) block with a single store.
        o_ref[...] = jnp.concatenate(parts, axis=0).astype(o_ref.dtype)

    return kernel


@partial(jax.jit, static_argnames=("L", "include_X", "lane_tile", "out_dtype",
                                   "transpose_output", "use_recurrence"))
def fourier_embedding_pallas(x, L, include_X=True, lane_tile=32768,
                             out_dtype=None, transpose_output=True,
                             use_recurrence=False):
    """x: (..., D) float array.

    Returns (..., (2L+include_X)*D) when transpose_output=True (PyTorch layout),
    else the lane-dense (out_D, prod(leading)) layout with no output transpose.
    """
    orig_shape = x.shape
    D = int(orig_shape[-1])
    x2 = x.reshape(-1, D)
    N = int(x2.shape[0])
    out_D = (2 * L + (1 if include_X else 0)) * D
    out_dtype = x.dtype if out_dtype is None else out_dtype

    # Lane-dense layout: long axis N on lanes (input is ~1/(2L+1) of the output,
    # so this transpose is cheap; output transpose is the one to avoid).
    xt = x2.T                                               # (D, N)

    # Pad N only to a multiple of 128; do NOT round up to a tile multiple.
    N_pad = ((N + 127) // 128) * 128
    lane_tile = max(128, (int(lane_tile) // 128) * 128)
    tn = min(lane_tile, N_pad)
    if N_pad != N:
        xt = jnp.pad(xt, ((0, 0), (0, N_pad - N)))
    n_steps = pl.cdiv(N_pad, tn)          # last block may be partial; Pallas clips

    in_bytes = D * N * x.dtype.itemsize
    out_bytes = out_D * N * jnp.dtype(out_dtype).itemsize
    cost = pl.CostEstimate(
        flops=2 * L * D * N,
        transcendentals=(2 if use_recurrence else 2 * L) * D * N,
        bytes_accessed=in_bytes + out_bytes,
    )

    kernel = _make_fourier_kernel(L, include_X, D, use_recurrence)

    out_t = pl.pallas_call(
        kernel,
        out_shape=jax.ShapeDtypeStruct((out_D, N_pad), out_dtype),
        grid_spec=pltpu.PrefetchScalarGridSpec(
            num_scalar_prefetch=0,
            grid=(n_steps,),
            # Second-to-last block dims (D, out_D) equal the full array dims
            # (blocking rule satisfied); lane dim tn is a multiple of 128.
            in_specs=[pl.BlockSpec((D, tn), lambda i: (0, i))],
            out_specs=pl.BlockSpec((out_D, tn), lambda i: (0, i)),
        ),
        compiler_params=pltpu.CompilerParams(
            dimension_semantics=("parallel",),
            vmem_limit_bytes=32 * 1024 * 1024,
        ),
        cost_estimate=cost,
    )(xt)

    if not transpose_output:
        # Lane-dense (out_D, N): exactly the transposed operand a downstream
        # Linear/matmul wants; skips the HBM round trip of an output transpose.
        return out_t[:, :N]
    out = out_t[:, :N].T                   # slice + transpose fuse under jit
    return out.reshape(*orig_shape[:-1], out_D)


def fourier_embedding_ref(x, L, include_X=True):
    """Pure-JAX reference mirroring the PyTorch forward exactly."""
    parts = []
    for l in range(L):
        freq = (2.0 ** l) * math.pi
        xl = x * freq
        parts.append(jnp.concatenate([jnp.sin(xl), jnp.cos(xl)], axis=-1))
    if include_X:
        parts.append(x)
    return jnp.concatenate(parts, axis=-1)


if __name__ == "__main__":
    L = 4
    include_X = True
    N, D = 1000, 3          # 3-D coords: count_dim() = L*2*3 + 3 = 27.
                            # N not a multiple of 128 to exercise tail handling.
    out_D = (2 * L + 1) * D

    key = jax.random.PRNGKey(0)
    x = jax.random.normal(key, (N, D), dtype=jnp.float32)
    ref = fourier_embedding_ref(x, L, include_X)

    # 1) Default path: PyTorch (N, out_D) layout, f32.
    out = jax.block_until_ready(
        fourier_embedding_pallas(x, L=L, include_X=include_X))
    assert out.shape == (N, out_D), out.shape
    assert jnp.allclose(out, ref, atol=1e-5, rtol=1e-5), "f32 mismatch vs reference"

    # 2) Lane-dense path (no output transpose): (out_D, N).
    out_t = jax.block_until_ready(
        fourier_embedding_pallas(x, L=L, include_X=include_X,
                                 transpose_output=False))
    assert out_t.shape == (out_D, N), out_t.shape
    assert jnp.allclose(out_t, ref.T, atol=1e-5, rtol=1e-5), "transposed-layout mismatch"

    # 3) bf16 output (halves HBM write bytes); looser tolerance.
    out_bf = jax.block_until_ready(
        fourier_embedding_pallas(x, L=L, include_X=include_X,
                                 out_dtype=jnp.bfloat16, transpose_output=False))
    assert jnp.allclose(out_bf.astype(jnp.float32), ref.T,
                        atol=2e-2, rtol=2e-2), "bf16 mismatch"

    # 4) Double-angle recurrence variant (for v7x / compute-bound regimes).
    out_rec = jax.block_until_ready(
        fourier_embedding_pallas(x, L=L, include_X=include_X,
                                 use_recurrence=True, transpose_output=False))
    assert jnp.allclose(out_rec, ref.T, atol=1e-4, rtol=1e-4), "recurrence mismatch"

    print("KERNEL_OK")
</pallas_src>

<mosaic_0001>
module attributes {stable_mosaic.version = 11 : i64} {
  func.func @kernel(%arg0: i32, %arg1: memref<3x1024xf32, #tpu.memory_space<vmem>>, %arg2: memref<27x1024xf32, #tpu.memory_space<vmem>>) attributes {dimension_semantics = [#tpu.dimension_semantics<parallel>], iteration_bounds = array<i64: 1>, scalar_prefetch = 0 : i64, scratch_operands = 0 : i64, tpu.core_type = #tpu.core_type<tc>, window_params = [{transform_indices = @transform_0, window_bounds = array<i64: 3, 1024>}, {transform_indices = @transform_1, window_bounds = array<i64: 27, 1024>}]} {
    %c0 = arith.constant 0 : index
    %c0_0 = arith.constant 0 : index
    %0 = vector.load %arg1[%c0, %c0_0] : memref<3x1024xf32, #tpu.memory_space<vmem>>, vector<3x1024xf32>
    %cst = arith.constant 3.14159274 : f32
    %1 = vector.broadcast %cst : f32 to vector<3x1024xf32>
    %2 = arith.mulf %0, %1 : vector<3x1024xf32>
    %3 = math.sin %2 : vector<3x1024xf32>
    %4 = math.cos %2 : vector<3x1024xf32>
    %cst_1 = arith.constant 6.28318548 : f32
    %5 = vector.broadcast %cst_1 : f32 to vector<3x1024xf32>
    %6 = arith.mulf %0, %5 : vector<3x1024xf32>
    %7 = math.sin %6 : vector<3x1024xf32>
    %8 = math.cos %6 : vector<3x1024xf32>
    %cst_2 = arith.constant 12.566371 : f32
    %9 = vector.broadcast %cst_2 : f32 to vector<3x1024xf32>
    %10 = arith.mulf %0, %9 : vector<3x1024xf32>
    %11 = math.sin %10 : vector<3x1024xf32>
    %12 = math.cos %10 : vector<3x1024xf32>
    %cst_3 = arith.constant 25.1327419 : f32
    %13 = vector.broadcast %cst_3 : f32 to vector<3x1024xf32>
    %14 = arith.mulf %0, %13 : vector<3x1024xf32>
    %15 = math.sin %14 : vector<3x1024xf32>
    %16 = math.cos %14 : vector<3x1024xf32>
    %17 = tpu.concatenate %3, %4, %7, %8, %11, %12, %15, %16, %0 in 0 : vector<3x1024xf32>, vector<3x1024xf32>, vector<3x1024xf32>, vector<3x1024xf32>, vector<3x1024xf32>, vector<3x1024xf32>, vector<3x1024xf32>, vector<3x1024xf32>, vector<3x1024xf32> -> vector<27x1024xf32>
    %c0_4 = arith.constant 0 : index
    %c0_5 = arith.constant 0 : index
    %18 = vector.load %arg2[%c0_4, %c0_5] : memref<27x1024xf32, #tpu.memory_space<vmem>>, vector<27x1024xf32>
    tpu.vector_store %arg2[%c0_4, %c0_5], %17 {strides = array<i32>} : memref<27x1024xf32, #tpu.memory_space<vmem>>, vector<27x1024xf32>,
    return
  }
  func.func @transform_0(%arg0: i32) -> (i32, i32) {
    %c0_i32 = arith.constant 0 : i32
    %c0_i32_0 = arith.constant 0 : i32
    return %c0_i32, %arg0 : i32, i32
  }
  func.func @transform_1(%arg0: i32) -> (i32, i32) {
    %c0_i32 = arith.constant 0 : i32
    %c0_i32_0 = arith.constant 0 : i32
    return %c0_i32, %arg0 : i32, i32
  }
}

</mosaic_0001>

<llo_original>
// kernel: fourier_embedding_pallas.1
$region0: #{fourier_embedding_pallas.1}
  #allocation0 [shape = 'u32[]', space=smem, size = 0x4, offset = 0x4, fixed_abs, tag = 'smem constant byte address 0x4 - core index']
  #allocation1 [shape = 'u32[72,128]{1,0:T(1,128)}', space=vmem, size = 0x9000, scoped, tag = 'internal scratch']
  %s0 = inlined_call_operand.vmem [shape: f32[3,1024], index: 0, kind: input, shape index: {}]
  %s1 = inlined_call_operand.vmem [shape: f32[27,1024], index: 1, kind: output, shape index: {}]
  %s2 = sld [smem:[#allocation0]]
  $region14: #{fourier_embedding_pallas.1} parent=0
    _
  %s4 = ssub.s32 1, %s2
  %s5 = scalar_select 0, %s4, %s2
  // Predicated region
  $region2: #{fourier_embedding_pallas.1} parent=0 // pred_check
    _
  $region3: #{fourier_embedding_pallas.1} parent=0 // pred_check_branch
    %7 = sbr.rel (0) target = $region5
  $region4: #{fourier_embedding_pallas.1} parent=0 // pred_region
    _
  $region5: #{fourier_embedding_pallas.1} parent=0 // pred_fallthru
    _
  %v8 = vld [vmem:[%s0] sm:$0x77]
  %v9 = vld [vmem:[%s0 + $0x8] sm:$0x77]
  %v10 = vld [vmem:[%s0 + $0x10] sm:$0x77]
  %v11 = vld [vmem:[%s0 + $0x18] sm:$0x77]
  %v12 = vmul.f32 %v8, 3.1415927
  %v13 = vmul.f32 %v9, 3.1415927
  %v14 = vmul.f32 %v10, 3.1415927
  %v15 = vmul.f32 %v11, 3.1415927
  %v16 = vand.u32 2147483647, %v12
  %vm17 = vcmp.le.f32.partialorder %v16, 0.7853982
  %vm18 = vcmp.lt.s32.totalorder %v12, 0
  %v19 = vand.u32 %v12, 2139095040
  %v20 = vshrl.u32 %v19, 23
  %v21 = vsub.s32 %v20, 127
  %v22 = vand.u32 2147483647, %v12
  %v23 = vand.u32 %v22, 8388607
  %v24 = vor.u32 %v23, 8388608
  %v25 = vsub.s32 0, %v24
  %v26 = vadd.s32 %v21, 1
  %vm27 = vcmp.gt.s32.totalorder %v26, 0
  %v28 = vsel %vm27, %v26, 0
  %v29 = vshrl.u32 %v28, 5
  %v30 = vand.u32 %v28, 31
  %v31 = vsub.s32 32, %v30
  %v32 = vshrl.u32 683565275, %v31
  %v33 = vshll.u32 683565275, %v30
  %v34 = vshrl.u32 2475754826, %v31
  %v35 = vor.u32 %v33, %v34
  %v36 = vshll.u32 2475754826, %v30
  %v37 = vshrl.u32 2131351028, %v31
  %v38 = vor.u32 %v36, %v37
  %v39 = vshll.u32 2131351028, %v30
  %v40 = vshrl.u32 2102212464, %v31
  %v41 = vor.u32 %v39, %v40
  %v42 = vshll.u32 2102212464, %v30
  %v43 = vshrl.u32 920167782, %v31
  %v44 = vor.u32 %v42, %v43
  %v45 = vshll.u32 920167782, %v30
  %v46 = vshrl.u32 1326507024, %v31
  %v47 = vor.u32 %v45, %v46
  %vm48 = vcmp.lt.s32.totalorder %v29, 1
  %vm49 = vcmp.lt.s32.totalorder %v29, 2
  %vm50 = vcmp.lt.s32.totalorder %v29, 3
  %vm51 = vcmp.lt.s32.totalorder %v29, 4
  %v52 = vsel %vm48, %v32, %v35
  %v53 = vsel %vm51, %v41, 2102212464
  %v54 = vsel %vm50, %v38, %v53
  %v55 = vsel %vm49, %v52, %v54
  %v56 = vsel %vm48, %v35, %v38
  %v57 = vsel %vm51, %v44, 920167782
  %v58 = vsel %vm50, %v41, %v57
  %v59 = vsel %vm49, %v56, %v58
  %v60 = vsel %vm48, %v38, %v41
  %v61 = vsel %vm51, %v47, 1326507024
  %v62 = vsel %vm50, %v44, %v61
  %v63 = vsel %vm49, %v60, %v62
  %v64 = vshll.u32 %v24, 8
  %v65 = vand.u32 %v64, 65535
  %v66 = vshrl.u32 %v64, 16
  %v67 = vand.u32 %v63, 65535
  %v68 = vshrl.u32 %v63, 16
  %v69 = vmul.u32 %v65, %v67
  %v70 = vmul.u32 %v65, %v68
  %v71 = vmul.u32 %v66, %v67
  %v72 = vmul.u32 %v66, %v68
  %v73 = vshll.u32 %v70, 16
  %v74 = vshrl.u32 %v70, 16
  %v75 = vshll.u32 %v71, 16
  %v76 = vshrl.u32 %v71, 16
  %vm77 = vc.u32 %v69, %v73
  %v78 = vsel %vm77, 1, 0
  %v79 = vadd.s32 %v69, %v73
  %v80 = vadd.s32 %v72, %v78
  %vm81 = vc.u32 %v79, %v75
  %v82 = vsel %vm81, 1, 0
  %v83 = vadd.s32 %v79, %v75
  %v84 = vadd.s32 %v80, %v82
  %v85 = vadd.s32 %v84, %v74
  %v86 = vadd.s32 %v85, %v76
  %v87 = vand.u32 %v64, 65535
  %v88 = vshrl.u32 %v64, 16
  %v89 = vand.u32 %v59, 65535
  %v90 = vshrl.u32 %v59, 16
  %v91 = vmul.u32 %v87, %v89
  %v92 = vmul.u32 %v87, %v90
  %v93 = vmul.u32 %v88, %v89
  %v94 = vmul.u32 %v88, %v90
  %v95 = vshll.u32 %v92, 16
  %v96 = vshrl.u32 %v92, 16
  %v97 = vshll.u32 %v93, 16
  %v98 = vshrl.u32 %v93, 16
  %vm99 = vc.u32 %v91, %v95
  %v100 = vsel %vm99, 1, 0
  %v101 = vadd.s32 %v91, %v95
  %v102 = vadd.s32 %v94, %v100
  %vm103 = vc.u32 %v101, %v97
  %v104 = vsel %vm103, 1, 0
  %v105 = vadd.s32 %v101, %v97
  %v106 = vadd.s32 %v102, %v104
  %v107 = vadd.s32 %v106, %v96
  %v108 = vadd.s32 %v107, %v98
  %v109 = vmul.u32 %v64, %v55
  %v110 = vadd.s32 %v86, %v105
  %vm111 = vc.u32 %v86, %v105
  %v112 = vadd.s32 %v108, 1
  %v113 = vsel %vm111, %v112, %v108
  %v114 = vadd.s32 %v109, %v113
  %v115 = vadd.s32 %v114, 536870912
  %v116 = vshrl.u32 %v115, 30
  %v117 = vshll.u32 %v116, 30
  %v118 = vsub.s32 %v114, %v117
  %vm119 = vcmp.lt.s32.totalorder %v118, 0
  %v120 = vsub.s32 0, %v118
  %v121 = vsel %vm119, %v120, %v118
  %v122 = vclz %v121
  %v123 = vsub.s32 %v122, 2
  %vm124 = vcmp.gt.s32.totalorder 0, %v123
  %v125 = vsel %vm124, 0, %v123
  %v126 = vsub.s32 32, %v125
  %v127 = vshll.u32 %v118, %v125
  %v128 = vshrl.u32 %v110, %v126
  %v129 = vor.u32 %v127, %v128
  %v130 = vsub.s32 4294967266, %v125
  %v131 = vadd.s32 %v130, 127
  %v132 = vshll.u32 %v131, 23
  %v133 = vor.u32 4788187, %v132
  %v134 = vand.u32 2147483647, %v133
  %v136 = vcvt.s32.f32 %v129
  %v137 = vmul.f32 %v136, %v134
  %v138 = vxor.u32 %v137, 2147483648
  %v139 = vsel %vm18, %v138, %v137
  %v140 = vsub.s32 4, %v116
  %v141 = vsel %vm18, %v140, %v116
  %v142 = vsel %vm17, %v12, %v139
  %v143 = vsel %vm17, 0, %v141
  %v144 = vmul.f32 %v142, %v142
  %v145 = vmul.f32 %v144, -0.001358992
  %v146 = vadd.f32 %v145, 0.041655596
  %v147 = vmul.f32 %v144, %v146
  %v148 = vadd.f32 %v147, -0.4999988
  %v149 = vmul.f32 %v144, %v148
  %v150 = vadd.f32 1.0, %v149
  %v151 = vmul.f32 %v142, %v142
  %v152 = vmul.f32 %v151, -0.00019511016
  %v153 = vadd.f32 %v152, 0.008332121
  %v154 = vmul.f32 %v151, %v153
  %v155 = vadd.f32 %v154, -0.16666654
  %v156 = vmul.f32 %v151, %v155
  %v157 = vadd.f32 %v156, 1.0
  %v158 = vmul.f32 %v157, %v142
  %vm159 = vweird.f32 %v12
  %v160 = vadd.s32 %v143, 3
  %v161 = vand.u32 %v160, 3
  %vm162 = vcmp.lt.s32.totalorder %v161, 2
  %vm163 = vcmp.eq.s32.totalorder %v161, 0
  %v164 = vxor.u32 %v158, 2147483648
  %v165 = vsel %vm163, %v150, %v164
  %vm166 = vcmp.eq.s32.totalorder %v161, 2
  %v167 = vxor.u32 %v150, 2147483648
  %v168 = vsel %vm166, %v167, %v158
  %v169 = vsel %vm162, %v165, %v168
  %v170 = vsel %vm159, nan, %v169
  %v171 = vand.u32 2147483647, %v13
  %vm172 = vcmp.le.f32.partialorder %v171, 0.7853982
  %vm173 = vcmp.lt.s32.totalorder %v13, 0
  %v174 = vand.u32 %v13, 2139095040
  %v175 = vshrl.u32 %v174, 23
  %v176 = vsub.s32 %v175, 127
  %v177 = vand.u32 2147483647, %v13
  %v178 = vand.u32 %v177, 8388607
  %v179 = vor.u32 %v178, 8388608
  %v180 = vsub.s32 0, %v179
  %v181 = vadd.s32 %v176, 1
  %vm182 = vcmp.gt.s32.totalorder %v181, 0
  %v183 = vsel %vm182, %v181, 0
  %v184 = vshrl.u32 %v183, 5
  %v185 = vand.u32 %v183, 31
  %v186 = vsub.s32 32, %v185
  %v187 = vshrl.u32 683565275, %v186
  %v188 = vshll.u32 683565275, %v185
  %v189 = vshrl.u32 2475754826, %v186
  %v190 = vor.u32 %v188, %v189
  %v191 = vshll.u32 2475754826, %v185
  %v192 = vshrl.u32 2131351028, %v186
  %v193 = vor.u32 %v191, %v192
  %v194 = vshll.u32 2131351028, %v185
  %v195 = vshrl.u32 2102212464, %v186
  %v196 = vor.u32 %v194, %v195
  %v197 = vshll.u32 2102212464, %v185
  %v198 = vshrl.u32 920167782, %v186
  %v199 = vor.u32 %v197, %v198
  %v200 = vshll.u32 920167782, %v185
  %v201 = vshrl.u32 1326507024, %v186
  %v202 = vor.u32 %v200, %v201
  %vm203 = vcmp.lt.s32.totalorder %v184, 1
  %vm204 = vcmp.lt.s32.totalorder %v184, 2
  %vm205 = vcmp.lt.s32.totalorder %v184, 3
  %vm206 = vcmp.lt.s32.totalorder %v184, 4
  %v207 = vsel %vm203, %v187, %v190
  %v208 = vsel %vm206, %v196, 2102212464
  %v209 = vsel %vm205, %v193, %v208
  %v210 = vsel %vm204, %v207, %v209
  %v211 = vsel %vm203, %v190, %v193
  %v212 = vsel %vm206, %v199, 920167782
  %v213 = vsel %vm205, %v196, %v212
  %v214 = vsel %vm204, %v211, %v213
  %v215 = vsel %vm203, %v193, %v196
  %v216 = vsel %vm206, %v202, 1326507024
  %v217 = vsel %vm205, %v199, %v216
  %v218 = vsel %vm204, %v215, %v217
  %v219 = vshll.u32 %v179, 8
  %v220 = vand.u32 %v219, 65535
  %v221 = vshrl.u32 %v219, 16
  %v222 = vand.u32 %v218, 65535
  %v223 = vshrl.u32 %v218, 16
  %v224 = vmul.u32 %v220, %v222
  %v225 = vmul.u32 %v220, %v223
  %v226 = vmul.u32 %v221, %v222
  %v227 = vmul.u32 %v221, %v223
  %v228 = vshll.u32 %v225, 16
  %v229 = vshrl.u32 %v225, 16
  %v230 = vshll.u32 %v226, 16
  %v231 = vshrl.u32 %v226, 16
  %vm232 = vc.u32 %v224, %v228
  %v233 = vsel %vm232, 1, 0
  %v234 = vadd.s32 %v224, %v228
  %v235 = vadd.s32 %v227, %v233
  %vm236 = vc.u32 %v234, %v230
  %v237 = vsel %vm236, 1, 0
  %v238 = vadd.s32 %v234, %v230
  %v239 = vadd.s32 %v235, %v237
  %v240 = vadd.s32 %v239, %v229
  %v241 = vadd.s32 %v240, %v231
  %v242 = vand.u32 %v219, 65535
  %v243 = vshrl.u32 %v219, 16
  %v244 = vand.u32 %v214, 65535
  %v245 = vshrl.u32 %v214, 16
  %v246 = vmul.u32 %v242, %v244
  %v247 = vmul.u32 %v242, %v245
  %v248 = vmul.u32 %v243, %v244
  %v249 = vmul.u32 %v243, %v245
  %v250 = vshll.u32 %v247, 16
  %v251 = vshrl.u32 %v247, 16
  %v252 = vshll.u32 %v248, 16
  %v253 = vshrl.u32 %v248, 16
  %vm254 = vc.u32 %v246, %v250
  %v255 = vsel %vm254, 1, 0
  %v256 = vadd.s32 %v246, %v250
  %v257 = vadd.s32 %v249, %v255
  %vm258 = vc.u32 %v256, %v252
  %v259 = vsel %vm258, 1, 0
  %v260 = vadd.s32 %v256, %v252
  %v261 = vadd.s32 %v257, %v259
  %v262 = vadd.s32 %v261, %v251
  %v263 = vadd.s32 %v262, %v253
  %v264 = vmul.u32 %v219, %v210
  %v265 = vadd.s32 %v241, %v260
  %vm266 = vc.u32 %v241, %v260
  %v267 = vadd.s32 %v263, 1
  %v268 = vsel %vm266, %v267, %v263
  %v269 = vadd.s32 %v264, %v268
  %v270 = vadd.s32 %v269, 536870912
  %v271 = vshrl.u32 %v270, 30
  %v272 = vshll.u32 %v271, 30
  %v273 = vsub.s32 %v269, %v272
  %vm274 = vcmp.lt.s32.totalorder %v273, 0
  %v275 = vsub.s32 0, %v273
  %v276 = vsel %vm274, %v275, %v273
  %v277 = vclz %v276
  %v278 = vsub.s32 %v277, 2
  %vm279 = vcmp.gt.s32.totalorder 0, %v278
  %v280 = vsel %vm279, 0, %v278
  %v281 = vsub.s32 32, %v280
  %v282 = vshll.u32 %v273, %v280
  %v283 = vshrl.u32 %v265, %v281
  %v284 = vor.u32 %v282, %v283
  %v285 = vsub.s32 4294967266, %v280
  %v286 = vadd.s32 %v285, 127
  %v287 = vshll.u32 %v286, 23
  %v288 = vor.u32 4788187, %v287
  %v289 = vand.u32 2147483647, %v288
  %v291 = vcvt.s32.f32 %v284
  %v292 = vmul.f32 %v291, %v289
  %v293 = vxor.u32 %v292, 2147483648
  %v294 = vsel %vm173, %v293, %v292
  %v295 = vsub.s32 4, %v271
  %v296 = vsel %vm173, %v295, %v271
  %v297 = vsel %vm172, %v13, %v294
  %v298 = vsel %vm172, 0, %v296
  %v299 = vmul.f32 %v297, %v297
  %v300 = vmul.f32 %v299, -0.001358992
  %v301 = vadd.f32 %v300, 0.041655596
  %v302 = vmul.f32 %v299, %v301
  %v303 = vadd.f32 %v302, -0.4999988
  %v304 = vmul.f32 %v299, %v303
  %v305 = vadd.f32 1.0, %v304
  %v306 = vmul.f32 %v297, %v297
  %v307 = vmul.f32 %v306, -0.00019511016
  %v308 = vadd.f32 %v307, 0.008332121
  %v309 = vmul.f32 %v306, %v308
  %v310 = vadd.f32 %v309, -0.16666654
  %v311 = vmul.f32 %v306, %v310
  %v312 = vadd.f32 %v311, 1.0
  %v313 = vmul.f32 %v312, %v297
  %vm314 = vweird.f32 %v13
  %v315 = vadd.s32 %v298, 3
  %v316 = vand.u32 %v315, 3
  %vm317 = vcmp.lt.s32.totalorder %v316, 2
  %vm318 = vcmp.eq.s32.totalorder %v316, 0
  %v319 = vxor.u32 %v313, 2147483648
  %v320 = vsel %vm318, %v305, %v319
  %vm321 = vcmp.eq.s32.totalorder %v316, 2
  %v322 = vxor.u32 %v305, 2147483648
  %v323 = vsel %vm321, %v322, %v313
  %v324 = vsel %vm317, %v320, %v323
  %v325 = vsel %vm314, nan, %v324
  %v326 = vand.u32 2147483647, %v14
  %vm327 = vcmp.le.f32.partialorder %v326, 0.7853982
  %vm328 = vcmp.lt.s32.totalorder %v14, 0
  %v329 = vand.u32 %v14, 2139095040
  %v330 = vshrl.u32 %v329, 23
  %v331 = vsub.s32 %v330, 127
  %v332 = vand.u32 2147483647, %v14
  %v333 = vand.u32 %v332, 8388607
  %v334 = vor.u32 %v333, 8388608
  %v335 = vsub.s32 0, %v334
  %v336 = vadd.s32 %v331, 1
  %vm337 = vcmp.gt.s32.totalorder %v336, 0
  %v338 = vsel %vm337, %v336, 0
  %v339 = vshrl.u32 %v338, 5
  %v340 = vand.u32 %v338, 31
  %v341 = vsub.s32 32, %v340
  %v342 = vshrl.u32 683565275, %v341
  %v343 = vshll.u32 683565275, %v340
  %v344 = vshrl.u32 2475754826, %v341
  %v345 = vor.u32 %v343, %v344
  %v346 = vshll.u32 2475754826, %v340
  %v347 = vshrl.u32 2131351028, %v341
  %v348 = vor.u32 %v346, %v347
  %v349 = vshll.u32 2131351028, %v340
  %v350 = vshrl.u32 2102212464, %v341
  %v351 = vor.u32 %v349, %v350
  %v352 = vshll.u32 2102212464, %v340
  %v353 = vshrl.u32 920167782, %v341
  %v354 = vor.u32 %v352, %v353
  %v355 = vshll.u32 920167782, %v340
  %v356 = vshrl.u32 1326507024, %v341
  %v357 = vor.u32 %v355, %v356
  %vm358 = vcmp.lt.s32.totalorder %v339, 1
  %vm359 = vcmp.lt.s32.totalorder %v339, 2
  %vm360 = vcmp.lt.s32.totalorder %v339, 3
  %vm361 = vcmp.lt.s32.totalorder %v339, 4
  %v362 = vsel %vm358, %v342, %v345
  %v363 = vsel %vm361, %v351, 2102212464
  %v364 = vsel %vm360, %v348, %v363
  %v365 = vsel %vm359, %v362, %v364
  %v366 = vsel %vm358, %v345, %v348
  %v367 = vsel %vm361, %v354, 920167782
  %v368 = vsel %vm360, %v351, %v367
  %v369 = vsel %vm359, %v366, %v368
  %v370 = vsel %vm358, %v348, %v351
  %v371 = vsel %vm361, %v357, 1326507024
  %v372 = vsel %vm360, %v354, %v371
  %v373 = vsel %vm359, %v370, %v372
  %v374 = vshll.u32 %v334, 8
  %v375 = vand.u32 %v374, 65535
  %v376 = vshrl.u32 %v374, 16
  %v377 = vand.u32 %v373, 65535
  %v378 = vshrl.u32 %v373, 16
  %v379 = vmul.u32 %v375, %v377
  %v380 = vmul.u32 %v375, %v378
  %v381 = vmul.u32 %v376, %v377
  %v382 = vmul.u32 %v376, %v378
  %v383 = vshll.u32 %v380, 16
  %v384 = vshrl.u32 %v380, 16
  %v385 = vshll.u32 %v381, 16
  %v386 = vshrl.u32 %v381, 16
  %vm387 = vc.u32 %v379, %v383
  %v388 = vsel %vm387, 1, 0
  %v389 = vadd.s32 %v379, %v383
  %v390 = vadd.s32 %v382, %v388
  %vm391 = vc.u32 %v389, %v385
  %v392 = vsel %vm391, 1, 0
  %v393 = vadd.s32 %v389, %v385
  %v394 = vadd.s32 %v390, %v392
  %v395 = vadd.s32 %v394, %v384
  %v396 = vadd.s32 %v395, %v386
  %v397 = vand.u32 %v374, 65535
  %v398 = vshrl.u32 %v374, 16
  %v399 = vand.u32 %v369, 65535
  %v400 = vshrl.u32 %v369, 16
  %v401 = vmul.u32 %v397, %v399
  %v402 = vmul.u32 %v397, %v400
  %v403 = vmul.u32 %v398, %v399
  %v404 = vmul.u32 %v398, %v400
  %v405 = vshll.u32 %v402, 16
  %v406 = vshrl.u32 %v402, 16
  %v407 = vshll.u32 %v403, 16
  %v408 = vshrl.u32 %v403, 16
  %vm409 = vc.u32 %v401, %v405
  %v410 = vsel %vm409, 1, 0
  %v411 = vadd.s32 %v401, %v405
  %v412 = vadd.s32 %v404, %v410
  %vm413 = vc.u32 %v411, %v407
  %v414 = vsel %vm413, 1, 0
  %v415 = vadd.s32 %v411, %v407
  %v416 = vadd.s32 %v412, %v414
  %v417 = vadd.s32 %v416, %v406
  %v418 = vadd.s32 %v417, %v408
  %v419 = vmul.u32 %v374, %v365
  %v420 = vadd.s32 %v396, %v415
  %vm421 = vc.u32 %v396, %v415
  %v422 = vadd.s32 %v418, 1
  %v423 = vsel %vm421, %v422, %v418
  %v424 = vadd.s32 %v419, %v423
  %v425 = vadd.s32 %v424, 536870912
  %v426 = vshrl.u32 %v425, 30
  %v427 = vshll.u32 %v426, 30
  %v428 = vsub.s32 %v424, %v427
  %vm429 = vcmp.lt.s32.totalorder %v428, 0
  %v430 = vsub.s32 0, %v428
  %v431 = vsel %vm429, %v430, %v428
  %v432 = vclz %v431
  %v433 = vsub.s32 %v432, 2
  %vm434 = vcmp.gt.s32.totalorder 0, %v433
  %v435 = vsel %vm434, 0, %v433
  %v436 = vsub.s32 32, %v435
  %v437 = vshll.u32 %v428, %v435
  %v438 = vshrl.u32 %v420, %v436
  %v439 = vor.u32 %v437, %v438
  %v440 = vsub.s32 4294967266, %v435
  %v441 = vadd.s32 %v440, 127
  %v442 = vshll.u32 %v441, 23
  %v443 = vor.u32 4788187, %v442
  %v444 = vand.u32 2147483647, %v443
  %v446 = vcvt.s32.f32 %v439
  %v447 = vmul.f32 %v446, %v444
  %v448 = vxor.u32 %v447, 2147483648
  %v449 = vsel %vm328, %v448, %v447
  %v450 = vsub.s32 4, %v426
  %v451 = vsel %vm328, %v450, %v426
  %v452 = vsel %vm327, %v14, %v449
  %v453 = vsel %vm327, 0, %v451
  %v454 = vmul.f32 %v452, %v452
  %v455 = vmul.f32 %v454, -0.001358992
  %v456 = vadd.f32 %v455, 0.041655596
  %v457 = vmul.f32 %v454, %v456
  %v458 = vadd.f32 %v457, -0.4999988
  %v459 = vmul.f32 %v454, %v458
  %v460 = vadd.f32 1.0, %v459
  %v461 = vmul.f32 %v452, %v452
  %v462 = vmul.f32 %v461, -0.00019511016
  %v463 = vadd.f32 %v462, 0.008332121
  %v464 = vmul.f32 %v461, %v463
  %v465 = vadd.f32 %v464, -0.16666654
  %v466 = vmul.f32 %v461, %v465
  %v467 = vadd.f32 %v466, 1.0
  %v468 = vmul.f32 %v467, %v452
  %vm469 = vweird.f32 %v14
  %v470 = vadd.s32 %v453, 3
  %v471 = vand.u32 %v470, 3
  %vm472 = vcmp.lt.s32.totalorder %v471, 2
  %vm473 = vcmp.eq.s32.totalorder %v471, 0
  %v474 = vxor.u32 %v468, 2147483648
  %v475 = vsel %vm473, %v460, %v474
  %vm476 = vcmp.eq.s32.totalorder %v471, 2
  %v477 = vxor.u32 %v460, 2147483648
  %v478 = vsel %vm476, %v477, %v468
  %v479 = vsel %vm472, %v475, %v478
  %v480 = vsel %vm469, nan, %v479
  %v481 = vand.u32 2147483647, %v15
  %vm482 = vcmp.le.f32.partialorder %v481, 0.7853982
  %vm483 = vcmp.lt.s32.totalorder %v15, 0
  %v484 = vand.u32 %v15, 2139095040
  %v485 = vshrl.u32 %v484, 23
  %v486 = vsub.s32 %v485, 127
  %v487 = vand.u32 2147483647, %v15
  %v488 = vand.u32 %v487, 8388607
  %v489 = vor.u32 %v488, 8388608
  %v490 = vsub.s32 0, %v489
  %v491 = vadd.s32 %v486, 1
  %vm492 = vcmp.gt.s32.totalorder %v491, 0
  %v493 = vsel %vm492, %v491, 0
  %v494 = vshrl.u32 %v493, 5
  %v495 = vand.u32 %v493, 31
  %v496 = vsub.s32 32, %v495
  %v497 = vshrl.u32 683565275, %v496
  %v498 = vshll.u32 683565275, %v495
  %v499 = vshrl.u32 2475754826, %v496
  %v500 = vor.u32 %v498, %v499
  %v501 = vshll.u32 2475754826, %v495
  %v502 = vshrl.u32 2131351028, %v496
  %v503 = vor.u32 %v501, %v502
  %v504 = vshll.u32 2131351028, %v495
  %v505 = vshrl.u32 2102212464, %v496
  %v506 = vor.u32 %v504, %v505
  %v507 = vshll.u32 2102212464, %v495
  %v508 = vshrl.u32 920167782, %v496
  %v509 = vor.u32 %v507, %v508
  %v510 = vshll.u32 920167782, %v495
  %v511 = vshrl.u32 1326507024, %v496
  %v512 = vor.u32 %v510, %v511
  %vm513 = vcmp.lt.s32.totalorder %v494, 1
  %vm514 = vcmp.lt.s32.totalorder %v494, 2
  %vm515 = vcmp.lt.s32.totalorder %v494, 3
  %vm516 = vcmp.lt.s32.totalorder %v494, 4
  %v517 = vsel %vm513, %v497, %v500
  %v518 = vsel %vm516, %v506, 2102212464
  %v519 = vsel %vm515, %v503, %v518
  %v520 = vsel %vm514, %v517, %v519
  %v521 = vsel %vm513, %v500, %v503
  %v522 = vsel %vm516, %v509, 920167782
  %v523 = vsel %vm515, %v506, %v522
  %v524 = vsel %vm514, %v521, %v523
  %v525 = vsel %vm513, %v503, %v506
  %v526 = vsel %vm516, %v512, 1326507024
  %v527 = vsel %vm515, %v509, %v526
  %v528 = vsel %vm514, %v525, %v527
  %v529 = vshll.u32 %v489, 8
  %v530 = vand.u32 %v529, 65535
  %v531 = vshrl.u32 %v529, 16
  %v532 = vand.u32 %v528, 65535
  %v533 = vshrl.u32 %v528, 16
  %v534 = vmul.u32 %v530, %v532
  %v535 = vmul.u32 %v530, %v533
  %v536 = vmul.u32 %v531, %v532
  %v537 = vmul.u32 %v531, %v533
  %v538 = vshll.u32 %v535, 16
  %v539 = vshrl.u32 %v535, 16
  %v540 = vshll.u32 %v536, 16
  %v541 = vshrl.u32 %v536, 16
  %vm542 = vc.u32 %v534, %v538
  %v543 = vsel %vm542, 1, 0
  %v544 = vadd.s32 %v534, %v538
  %v545 = vadd.s32 %v537, %v543
  %vm546 = vc.u32 %v544, %v540
  %v547 = vsel %vm546, 1, 0
  %v548 = vadd.s32 %v544, %v540
  %v549 = vadd.s32 %v545, %v547
  %v550 = vadd.s32 %v549, %v539
  %v551 = vadd.s32 %v550, %v541
  %v552 = vand.u32 %v529, 65535
  %v553 = vshrl.u32 %v529, 16
  %v554 = vand.u32 %v524, 65535
  %v555 = vshrl.u32 %v524, 16
  %v556 = vmul.u32 %v552, %v554
  %v557 = vmul.u32 %v552, %v555
  %v558 = vmul.u32 %v553, %v554
  %v559 = vmul.u32 %v553, %v555
  %v560 = vshll.u32 %v557, 16
  %v561 = vshrl.u32 %v557, 16
  %v562 = vshll.u32 %v558, 16
  %v563 = vshrl.u32 %v558, 16
  %vm564 = vc.u32 %v556, %v560
  %v565 = vsel %vm564, 1, 0
  %v566 = vadd.s32 %v556, %v560
  %v567 = vadd.s32 %v559, %v565
  %vm568 = vc.u32 %v566, %v562
  %v569 = vsel %vm568, 1, 0
  %v570 = vadd.s32 %v566, %v562
  %v571 = vadd.s32 %v567, %v569
  %v572 = vadd.s32 %v571, %v561
  %v573 = vadd.s32 %v572, %v563
  %v574 = vmul.u32 %v529, %v520
  %v575 = vadd.s32 %v551, %v570
  %vm576 = vc.u32 %v551, %v570
  %v577 = vadd.s32 %v573, 1
  %v578 = vsel %vm576, %v577, %v573
  %v579 = vadd.s32 %v574, %v578
  %v580 = vadd.s32 %v579, 536870912
  %v581 = vshrl.u32 %v580, 30
  %v582 = vshll.u32 %v581, 30
  %v583 = vsub.s32 %v579, %v582
  %vm584 = vcmp.lt.s32.totalorder %v583, 0
  %v585 = vsub.s32 0, %v583
  %v586 = vsel %vm584, %v585, %v583
  %v587 = vclz %v586
  %v588 = vsub.s32 %v587, 2
  %vm589 = vcmp.gt.s32.totalorder 0, %v588
  %v590 = vsel %vm589, 0, %v588
  %v591 = vsub.s32 32, %v590
  %v592 = vshll.u32 %v583, %v590
  %v593 = vshrl.u32 %v575, %v591
  %v594 = vor.u32 %v592, %v593
  %v595 = vsub.s32 4294967266, %v590
  %v596 = vadd.s32 %v595, 127
  %v597 = vshll.u32 %v596, 23
  %v598 = vor.u32 4788187, %v597
  %v599 = vand.u32 2147483647, %v598
  %v601 = vcvt.s32.f32 %v594
  %v602 = vmul.f32 %v601, %v599
  %v603 = vxor.u32 %v602, 2147483648
  %v604 = vsel %vm483, %v603, %v602
  %v605 = vsub.s32 4, %v581
  %v606 = vsel %vm483, %v605, %v581
  %v607 = vsel %vm482, %v15, %v604
  %v608 = vsel %vm482, 0, %v606
  %v609 = vmul.f32 %v607, %v607
  %v610 = vmul.f32 %v609, -0.001358992
  %v611 = vadd.f32 %v610, 0.041655596
  %v612 = vmul.f32 %v609, %v611
  %v613 = vadd.f32 %v612, -0.4999988
  %v614 = vmul.f32 %v609, %v613
  %v615 = vadd.f32 1.0, %v614
  %v616 = vmul.f32 %v607, %v607
  %v617 = vmul.f32 %v616, -0.00019511016
  %v618 = vadd.f32 %v617, 0.008332121
  %v619 = vmul.f32 %v616, %v618
  %v620 = vadd.f32 %v619, -0.16666654
  %v621 = vmul.f32 %v616, %v620
  %v622 = vadd.f32 %v621, 1.0
  %v623 = vmul.f32 %v622, %v607
  %vm624 = vweird.f32 %v15
  %v625 = vadd.s32 %v608, 3
  %v626 = vand.u32 %v625, 3
  %vm627 = vcmp.lt.s32.totalorder %v626, 2
  %vm628 = vcmp.eq.s32.totalorder %v626, 0
  %v629 = vxor.u32 %v623, 2147483648
  %v630 = vsel %vm628, %v615, %v629
  %vm631 = vcmp.eq.s32.totalorder %v626, 2
  %v632 = vxor.u32 %v615, 2147483648
  %v633 = vsel %vm631, %v632, %v623
  %v634 = vsel %vm627, %v630, %v633
  %v635 = vsel %vm624, nan, %v634
  %v636 = vand.u32 2147483647, %v12
  %vm637 = vcmp.le.f32.partialorder %v636, 0.7853982
  %vm638 = vcmp.lt.s32.totalorder %v12, 0
  %v639 = vand.u32 %v12, 2139095040
  %v640 = vshrl.u32 %v639, 23
  %v641 = vsub.s32 %v640, 127
  %v642 = vand.u32 2147483647, %v12
  %v643 = vand.u32 %v642, 8388607
  %v644 = vor.u32 %v643, 8388608
  %v645 = vsub.s32 0, %v644
  %v646 = vadd.s32 %v641, 1
  %vm647 = vcmp.gt.s32.totalorder %v646, 0
  %v648 = vsel %vm647, %v646, 0
  %v649 = vshrl.u32 %v648, 5
  %v650 = vand.u32 %v648, 31
  %v651 = vsub.s32 32, %v650
  %v652 = vshrl.u32 683565275, %v651
  %v653 = vshll.u32 683565275, %v650
  %v654 = vshrl.u32 2475754826, %v651
  %v655 = vor.u32 %v653, %v654
  %v656 = vshll.u32 2475754826, %v650
  %v657 = vshrl.u32 2131351028, %v651
  %v658 = vor.u32 %v656, %v657
  %v659 = vshll.u32 2131351028, %v650
  %v660 = vshrl.u32 2102212464, %v651
  %v661 = vor.u32 %v659, %v660
  %v662 = vshll.u32 2102212464, %v650
  %v663 = vshrl.u32 920167782, %v651
  %v664 = vor.u32 %v662, %v663
  %v665 = vshll.u32 920167782, %v650
  %v666 = vshrl.u32 1326507024, %v651
  %v667 = vor.u32 %v665, %v666
  %vm668 = vcmp.lt.s32.totalorder %v649, 1
  %vm669 = vcmp.lt.s32.totalorder %v649, 2
  %vm670 = vcmp.lt.s32.totalorder %v649, 3
  %vm671 = vcmp.lt.s32.totalorder %v649, 4
  %v672 = vsel %vm668, %v652, %v655
  %v673 = vsel %vm671, %v661, 2102212464
  %v674 = vsel %vm670, %v658, %v673
  %v675 = vsel %vm669, %v672, %v674
  %v676 = vsel %vm668, %v655, %v658
  %v677 = vsel %vm671, %v664, 920167782
  %v678 = vsel %vm670, %v661, %v677
  %v679 = vsel %vm669, %v676, %v678
  %v680 = vsel %vm668, %v658, %v661
  %v681 = vsel %vm671, %v667, 1326507024
  %v682 = vsel %vm670, %v664, %v681
  %v683 = vsel %vm669, %v680, %v682
  %v684 = vshll.u32 %v644, 8
  %v685 = vand.u32 %v684, 65535
  %v686 = vshrl.u32 %v684, 16
  %v687 = vand.u32 %v683, 65535
  %v688 = vshrl.u32 %v683, 16
  %v689 = vmul.u32 %v685, %v687
  %v690 = vmul.u32 %v685, %v688
  %v691 = vmul.u32 %v686, %v687
  %v692 = vmul.u32 %v686, %v688
  %v693 = vshll.u32 %v690, 16
  %v694 = vshrl.u32 %v690, 16
  %v695 = vshll.u32 %v691, 16
  %v696 = vshrl.u32 %v691, 16
  %vm697 = vc.u32 %v689, %v693
  %v698 = vsel %vm697, 1, 0
  %v699 = vadd.s32 %v689, %v693
  %v700 = vadd.s32 %v692, %v698
  %vm701 = vc.u32 %v699, %v695
  %v702 = vsel %vm701, 1, 0
  %v703 = vadd.s32 %v699, %v695
  %v704 = vadd.s32 %v700, %v702
  %v705 = vadd.s32 %v704, %v694
  %v706 = vadd.s32 %v705, %v696
  %v707 = vand.u32 %v684, 65535
  %v708 = vshrl.u32 %v684, 16
  %v709 = vand.u32 %v679, 65535
  %v710 = vshrl.u32 %v679, 16
  %v711 = vmul.u32 %v707, %v709
  %v712 = vmul.u32 %v707, %v710
  %v713 = vmul.u32 %v708, %v709
  %v714 = vmul.u32 %v708, %v710
  %v715 = vshll.u32 %v712, 16
  %v716 = vshrl.u32 %v712, 16
  %v717 = vshll.u32 %v713, 16
  %v718 = vshrl.u32 %v713, 16
  %vm719 = vc.u32 %v711, %v715
  %v720 = vsel %vm719, 1, 0
  %v721 = vadd.s32 %v711, %v715
  %v722 = vadd.s32 %v714, %v720
  %vm723 = vc.u32 %v721, %v717
  %v724 = vsel %vm723, 1, 0
  %v725 = vadd.s32 %v721, %v717
  %v726 = vadd.s32 %v722, %v724
  %v727 = vadd.s32 %v726, %v716
  %v728 = vadd.s32 %v727, %v718
  %v729 = vmul.u32 %v684, %v675
  %v730 = vadd.s32 %v706, %v725
  %vm731 = vc.u32 %v706, %v725
  %v732 = vadd.s32 %v728, 1
  %v733 = vsel %vm731, %v732, %v728
  %v734 = vadd.s32 %v729, %v733
  %v735 = vadd.s32 %v734, 536870912
  %v736 = vshrl.u32 %v735, 30
  %v737 = vshll.u32 %v736, 30
  %v738 = vsub.s32 %v734, %v737
  %vm739 = vcmp.lt.s32.totalorder %v738, 0
  %v740 = vsub.s32 0, %v738
  %v741 = vsel %vm739, %v740, %v738
  %v742 = vclz %v741
  %v743 = vsub.s32 %v742, 2
  %vm744 = vcmp.gt.s32.totalorder 0, %v743
  %v745 = vsel %vm744, 0, %v743
  %v746 = vsub.s32 32, %v745
  %v747 = vshll.u32 %v738, %v745
  %v748 = vshrl.u32 %v730, %v746
  %v749 = vor.u32 %v747, %v748
  %v750 = vsub.s32 4294967266, %v745
  %v751 = vadd.s32 %v750, 127
  %v752 = vshll.u32 %v751, 23
  %v753 = vor.u32 4788187, %v752
  %v754 = vand.u32 2147483647, %v753
  %v756 = vcvt.s32.f32 %v749
  %v757 = vmul.f32 %v756, %v754
  %v758 = vxor.u32 %v757, 2147483648
  %v759 = vsel %vm638, %v758, %v757
  %v760 = vsub.s32 4, %v736
  %v761 = vsel %vm638, %v760, %v736
  %v762 = vsel %vm637, %v12, %v759
  %v763 = vsel %vm637, 0, %v761
  %v764 = vmul.f32 %v762, %v762
  %v765 = vmul.f32 %v764, -0.001358992
  %v766 = vadd.f32 %v765, 0.041655596
  %v767 = vmul.f32 %v764, %v766
  %v768 = vadd.f32 %v767, -0.4999988
  %v769 = vmul.f32 %v764, %v768
  %v770 = vadd.f32 1.0, %v769
  %v771 = vmul.f32 %v762, %v762
  %v772 = vmul.f32 %v771, -0.00019511016
  %v773 = vadd.f32 %v772, 0.008332121
  %v774 = vmul.f32 %v771, %v773
  %v775 = vadd.f32 %v774, -0.16666654
  %v776 = vmul.f32 %v771, %v775
  %v777 = vadd.f32 %v776, 1.0
  %v778 = vmul.f32 %v777, %v762
  %vm779 = vweird.f32 %v12
  %v780 = vand.u32 %v763, 3
  %vm781 = vcmp.lt.s32.totalorder %v780, 2
  %vm782 = vcmp.eq.s32.totalorder %v780, 0
  %v783 = vxor.u32 %v778, 2147483648
  %v784 = vsel %vm782, %v770, %v783
  %vm785 = vcmp.eq.s32.totalorder %v780, 2
  %v786 = vxor.u32 %v770, 2147483648
  %v787 = vsel %vm785, %v786, %v778
  %v788 = vsel %vm781, %v784, %v787
  %v789 = vsel %vm779, nan, %v788
  %v790 = vand.u32 2147483647, %v13
  %vm791 = vcmp.le.f32.partialorder %v790, 0.7853982
  %vm792 = vcmp.lt.s32.totalorder %v13, 0
  %v793 = vand.u32 %v13, 2139095040
  %v794 = vshrl.u32 %v793, 23
  %v795 = vsub.s32 %v794, 127
  %v796 = vand.u32 2147483647, %v13
  %v797 = vand.u32 %v796, 8388607
  %v798 = vor.u32 %v797, 8388608
  %v799 = vsub.s32 0, %v798
  %v800 = vadd.s32 %v795, 1
  %vm801 = vcmp.gt.s32.totalorder %v800, 0
  %v802 = vsel %vm801, %v800, 0
  %v803 = vshrl.u32 %v802, 5
  %v804 = vand.u32 %v802, 31
  %v805 = vsub.s32 32, %v804
  %v806 = vshrl.u32 683565275, %v805
  %v807 = vshll.u32 683565275, %v804
  %v808 = vshrl.u32 2475754826, %v805
  %v809 = vor.u32 %v807, %v808
  %v810 = vshll.u32 2475754826, %v804
  %v811 = vshrl.u32 2131351028, %v805
  %v812 = vor.u32 %v810, %v811
  %v813 = vshll.u32 2131351028, %v804
  %v814 = vshrl.u32 2102212464, %v805
  %v815 = vor.u32 %v813, %v814
  %v816 = vshll.u32 2102212464, %v804
  %v817 = vshrl.u32 920167782, %v805
  %v818 = vor.u32 %v816, %v817
  %v819 = vshll.u32 920167782, %v804
  %v820 = vshrl.u32 1326507024, %v805
  %v821 = vor.u32 %v819, %v820
  %vm822 = vcmp.lt.s32.totalorder %v803, 1
  %vm823 = vcmp.lt.s32.totalorder %v803, 2
  %vm824 = vcmp.lt.s32.totalorder %v803, 3
  %vm825 = vcmp.lt.s32.totalorder %v803, 4
  %v826 = vsel %vm822, %v806, %v809
  %v827 = vsel %vm825, %v815, 2102212464
  %v828 = vsel %vm824, %v812, %v827
  %v829 = vsel %vm823, %v826, %v828
  %v830 = vsel %vm822, %v809, %v812
  %v831 = vsel %vm825, %v818, 920167782
  %v832 = vsel %vm824, %v815, %v831
  %v833 = vsel %vm823, %v830, %v832
  %v834 = vsel %vm822, %v812, %v815
  %v835 = vsel %vm825, %v821, 1326507024
  %v836 = vsel %vm824, %v818, %v835
  %v837 = vsel %vm823, %v834, %v836
  %v838 = vshll.u32 %v798, 8
  %v839 = vand.u32 %v838, 65535
  %v840 = vshrl.u32 %v838, 16
  %v841 = vand.u32 %v837, 65535
  %v842 = vshrl.u32 %v837, 16
  %v843 = vmul.u32 %v839, %v841
  %v844 = vmul.u32 %v839, %v842
  %v845 = vmul.u32 %v840, %v841
  %v846 = vmul.u32 %v840, %v842
  %v847 = vshll.u32 %v844, 16
  %v848 = vshrl.u32 %v844, 16
  %v849 = vshll.u32 %v845, 16
  %v850 = vshrl.u32 %v845, 16
  %vm851 = vc.u32 %v843, %v847
  %v852 = vsel %vm851, 1, 0
  %v853 = vadd.s32 %v843, %v847
  %v854 = vadd.s32 %v846, %v852
  %vm855 = vc.u32 %v853, %v849
  %v856 = vsel %vm855, 1, 0
  %v857 = vadd.s32 %v853, %v849
  %v858 = vadd.s32 %v854, %v856
  %v859 = vadd.s32 %v858, %v848
  %v860 = vadd.s32 %v859, %v850
  %v861 = vand.u32 %v838, 65535
  %v862 = vshrl.u32 %v838, 16
  %v863 = vand.u32 %v833, 65535
  %v864 = vshrl.u32 %v833, 16
  %v865 = vmul.u32 %v861, %v863
  %v866 = vmul.u32 %v861, %v864
  %v867 = vmul.u32 %v862, %v863
  %v868 = vmul.u32 %v862, %v864
  %v869 = vshll.u32 %v866, 16
  %v870 = vshrl.u32 %v866, 16
  %v871 = vshll.u32 %v867, 16
  %v872 = vshrl.u32 %v867, 16
  %vm873 = vc.u32 %v865, %v869
  %v874 = vsel %vm873, 1, 0
  %v875 = vadd.s32 %v865, %v869
  %v876 = vadd.s32 %v868, %v874
  %vm877 = vc.u32 %v875, %v871
  %v878 = vsel %vm877, 1, 0
  %v879 = vadd.s32 %v875, %v871
  %v880 = vadd.s32 %v876, %v878
  %v881 = vadd.s32 %v880, %v870
  %v882 = vadd.s32 %v881, %v872
  %v883 = vmul.u32 %v838, %v829
  %v884 = vadd.s32 %v860, %v879
  %vm885 = vc.u32 %v860, %v879
  %v886 = vadd.s32 %v882, 1
  %v887 = vsel %vm885, %v886, %v882
  %v888 = vadd.s32 %v883, %v887
  %v889 = vadd.s32 %v888, 536870912
  %v890 = vshrl.u32 %v889, 30
  %v891 = vshll.u32 %v890, 30
  %v892 = vsub.s32 %v888, %v891
  %vm893 = vcmp.lt.s32.totalorder %v892, 0
  %v894 = vsub.s32 0, %v892
  %v895 = vsel %vm893, %v894, %v892
  %v896 = vclz %v895
  %v897 = vsub.s32 %v896, 2
  %vm898 = vcmp.gt.s32.totalorder 0, %v897
  %v899 = vsel %vm898, 0, %v897
  %v900 = vsub.s32 32, %v899
  %v901 = vshll.u32 %v892, %v899
  %v902 = vshrl.u32 %v884, %v900
  %v903 = vor.u32 %v901, %v902
  %v904 = vsub.s32 4294967266, %v899
  %v905 = vadd.s32 %v904, 127
  %v906 = vshll.u32 %v905, 23
  %v907 = vor.u32 4788187, %v906
  %v908 = vand.u32 2147483647, %v907
  %v910 = vcvt.s32.f32 %v903
  %v911 = vmul.f32 %v910, %v908
  %v912 = vxor.u32 %v911, 2147483648
  %v913 = vsel %vm792, %v912, %v911
  %v914 = vsub.s32 4, %v890
  %v915 = vsel %vm792, %v914, %v890
  %v916 = vsel %vm791, %v13, %v913
  %v917 = vsel %vm791, 0, %v915
  %v918 = vmul.f32 %v916, %v916
  %v919 = vmul.f32 %v918, -0.001358992
  %v920 = vadd.f32 %v919, 0.041655596
  %v921 = vmul.f32 %v918, %v920
  %v922 = vadd.f32 %v921, -0.4999988
  %v923 = vmul.f32 %v918, %v922
  %v924 = vadd.f32 1.0, %v923
  %v925 = vmul.f32 %v916, %v916
  %v926 = vmul.f32 %v925, -0.00019511016
  %v927 = vadd.f32 %v926, 0.008332121
  %v928 = vmul.f32 %v925, %v927
  %v929 = vadd.f32 %v928, -0.16666654
  %v930 = vmul.f32 %v925, %v929
  %v931 = vadd.f32 %v930, 1.0
  %v932 = vmul.f32 %v931, %v916
  %vm933 = vweird.f32 %v13
  %v934 = vand.u32 %v917, 3
  %vm935 = vcmp.lt.s32.totalorder %v934, 2
  %vm936 = vcmp.eq.s32.totalorder %v934, 0
  %v937 = vxor.u32 %v932, 2147483648
  %v938 = vsel %vm936, %v924, %v937
  %vm939 = vcmp.eq.s32.totalorder %v934, 2
  %v940 = vxor.u32 %v924, 2147483648
  %v941 = vsel %vm939, %v940, %v932
  %v942 = vsel %vm935, %v938, %v941
  %v943 = vsel %vm933, nan, %v942
  %v944 = vand.u32 2147483647, %v14
  %vm945 = vcmp.le.f32.partialorder %v944, 0.7853982
  %vm946 = vcmp.lt.s32.totalorder %v14, 0
  %v947 = vand.u32 %v14, 2139095040
  %v948 = vshrl.u32 %v947, 23
  %v949 = vsub.s32 %v948, 127
  %v950 = vand.u32 2147483647, %v14
  %v951 = vand.u32 %v950, 8388607
  %v952 = vor.u32 %v951, 8388608
  %v953 = vsub.s32 0, %v952
  %v954 = vadd.s32 %v949, 1
  %vm955 = vcmp.gt.s32.totalorder %v954, 0
  %v956 = vsel %vm955, %v954, 0
  %v957 = vshrl.u32 %v956, 5
  %v958 = vand.u32 %v956, 31
  %v959 = vsub.s32 32, %v958
  %v960 = vshrl.u32 683565275, %v959
  %v961 = vshll.u32 683565275, %v958
  %v962 = vshrl.u32 2475754826, %v959
  %v963 = vor.u32 %v961, %v962
  %v964 = vshll.u32 2475754826, %v958
  %v965 = vshrl.u32 2131351028, %v959
  %v966 = vor.u32 %v964, %v965
  %v967 = vshll.u32 2131351028, %v958
  %v968 = vshrl.u32 2102212464, %v959
  %v969 = vor.u32 %v967, %v968
  %v970 = vshll.u32 2102212464, %v958
  %v971 = vshrl.u32 920167782, %v959
  %v972 = vor.u32 %v970, %v971
  %v973 = vshll.u32 920167782, %v958
  %v974 = vshrl.u32 1326507024, %v959
  %v975 = vor.u32 %v973, %v974
  %vm976 = vcmp.lt.s32.totalorder %v957, 1
  %vm977 = vcmp.lt.s32.totalorder %v957, 2
  %vm978 = vcmp.lt.s32.totalorder %v957, 3
  %vm979 = vcmp.lt.s32.totalorder %v957, 4
  %v980 = vsel %vm976, %v960, %v963
  %v981 = vsel %vm979, %v969, 2102212464
  %v982 = vsel %vm978, %v966, %v981
  %v983 = vsel %vm977, %v980, %v982
  %v984 = vsel %vm976, %v963, %v966
  %v985 = vsel %vm979, %v972, 920167782
  %v986 = vsel %vm978, %v969, %v985
  %v987 = vsel %vm977, %v984, %v986
  %v988 = vsel %vm976, %v966, %v969
  %v989 = vsel %vm979, %v975, 1326507024
  %v990 = vsel %vm978, %v972, %v989
  %v991 = vsel %vm977, %v988, %v990
  %v992 = vshll.u32 %v952, 8
  %v993 = vand.u32 %v992, 65535
  %v994 = vshrl.u32 %v992, 16
  %v995 = vand.u32 %v991, 65535
  %v996 = vshrl.u32 %v991, 16
  %v997 = vmul.u32 %v993, %v995
  %v998 = vmul.u32 %v993, %v996
  %v999 = vmul.u32 %v994, %v995
  %v1000 = vmul.u32 %v994, %v996
  %v1001 = vshll.u32 %v998, 16
  %v1002 = vshrl.u32 %v998, 16
  %v1003 = vshll.u32 %v999, 16
  %v1004 = vshrl.u32 %v999, 16
  %vm1005 = vc.u32 %v997, %v1001
  %v1006 = vsel %vm1005, 1, 0
  %v1007 = vadd.s32 %v997, %v1001
  %v1008 = vadd.s32 %v1000, %v1006
  %vm1009 = vc.u32 %v1007, %v1003
  %v1010 = vsel %vm1009, 1, 0
  %v1011 = vadd.s32 %v1007, %v1003
  %v1012 = vadd.s32 %v1008, %v1010
  %v1013 = vadd.s32 %v1012, %v1002
  %v1014 = vadd.s32 %v1013, %v1004
  %v1015 = vand.u32 %v992, 65535
  %v1016 = vshrl.u32 %v992, 16
  %v1017 = vand.u32 %v987, 65535
  %v1018 = vshrl.u32 %v987, 16
  %v1019 = vmul.u32 %v1015, %v1017
  %v1020 = vmul.u32 %v1015, %v1018
  %v1021 = vmul.u32 %v1016, %v1017
  %v1022 = vmul.u32 %v1016, %v1018
  %v1023 = vshll.u32 %v1020, 16
  %v1024 = vshrl.u32 %v1020, 16
  %v1025 = vshll.u32 %v1021, 16
  %v1026 = vshrl.u32 %v1021, 16
  %vm1027 = vc.u32 %v1019, %v1023
  %v1028 = vsel %vm1027, 1, 0
  %v1029 = vadd.s32 %v1019, %v1023
  %v1030 = vadd.s32 %v1022, %v1028
  %vm1031 = vc.u32 %v1029, %v1025
  %v1032 = vsel %vm1031, 1, 0
  %v1033 = vadd.s32 %v1029, %v1025
  %v1034 = vadd.s32 %v1030, %v1032
  %v1035 = vadd.s32 %v1034, %v1024
  %v1036 = vadd.s32 %v1035, %v1026
  %v1037 = vmul.u32 %v992, %v983
  %v1038 = vadd.s32 %v1014, %v1033
  %vm1039 = vc.u32 %v1014, %v1033
  %v1040 = vadd.s32 %v1036, 1
  %v1041 = vsel %vm1039, %v1040, %v1036
  %v1042 = vadd.s32 %v1037, %v1041
  %v1043 = vadd.s32 %v1042, 536870912
  %v1044 = vshrl.u32 %v1043, 30
  %v1045 = vshll.u32 %v1044, 30
  %v1046 = vsub.s32 %v1042, %v1045
  %vm1047 = vcmp.lt.s32.totalorder %v1046, 0
  %v1048 = vsub.s32 0, %v1046
  %v1049 = vsel %vm1047, %v1048, %v1046
  %v1050 = vclz %v1049
  %v1051 = vsub.s32 %v1050, 2
  %vm1052 = vcmp.gt.s32.totalorder 0, %v1051
  %v1053 = vsel %vm1052, 0, %v1051
  %v1054 = vsub.s32 32, %v1053
  %v1055 = vshll.u32 %v1046, %v1053
  %v1056 = vshrl.u32 %v1038, %v1054
  %v1057 = vor.u32 %v1055, %v1056
  %v1058 = vsub.s32 4294967266, %v1053
  %v1059 = vadd.s32 %v1058, 127
  %v1060 = vshll.u32 %v1059, 23
  %v1061 = vor.u32 4788187, %v1060
  %v1062 = vand.u32 2147483647, %v1061
  %v1064 = vcvt.s32.f32 %v1057
  %v1065 = vmul.f32 %v1064, %v1062
  %v1066 = vxor.u32 %v1065, 2147483648
  %v1067 = vsel %vm946, %v1066, %v1065
  %v1068 = vsub.s32 4, %v1044
  %v1069 = vsel %vm946, %v1068, %v1044
  %v1070 = vsel %vm945, %v14, %v1067
  %v1071 = vsel %vm945, 0, %v1069
  %v1072 = vmul.f32 %v1070, %v1070
  %v1073 = vmul.f32 %v1072, -0.001358992
  %v1074 = vadd.f32 %v1073, 0.041655596
  %v1075 = vmul.f32 %v1072, %v1074
  %v1076 = vadd.f32 %v1075, -0.4999988
  %v1077 = vmul.f32 %v1072, %v1076
  %v1078 = vadd.f32 1.0, %v1077
  %v1079 = vmul.f32 %v1070, %v1070
  %v1080 = vmul.f32 %v1079, -0.00019511016
  %v1081 = vadd.f32 %v1080, 0.008332121
  %v1082 = vmul.f32 %v1079, %v1081
  %v1083 = vadd.f32 %v1082, -0.16666654
  %v1084 = vmul.f32 %v1079, %v1083
  %v1085 = vadd.f32 %v1084, 1.0
  %v1086 = vmul.f32 %v1085, %v1070
  %vm1087 = vweird.f32 %v14
  %v1088 = vand.u32 %v1071, 3
  %vm1089 = vcmp.lt.s32.totalorder %v1088, 2
  %vm1090 = vcmp.eq.s32.totalorder %v1088, 0
  %v1091 = vxor.u32 %v1086, 2147483648
  %v1092 = vsel %vm1090, %v1078, %v1091
  %vm1093 = vcmp.eq.s32.totalorder %v1088, 2
  %v1094 = vxor.u32 %v1078, 2147483648
  %v1095 = vsel %vm1093, %v1094, %v1086
  %v1096 = vsel %vm1089, %v1092, %v1095
  %v1097 = vsel %vm1087, nan, %v1096
  %v1098 = vand.u32 2147483647, %v15
  %vm1099 = vcmp.le.f32.partialorder %v1098, 0.7853982
  %vm1100 = vcmp.lt.s32.totalorder %v15, 0
  %v1101 = vand.u32 %v15, 2139095040
  %v1102 = vshrl.u32 %v1101, 23
  %v1103 = vsub.s32 %v1102, 127
  %v1104 = vand.u32 2147483647, %v15
  %v1105 = vand.u32 %v1104, 8388607
  %v1106 = vor.u32 %v1105, 8388608
  %v1107 = vsub.s32 0, %v1106
  %v1108 = vadd.s32 %v1103, 1
  %vm1109 = vcmp.gt.s32.totalorder %v1108, 0
  %v1110 = vsel %vm1109, %v1108, 0
  %v1111 = vshrl.u32 %v1110, 5
  %v1112 = vand.u32 %v1110, 31
  %v1113 = vsub.s32 32, %v1112
  %v1114 = vshrl.u32 683565275, %v1113
  %v1115 = vshll.u32 683565275, %v1112
  %v1116 = vshrl.u32 2475754826, %v1113
  %v1117 = vor.u32 %v1115, %v1116
  %v1118 = vshll.u32 2475754826, %v1112
  %v1119 = vshrl.u32 2131351028, %v1113
  %v1120 = vor.u32 %v1118, %v1119
  %v1121 = vshll.u32 2131351028, %v1112
  %v1122 = vshrl.u32 2102212464, %v1113
  %v1123 = vor.u32 %v1121, %v1122
  %v1124 = vshll.u32 2102212464, %v1112
  %v1125 = vshrl.u32 920167782, %v1113
  %v1126 = vor.u32 %v1124, %v1125
  %v1127 = vshll.u32 920167782, %v1112
  %v1128 = vshrl.u32 1326507024, %v1113
  %v1129 = vor.u32 %v1127, %v1128
  %vm1130 = vcmp.lt.s32.totalorder %v1111, 1
  %vm1131 = vcmp.lt.s32.totalorder %v1111, 2
  %vm1132 = vcmp.lt.s32.totalorder %v1111, 3
  %vm1133 = vcmp.lt.s32.totalorder %v1111, 4
  %v1134 = vsel %vm1130, %v1114, %v1117
  %v1135 = vsel %vm1133, %v1123, 2102212464
  %v1136 = vsel %vm1132, %v1120, %v1135
  %v1137 = vsel %vm1131, %v1134, %v1136
  %v1138 = vsel %vm1130, %v1117, %v1120
  %v1139 = vsel %vm1133, %v1126, 920167782
  %v1140 = vsel %vm1132, %v1123, %v1139
  %v1141 = vsel %vm1131, %v1138, %v1140
  %v1142 = vsel %vm1130, %v1120, %v1123
  %v1143 = vsel %vm1133, %v1129, 1326507024
  %v1144 = vsel %vm1132, %v1126, %v1143
  %v1145 = vsel %vm1131, %v1142, %v1144
  %v1146 = vshll.u32 %v1106, 8
  %v1147 = vand.u32 %v1146, 65535
  %v1148 = vshrl.u32 %v1146, 16
  %v1149 = vand.u32 %v1145, 65535
  %v1150 = vshrl.u32 %v1145, 16
  %v1151 = vmul.u32 %v1147, %v1149
  %v1152 = vmul.u32 %v1147, %v1150
  %v1153 = vmul.u32 %v1148, %v1149
  %v1154 = vmul.u32 %v1148, %v1150
  %v1155 = vshll.u32 %v1152, 16
  %v1156 = vshrl.u32 %v1152, 16
  %v1157 = vshll.u32 %v1153, 16
  %v1158 = vshrl.u32 %v1153, 16
  %vm1159 = vc.u32 %v1151, %v1155
  %v1160 = vsel %vm1159, 1, 0
  %v1161 = vadd.s32 %v1151, %v1155
  %v1162 = vadd.s32 %v1154, %v1160
  %vm1163 = vc.u32 %v1161, %v1157
  %v1164 = vsel %vm1163, 1, 0
  %v1165 = vadd.s32 %v1161, %v1157
  %v1166 = vadd.s32 %v1162, %v1164
  %v1167 = vadd.s32 %v1166, %v1156
  %v1168 = vadd.s32 %v1167, %v1158
  %v1169 = vand.u32 %v1146, 65535
  %v1170 = vshrl.u32 %v1146, 16
  %v1171 = vand.u32 %v1141, 65535
  %v1172 = vshrl.u32 %v1141, 16
  %v1173 = vmul.u32 %v1169, %v1171
  %v1174 = vmul.u32 %v1169, %v1172
  %v1175 = vmul.u32 %v1170, %v1171
  %v1176 = vmul.u32 %v1170, %v1172
  %v1177 = vshll.u32 %v1174, 16
  %v1178 = vshrl.u32 %v1174, 16
  %v1179 = vshll.u32 %v1175, 16
  %v1180 = vshrl.u32 %v1175, 16
  %vm1181 = vc.u32 %v1173, %v1177
  %v1182 = vsel %vm1181, 1, 0
  %v1183 = vadd.s32 %v1173, %v1177
  %v1184 = vadd.s32 %v1176, %v1182
  %vm1185 = vc.u32 %v1183, %v1179
  %v1186 = vsel %vm1185, 1, 0
  %v1187 = vadd.s32 %v1183, %v1179
  %v1188 = vadd.s32 %v1184, %v1186
  %v1189 = vadd.s32 %v1188, %v1178
  %v1190 = vadd.s32 %v1189, %v1180
  %v1191 = vmul.u32 %v1146, %v1137
  %v1192 = vadd.s32 %v1168, %v1187
  %vm1193 = vc.u32 %v1168, %v1187
  %v1194 = vadd.s32 %v1190, 1
  %v1195 = vsel %vm1193, %v1194, %v1190
  %v1196 = vadd.s32 %v1191, %v1195
  %v1197 = vadd.s32 %v1196, 536870912
  %v1198 = vshrl.u32 %v1197, 30
  %v1199 = vshll.u32 %v1198, 30
  %v1200 = vsub.s32 %v1196, %v1199
  %vm1201 = vcmp.lt.s32.totalorder %v1200, 0
  %v1202 = vsub.s32 0, %v1200
  %v1203 = vsel %vm1201, %v1202, %v1200
  %v1204 = vclz %v1203
  %v1205 = vsub.s32 %v1204, 2
  %vm1206 = vcmp.gt.s32.totalorder 0, %v1205
  %v1207 = vsel %vm1206, 0, %v1205
  %v1208 = vsub.s32 32, %v1207
  %v1209 = vshll.u32 %v1200, %v1207
  %v1210 = vshrl.u32 %v1192, %v1208
  %v1211 = vor.u32 %v1209, %v1210
  %v1212 = vsub.s32 4294967266, %v1207
  %v1213 = vadd.s32 %v1212, 127
  %v1214 = vshll.u32 %v1213, 23
  %v1215 = vor.u32 4788187, %v1214
  %v1216 = vand.u32 2147483647, %v1215
  %v1218 = vcvt.s32.f32 %v1211
  %v1219 = vmul.f32 %v1218, %v1216
  %v1220 = vxor.u32 %v1219, 2147483648
  %v1221 = vsel %vm1100, %v1220, %v1219
  %v1222 = vsub.s32 4, %v1198
  %v1223 = vsel %vm1100, %v1222, %v1198
  %v1224 = vsel %vm1099, %v15, %v1221
  %v1225 = vsel %vm1099, 0, %v1223
  %v1226 = vmul.f32 %v1224, %v1224
  %v1227 = vmul.f32 %v1226, -0.001358992
  %v1228 = vadd.f32 %v1227, 0.041655596
  %v1229 = vmul.f32 %v1226, %v1228
  %v1230 = vadd.f32 %v1229, -0.4999988
  %v1231 = vmul.f32 %v1226, %v1230
  %v1232 = vadd.f32 1.0, %v1231
  %v1233 = vmul.f32 %v1224, %v1224
  %v1234 = vmul.f32 %v1233, -0.00019511016
  %v1235 = vadd.f32 %v1234, 0.008332121
  %v1236 = vmul.f32 %v1233, %v1235
  %v1237 = vadd.f32 %v1236, -0.16666654
  %v1238 = vmul.f32 %v1233, %v1237
  %v1239 = vadd.f32 %v1238, 1.0
  %v1240 = vmul.f32 %v1239, %v1224
  %vm1241 = vweird.f32 %v15
  %v1242 = vand.u32 %v1225, 3
  %vm1243 = vcmp.lt.s32.totalorder %v1242, 2
  %vm1244 = vcmp.eq.s32.totalorder %v1242, 0
  %v1245 = vxor.u32 %v1240, 2147483648
  %v1246 = vsel %vm1244, %v1232, %v1245
  %vm1247 = vcmp.eq.s32.totalorder %v1242, 2
  %v1248 = vxor.u32 %v1232, 2147483648
  %v1249 = vsel %vm1247, %v1248, %v1240
  %v1250 = vsel %vm1243, %v1246, %v1249
  %v1251 = vsel %vm1241, nan, %v1250
  %v1252 = vmul.f32 %v8, 6.2831855
  %v1253 = vmul.f32 %v9, 6.2831855
  %v1254 = vmul.f32 %v10, 6.2831855
  %v1255 = vmul.f32 %v11, 6.2831855
  %v1256 = vand.u32 2147483647, %v1252
  %vm1257 = vcmp.le.f32.partialorder %v1256, 0.7853982
  %vm1258 = vcmp.lt.s32.totalorder %v1252, 0
  %v1259 = vand.u32 %v1252, 2139095040
  %v1260 = vshrl.u32 %v1259, 23
  %v1261 = vsub.s32 %v1260, 127
  %v1262 = vand.u32 2147483647, %v1252
  %v1263 = vand.u32 %v1262, 8388607
  %v1264 = vor.u32 %v1263, 8388608
  %v1265 = vsub.s32 0, %v1264
  %v1266 = vadd.s32 %v1261, 1
  %vm1267 = vcmp.gt.s32.totalorder %v1266, 0
  %v1268 = vsel %vm1267, %v1266, 0
  %v1269 = vshrl.u32 %v1268, 5
  %v1270 = vand.u32 %v1268, 31
  %v1271 = vsub.s32 32, %v1270
  %v1272 = vshrl.u32 683565275, %v1271
  %v1273 = vshll.u32 683565275, %v1270
  %v1274 = vshrl.u32 2475754826, %v1271
  %v1275 = vor.u32 %v1273, %v1274
  %v1276 = vshll.u32 2475754826, %v1270
  %v1277 = vshrl.u32 2131351028, %v1271
  %v1278 = vor.u32 %v1276, %v1277
  %v1279 = vshll.u32 2131351028, %v1270
  %v1280 = vshrl.u32 2102212464, %v1271
  %v1281 = vor.u32 %v1279, %v1280
  %v1282 = vshll.u32 2102212464, %v1270
  %v1283 = vshrl.u32 920167782, %v1271
  %v1284 = vor.u32 %v1282, %v1283
  %v1285 = vshll.u32 920167782, %v1270
  %v1286 = vshrl.u32 1326507024, %v1271
  %v1287 = vor.u32 %v1285, %v1286
  %vm1288 = vcmp.lt.s32.totalorder %v1269, 1
  %vm1289 = vcmp.lt.s32.totalorder %v1269, 2
  %vm1290 = vcmp.lt.s32.totalorder %v1269, 3
  %vm1291 = vcmp.lt.s32.totalorder %v1269, 4
  %v1292 = vsel %vm1288, %v1272, %v1275
  %v1293 = vsel %vm1291, %v1281, 2102212464
  %v1294 = vsel %vm1290, %v1278, %v1293
  %v1295 = vsel %vm1289, %v1292, %v1294
  %v1296 = vsel %vm1288, %v1275, %v1278
  %v1297 = vsel %vm1291, %v1284, 920167782
  %v1298 = vsel %vm1290, %v1281, %v1297
  %v1299 = vsel %vm1289, %v1296, %v1298
  %v1300 = vsel %vm1288, %v1278, %v1281
  %v1301 = vsel %vm1291, %v1287, 1326507024
  %v1302 = vsel %vm1290, %v1284, %v1301
  %v1303 = vsel %vm1289, %v1300, %v1302
  %v1304 = vshll.u32 %v1264, 8
  %v1305 = vand.u32 %v1304, 65535
  %v1306 = vshrl.u32 %v1304, 16
  %v1307 = vand.u32 %v1303, 65535
  %v1308 = vshrl.u32 %v1303, 16
  %v1309 = vmul.u32 %v1305, %v1307
  %v1310 = vmul.u32 %v1305, %v1308
  %v1311 = vmul.u32 %v1306, %v1307
  %v1312 = vmul.u32 %v1306, %v1308
  %v1313 = vshll.u32 %v1310, 16
  %v1314 = vshrl.u32 %v1310, 16
  %v1315 = vshll.u32 %v1311, 16
  %v1316 = vshrl.u32 %v1311, 16
  %vm1317 = vc.u32 %v1309, %v1313
  %v1318 = vsel %vm1317, 1, 0
  %v1319 = vadd.s32 %v1309, %v1313
  %v1320 = vadd.s32 %v1312, %v1318
  %vm1321 = vc.u32 %v1319, %v1315
  %v1322 = vsel %vm1321, 1, 0
  %v1323 = vadd.s32 %v1319, %v1315
  %v1324 = vadd.s32 %v1320, %v1322
  %v1325 = vadd.s32 %v1324, %v1314
  %v1326 = vadd.s32 %v1325, %v1316
  %v1327 = vand.u32 %v1304, 65535
  %v1328 = vshrl.u32 %v1304, 16
  %v1329 = vand.u32 %v1299, 65535
  %v1330 = vshrl.u32 %v1299, 16
  %v1331 = vmul.u32 %v1327, %v1329
  %v1332 = vmul.u32 %v1327, %v1330
  %v1333 = vmul.u32 %v1328, %v1329
  %v1334 = vmul.u32 %v1328, %v1330
  %v1335 = vshll.u32 %v1332, 16
  %v1336 = vshrl.u32 %v1332, 16
  %v1337 = vshll.u32 %v1333, 16
  %v1338 = vshrl.u32 %v1333, 16
  %vm1339 = vc.u32 %v1331, %v1335
  %v1340 = vsel %vm1339, 1, 0
  %v1341 = vadd.s32 %v1331, %v1335
  %v1342 = vadd.s32 %v1334, %v1340
  %vm1343 = vc.u32 %v1341, %v1337
  %v1344 = vsel %vm1343, 1, 0
  %v1345 = vadd.s32 %v1341, %v1337
  %v1346 = vadd.s32 %v1342, %v1344
  %v1347 = vadd.s32 %v1346, %v1336
  %v1348 = vadd.s32 %v1347, %v1338
  %v1349 = vmul.u32 %v1304, %v1295
  %v1350 = vadd.s32 %v1326, %v1345
  %vm1351 = vc.u32 %v1326, %v1345
  %v1352 = vadd.s32 %v1348, 1
  %v1353 = vsel %vm1351, %v1352, %v1348
  %v1354 = vadd.s32 %v1349, %v1353
  %v1355 = vadd.s32 %v1354, 536870912
  %v1356 = vshrl.u32 %v1355, 30
  %v1357 = vshll.u32 %v1356, 30
  %v1358 = vsub.s32 %v1354, %v1357
  %vm1359 = vcmp.lt.s32.totalorder %v1358, 0
  %v1360 = vsub.s32 0, %v1358
  %v1361 = vsel %vm1359, %v1360, %v1358
  %v1362 = vclz %v1361
  %v1363 = vsub.s32 %v1362, 2
  %vm1364 = vcmp.gt.s32.totalorder 0, %v1363
  %v1365 = vsel %vm1364, 0, %v1363
  %v1366 = vsub.s32 32, %v1365
  %v1367 = vshll.u32 %v1358, %v1365
  %v1368 = vshrl.u32 %v1350, %v1366
  %v1369 = vor.u32 %v1367, %v1368
  %v1370 = vsub.s32 4294967266, %v1365
  %v1371 = vadd.s32 %v1370, 127
  %v1372 = vshll.u32 %v1371, 23
  %v1373 = vor.u32 4788187, %v1372
  %v1374 = vand.u32 2147483647, %v1373
  %v1376 = vcvt.s32.f32 %v1369
  %v1377 = vmul.f32 %v1376, %v1374
  %v1378 = vxor.u32 %v1377, 2147483648
  %v1379 = vsel %vm1258, %v1378, %v1377
  %v1380 = vsub.s32 4, %v1356
  %v1381 = vsel %vm1258, %v1380, %v1356
  %v1382 = vsel %vm1257, %v1252, %v1379
  %v1383 = vsel %vm1257, 0, %v1381
  %v1384 = vmul.f32 %v1382, %v1382
  %v1385 = vmul.f32 %v1384, -0.001358992
  %v1386 = vadd.f32 %v1385, 0.041655596
  %v1387 = vmul.f32 %v1384, %v1386
  %v1388 = vadd.f32 %v1387, -0.4999988
  %v1389 = vmul.f32 %v1384, %v1388
  %v1390 = vadd.f32 1.0, %v1389
  %v1391 = vmul.f32 %v1382, %v1382
  %v1392 = vmul.f32 %v1391, -0.00019511016
  %v1393 = vadd.f32 %v1392, 0.008332121
  %v1394 = vmul.f32 %v1391, %v1393
  %v1395 = vadd.f32 %v1394, -0.16666654
  %v1396 = vmul.f32 %v1391, %v1395
  %v1397 = vadd.f32 %v1396, 1.0
  %v1398 = vmul.f32 %v1397, %v1382
  %vm1399 = vweird.f32 %v1252
  %v1400 = vadd.s32 %v1383, 3
  %v1401 = vand.u32 %v1400, 3
  %vm1402 = vcmp.lt.s32.totalorder %v1401, 2
  %vm1403 = vcmp.eq.s32.totalorder %v1401, 0
  %v1404 = vxor.u32 %v1398, 2147483648
  %v1405 = vsel %vm1403, %v1390, %v1404
  %vm1406 = vcmp.eq.s32.totalorder %v1401, 2
  %v1407 = vxor.u32 %v1390, 2147483648
  %v1408 = vsel %vm1406, %v1407, %v1398
  %v1409 = vsel %vm1402, %v1405, %v1408
  %v1410 = vsel %vm1399, nan, %v1409
  %v1411 = vand.u32 2147483647, %v1253
  %vm1412 = vcmp.le.f32.partialorder %v1411, 0.7853982
  %vm1413 = vcmp.lt.s32.totalorder %v1253, 0
  %v1414 = vand.u32 %v1253, 2139095040
  %v1415 = vshrl.u32 %v1414, 23
  %v1416 = vsub.s32 %v1415, 127
  %v1417 = vand.u32 2147483647, %v1253
  %v1418 = vand.u32 %v1417, 8388607
  %v1419 = vor.u32 %v1418, 8388608
  %v1420 = vsub.s32 0, %v1419
  %v1421 = vadd.s32 %v1416, 1
  %vm1422 = vcmp.gt.s32.totalorder %v1421, 0
  %v1423 = vsel %vm1422, %v1421, 0
  %v1424 = vshrl.u32 %v1423, 5
  %v1425 = vand.u32 %v1423, 31
  %v1426 = vsub.s32 32, %v1425
  %v1427 = vshrl.u32 683565275, %v1426
  %v1428 = vshll.u32 683565275, %v1425
  %v1429 = vshrl.u32 2475754826, %v1426
  %v1430 = vor.u32 %v1428, %v1429
  %v1431 = vshll.u32 2475754826, %v1425
  %v1432 = vshrl.u32 2131351028, %v1426
  %v1433 = vor.u32 %v1431, %v1432
  %v1434 = vshll.u32 2131351028, %v1425
  %v1435 = vshrl.u32 2102212464, %v1426
  %v1436 = vor.u32 %v1434, %v1435
  %v1437 = vshll.u32 2102212464, %v1425
  %v1438 = vshrl.u32 920167782, %v1426
  %v1439 = vor.u32 %v1437, %v1438
  %v1440 = vshll.u32 920167782, %v1425
  %v1441 = vshrl.u32 1326507024, %v1426
  %v1442 = vor.u32 %v1440, %v1441
  %vm1443 = vcmp.lt.s32.totalorder %v1424, 1
  %vm1444 = vcmp.lt.s32.totalorder %v1424, 2
  %vm1445 = vcmp.lt.s32.totalorder %v1424, 3
  %vm1446 = vcmp.lt.s32.totalorder %v1424, 4
  %v1447 = vsel %vm1443, %v1427, %v1430
  %v1448 = vsel %vm1446, %v1436, 2102212464
  %v1449 = vsel %vm1445, %v1433, %v1448
  %v1450 = vsel %vm1444, %v1447, %v1449
  %v1451 = vsel %vm1443, %v1430, %v1433
  %v1452 = vsel %vm1446, %v1439, 920167782
  %v1453 = vsel %vm1445, %v1436, %v1452
  %v1454 = vsel %vm1444, %v1451, %v1453
  %v1455 = vsel %vm1443, %v1433, %v1436
  %v1456 = vsel %vm1446, %v1442, 1326507024
  %v1457 = vsel %vm1445, %v1439, %v1456
  %v1458 = vsel %vm1444, %v1455, %v1457
  %v1459 = vshll.u32 %v1419, 8
  %v1460 = vand.u32 %v1459, 65535
  %v1461 = vshrl.u32 %v1459, 16
  %v1462 = vand.u32 %v1458, 65535
  %v1463 = vshrl.u32 %v1458, 16
  %v1464 = vmul.u32 %v1460, %v1462
  %v1465 = vmul.u32 %v1460, %v1463
  %v1466 = vmul.u32 %v1461, %v1462
  %v1467 = vmul.u32 %v1461, %v1463
  %v1468 = vshll.u32 %v1465, 16
  %v1469 = vshrl.u32 %v1465, 16
  %v1470 = vshll.u32 %v1466, 16
  %v1471 = vshrl.u32 %v1466, 16
  %vm1472 = vc.u32 %v1464, %v1468
  %v1473 = vsel %vm1472, 1, 0
  %v1474 = vadd.s32 %v1464, %v1468
  %v1475 = vadd.s32 %v1467, %v1473
  %vm1476 = vc.u32 %v1474, %v1470
  %v1477 = vsel %vm1476, 1, 0
  %v1478 = vadd.s32 %v1474, %v1470
  %v1479 = vadd.s32 %v1475, %v1477
  %v1480 = vadd.s32 %v1479, %v1469
  %v1481 = vadd.s32 %v1480, %v1471
  %v1482 = vand.u32 %v1459, 65535
  %v1483 = vshrl.u32 %v1459, 16
  %v1484 = vand.u32 %v1454, 65535
  %v1485 = vshrl.u32 %v1454, 16
  %v1486 = vmul.u32 %v1482, %v1484
  %v1487 = vmul.u32 %v1482, %v1485
  %v1488 = vmul.u32 %v1483, %v1484
  %v1489 = vmul.u32 %v1483, %v1485
  %v1490 = vshll.u32 %v1487, 16
  %v1491 = vshrl.u32 %v1487, 16
  %v1492 = vshll.u32 %v1488, 16
  %v1493 = vshrl.u32 %v1488, 16
  %vm1494 = vc.u32 %v1486, %v1490
  %v1495 = vsel %vm1494, 1, 0
  %v1496 = vadd.s32 %v1486, %v1490
  %v1497 = vadd.s32 %v1489, %v1495
  %vm1498 = vc.u32 %v1496, %v1492
  %v1499 = vsel %vm1498, 1, 0
  %v1500 = vadd.s32 %v1496, %v1492
  %v1501 = vadd.s32 %v1497, %v1499
  %v1502 = vadd.s32 %v1501, %v1491
  %v1503 = vadd.s32 %v1502, %v1493
  %v1504 = vmul.u32 %v1459, %v1450
  %v1505 = vadd.s32 %v1481, %v1500
  %vm1506 = vc.u32 %v1481, %v1500
  %v1507 = vadd.s32 %v1503, 1
  %v1508 = vsel %vm1506, %v1507, %v1503
  %v1509 = vadd.s32 %v1504, %v1508
  %v1510 = vadd.s32 %v1509, 536870912
  %v1511 = vshrl.u32 %v1510, 30
  %v1512 = vshll.u32 %v1511, 30
  %v1513 = vsub.s32 %v1509, %v1512
  %vm1514 = vcmp.lt.s32.totalorder %v1513, 0
  %v1515 = vsub.s32 0, %v1513
  %v1516 = vsel %vm1514, %v1515, %v1513
  %v1517 = vclz %v1516
  %v1518 = vsub.s32 %v1517, 2
  %vm1519 = vcmp.gt.s32.totalorder 0, %v1518
  %v1520 = vsel %vm1519, 0, %v1518
  %v1521 = vsub.s32 32, %v1520
  %v1522 = vshll.u32 %v1513, %v1520
  %v1523 = vshrl.u32 %v1505, %v1521
  %v1524 = vor.u32 %v1522, %v1523
  %v1525 = vsub.s32 4294967266, %v1520
  %v1526 = vadd.s32 %v1525, 127
  %v1527 = vshll.u32 %v1526, 23
  %v1528 = vor.u32 4788187, %v1527
  %v1529 = vand.u32 2147483647, %v1528
  %v1531 = vcvt.s32.f32 %v1524
  %v1532 = vmul.f32 %v1531, %v1529
  %v1533 = vxor.u32 %v1532, 2147483648
  %v1534 = vsel %vm1413, %v1533, %v1532
  %v1535 = vsub.s32 4, %v1511
  %v1536 = vsel %vm1413, %v1535, %v1511
  %v1537 = vsel %vm1412, %v1253, %v1534
  %v1538 = vsel %vm1412, 0, %v1536
  %v1539 = vmul.f32 %v1537, %v1537
  %v1540 = vmul.f32 %v1539, -0.001358992
  %v1541 = vadd.f32 %v1540, 0.041655596
  %v1542 = vmul.f32 %v1539, %v1541
  %v1543 = vadd.f32 %v1542, -0.4999988
  %v1544 = vmul.f32 %v1539, %v1543
  %v1545 = vadd.f32 1.0, %v1544
  %v1546 = vmul.f32 %v1537, %v1537
  %v1547 = vmul.f32 %v1546, -0.00019511016
  %v1548 = vadd.f32 %v1547, 0.008332121
  %v1549 = vmul.f32 %v1546, %v1548
  %v1550 = vadd.f32 %v1549, -0.16666654
  %v1551 = vmul.f32 %v1546, %v1550
  %v1552 = vadd.f32 %v1551, 1.0
  %v1553 = vmul.f32 %v1552, %v1537
  %vm1554 = vweird.f32 %v1253
  %v1555 = vadd.s32 %v1538, 3
  %v1556 = vand.u32 %v1555, 3
  %vm1557 = vcmp.lt.s32.totalorder %v1556, 2
  %vm1558 = vcmp.eq.s32.totalorder %v1556, 0
  %v1559 = vxor.u32 %v1553, 2147483648
  %v1560 = vsel %vm1558, %v1545, %v1559
  %vm1561 = vcmp.eq.s32.totalorder %v1556, 2
  %v1562 = vxor.u32 %v1545, 2147483648
  %v1563 = vsel %vm1561, %v1562, %v1553
  %v1564 = vsel %vm1557, %v1560, %v1563
  %v1565 = vsel %vm1554, nan, %v1564
  %v1566 = vand.u32 2147483647, %v1254
  %vm1567 = vcmp.le.f32.partialorder %v1566, 0.7853982
  %vm1568 = vcmp.lt.s32.totalorder %v1254, 0
  %v1569 = vand.u32 %v1254, 2139095040
  %v1570 = vshrl.u32 %v1569, 23
  %v1571 = vsub.s32 %v1570, 127
  %v1572 = vand.u32 2147483647, %v1254
  %v1573 = vand.u32 %v1572, 8388607
  %v1574 = vor.u32 %v1573, 8388608
  %v1575 = vsub.s32 0, %v1574
  %v1576 = vadd.s32 %v1571, 1
  %vm1577 = vcmp.gt.s32.totalorder %v1576, 0
  %v1578 = vsel %vm1577, %v1576, 0
  %v1579 = vshrl.u32 %v1578, 5
  %v1580 = vand.u32 %v1578, 31
  %v1581 = vsub.s32 32, %v1580
  %v1582 = vshrl.u32 683565275, %v1581
  %v1583 = vshll.u32 683565275, %v1580
  %v1584 = vshrl.u32 2475754826, %v1581
  %v1585 = vor.u32 %v1583, %v1584
  %v1586 = vshll.u32 2475754826, %v1580
  %v1587 = vshrl.u32 2131351028, %v1581
  %v1588 = vor.u32 %v1586, %v1587
  %v1589 = vshll.u32 2131351028, %v1580
  %v1590 = vshrl.u32 2102212464, %v1581
  %v1591 = vor.u32 %v1589, %v1590
  %v1592 = vshll.u32 2102212464, %v1580
  %v1593 = vshrl.u32 920167782, %v1581
  %v1594 = vor.u32 %v1592, %v1593
  %v1595 = vshll.u32 920167782, %v1580
  %v1596 = vshrl.u32 1326507024, %v1581
  %v1597 = vor.u32 %v1595, %v1596
  %vm1598 = vcmp.lt.s32.totalorder %v1579, 1
  %vm1599 = vcmp.lt.s32.totalorder %v1579, 2
  %vm1600 = vcmp.lt.s32.totalorder %v1579, 3
  %vm1601 = vcmp.lt.s32.totalorder %v1579, 4
  %v1602 = vsel %vm1598, %v1582, %v1585
  %v1603 = vsel %vm1601, %v1591, 2102212464
  %v1604 = vsel %vm1600, %v1588, %v1603
  %v1605 = vsel %vm1599, %v1602, %v1604
  %v1606 = vsel %vm1598, %v1585, %v1588
  %v1607 = vsel %vm1601, %v1594, 920167782
  %v1608 = vsel %vm1600, %v1591, %v1607
  %v1609 = vsel %vm1599, %v1606, %v1608
  %v1610 = vsel %vm1598, %v1588, %v1591
  %v1611 = vsel %vm1601, %v1597, 1326507024
  %v1612 = vsel %vm1600, %v1594, %v1611
  %v1613 = vsel %vm1599, %v1610, %v1612
  %v1614 = vshll.u32 %v1574, 8
  %v1615 = vand.u32 %v1614, 65535
  %v1616 = vshrl.u32 %v1614, 16
  %v1617 = vand.u32 %v1613, 65535
  %v1618 = vshrl.u32 %v1613, 16
  %v1619 = vmul.u32 %v1615, %v1617
  %v1620 = vmul.u32 %v1615, %v1618
  %v1621 = vmul.u32 %v1616, %v1617
  %v1622 = vmul.u32 %v1616, %v1618
  %v1623 = vshll.u32 %v1620, 16
  %v1624 = vshrl.u32 %v1620, 16
  %v1625 = vshll.u32 %v1621, 16
  %v1626 = vshrl.u32 %v1621, 16
  %vm1627 = vc.u32 %v1619, %v1623
  %v1628 = vsel %vm1627, 1, 0
  %v1629 = vadd.s32 %v1619, %v1623
  %v1630 = vadd.s32 %v1622, %v1628
  %vm1631 = vc.u32 %v1629, %v1625
  %v1632 = vsel %vm1631, 1, 0
  %v1633 = vadd.s32 %v1629, %v1625
  %v1634 = vadd.s32 %v1630, %v1632
  %v1635 = vadd.s32 %v1634, %v1624
  %v1636 = vadd.s32 %v1635, %v1626
  %v1637 = vand.u32 %v1614, 65535
  %v1638 = vshrl.u32 %v1614, 16
  %v1639 = vand.u32 %v1609, 65535
  %v1640 = vshrl.u32 %v1609, 16
  %v1641 = vmul.u32 %v1637, %v1639
  %v1642 = vmul.u32 %v1637, %v1640
  %v1643 = vmul.u32 %v1638, %v1639
  %v1644 = vmul.u32 %v1638, %v1640
  %v1645 = vshll.u32 %v1642, 16
  %v1646 = vshrl.u32 %v1642, 16
  %v1647 = vshll.u32 %v1643, 16
  %v1648 = vshrl.u32 %v1643, 16
  %vm1649 = vc.u32 %v1641, %v1645
  %v1650 = vsel %vm1649, 1, 0
  %v1651 = vadd.s32 %v1641, %v1645
  %v1652 = vadd.s32 %v1644, %v1650
  %vm1653 = vc.u32 %v1651, %v1647
  %v1654 = vsel %vm1653, 1, 0
  %v1655 = vadd.s32 %v1651, %v1647
  %v1656 = vadd.s32 %v1652, %v1654
  %v1657 = vadd.s32 %v1656, %v1646
  %v1658 = vadd.s32 %v1657, %v1648
  %v1659 = vmul.u32 %v1614, %v1605
  %v1660 = vadd.s32 %v1636, %v1655
  %vm1661 = vc.u32 %v1636, %v1655
  %v1662 = vadd.s32 %v1658, 1
  %v1663 = vsel %vm1661, %v1662, %v1658
  %v1664 = vadd.s32 %v1659, %v1663
  %v1665 = vadd.s32 %v1664, 536870912
  %v1666 = vshrl.u32 %v1665, 30
  %v1667 = vshll.u32 %v1666, 30
  %v1668 = vsub.s32 %v1664, %v1667
  %vm1669 = vcmp.lt.s32.totalorder %v1668, 0
  %v1670 = vsub.s32 0, %v1668
  %v1671 = vsel %vm1669, %v1670, %v1668
  %v1672 = vclz %v1671
  %v1673 = vsub.s32 %v1672, 2
  %vm1674 = vcmp.gt.s32.totalorder 0, %v1673
  %v1675 = vsel %vm1674, 0, %v1673
  %v1676 = vsub.s32 32, %v1675
  %v1677 = vshll.u32 %v1668, %v1675
  %v1678 = vshrl.u32 %v1660, %v1676
  %v1679 = vor.u32 %v1677, %v1678
  %v1680 = vsub.s32 4294967266, %v1675
  %v1681 = vadd.s32 %v1680, 127
  %v1682 = vshll.u32 %v1681, 23
  %v1683 = vor.u32 4788187, %v1682
  %v1684 = vand.u32 2147483647, %v1683
  %v1686 = vcvt.s32.f32 %v1679
  %v1687 = vmul.f32 %v1686, %v1684
  %v1688 = vxor.u32 %v1687, 2147483648
  %v1689 = vsel %vm1568, %v1688, %v1687
  %v1690 = vsub.s32 4, %v1666
  %v1691 = vsel %vm1568, %v1690, %v1666
  %v1692 = vsel %vm1567, %v1254, %v1689
  %v1693 = vsel %vm1567, 0, %v1691
  %v1694 = vmul.f32 %v1692, %v1692
  %v1695 = vmul.f32 %v1694, -0.001358992
  %v1696 = vadd.f32 %v1695, 0.041655596
  %v1697 = vmul.f32 %v1694, %v1696
  %v1698 = vadd.f32 %v1697, -0.4999988
  %v1699 = vmul.f32 %v1694, %v1698
  %v1700 = vadd.f32 1.0, %v1699
  %v1701 = vmul.f32 %v1692, %v1692
  %v1702 = vmul.f32 %v1701, -0.00019511016
  %v1703 = vadd.f32 %v1702, 0.008332121
  %v1704 = vmul.f32 %v1701, %v1703
  %v1705 = vadd.f32 %v1704, -0.16666654
  %v1706 = vmul.f32 %v1701, %v1705
  %v1707 = vadd.f32 %v1706, 1.0
  %v1708 = vmul.f32 %v1707, %v1692
  %vm1709 = vweird.f32 %v1254
  %v1710 = vadd.s32 %v1693, 3
  %v1711 = vand.u32 %v1710, 3
  %vm1712 = vcmp.lt.s32.totalorder %v1711, 2
  %vm1713 = vcmp.eq.s32.totalorder %v1711, 0
  %v1714 = vxor.u32 %v1708, 2147483648
  %v1715 = vsel %vm1713, %v1700, %v1714
  %vm1716 = vcmp.eq.s32.totalorder %v1711, 2
  %v1717 = vxor.u32 %v1700, 2147483648
  %v1718 = vsel %vm1716, %v1717, %v1708
  %v1719 = vsel %vm1712, %v1715, %v1718
  %v1720 = vsel %vm1709, nan, %v1719
  %v1721 = vand.u32 2147483647, %v1255
  %vm1722 = vcmp.le.f32.partialorder %v1721, 0.7853982
  %vm1723 = vcmp.lt.s32.totalorder %v1255, 0
  %v1724 = vand.u32 %v1255, 2139095040
  %v1725 = vshrl.u32 %v1724, 23
  %v1726 = vsub.s32 %v1725, 127
  %v1727 = vand.u32 2147483647, %v1255
  %v1728 = vand.u32 %v1727, 8388607
  %v1729 = vor.u32 %v1728, 8388608
  %v1730 = vsub.s32 0, %v1729
  %v1731 = vadd.s32 %v1726, 1
  %vm1732 = vcmp.gt.s32.totalorder %v1731, 0
  %v1733 = vsel %vm1732, %v1731, 0
  %v1734 = vshrl.u32 %v1733, 5
  %v1735 = vand.u32 %v1733, 31
  %v1736 = vsub.s32 32, %v1735
  %v1737 = vshrl.u32 683565275, %v1736
  %v1738 = vshll.u32 683565275, %v1735
  %v1739 = vshrl.u32 2475754826, %v1736
  %v1740 = vor.u32 %v1738, %v1739
  %v1741 = vshll.u32 2475754826, %v1735
  %v1742 = vshrl.u32 2131351028, %v1736
  %v1743 = vor.u32 %v1741, %v1742
  %v1744 = vshll.u32 2131351028, %v1735
  %v1745 = vshrl.u32 2102212464, %v1736
  %v1746 = vor.u32 %v1744, %v1745
  %v1747 = vshll.u32 2102212464, %v1735
  %v1748 = vshrl.u32 920167782, %v1736
  %v1749 = vor.u32 %v1747, %v1748
  %v1750 = vshll.u32 920167782, %v1735
  %v1751 = vshrl.u32 1326507024, %v1736
  %v1752 = vor.u32 %v1750, %v1751
  %vm1753 = vcmp.lt.s32.totalorder %v1734, 1
  %vm1754 = vcmp.lt.s32.totalorder %v1734, 2
  %vm1755 = vcmp.lt.s32.totalorder %v1734, 3
  %vm1756 = vcmp.lt.s32.totalorder %v1734, 4
  %v1757 = vsel %vm1753, %v1737, %v1740
  %v1758 = vsel %vm1756, %v1746, 2102212464
  %v1759 = vsel %vm1755, %v1743, %v1758
  %v1760 = vsel %vm1754, %v1757, %v1759
  %v1761 = vsel %vm1753, %v1740, %v1743
  %v1762 = vsel %vm1756, %v1749, 920167782
  %v1763 = vsel %vm1755, %v1746, %v1762
  %v1764 = vsel %vm1754, %v1761, %v1763
  %v1765 = vsel %vm1753, %v1743, %v1746
  %v1766 = vsel %vm1756, %v1752, 1326507024
  %v1767 = vsel %vm1755, %v1749, %v1766
  %v1768 = vsel %vm1754, %v1765, %v1767
  %v1769 = vshll.u32 %v1729, 8
  %v1770 = vand.u32 %v1769, 65535
  %v1771 = vshrl.u32 %v1769, 16
  %v1772 = vand.u32 %v1768, 65535
  %v1773 = vshrl.u32 %v1768, 16
  %v1774 = vmul.u32 %v1770, %v1772
  %v1775 = vmul.u32 %v1770, %v1773
  %v1776 = vmul.u32 %v1771, %v1772
  %v1777 = vmul.u32 %v1771, %v1773
  %v1778 = vshll.u32 %v1775, 16
  %v1779 = vshrl.u32 %v1775, 16
  %v1780 = vshll.u32 %v1776, 16
  %v1781 = vshrl.u32 %v1776, 16
  %vm1782 = vc.u32 %v1774, %v1778
  %v1783 = vsel %vm1782, 1, 0
  %v1784 = vadd.s32 %v1774, %v1778
  %v1785 = vadd.s32 %v1777, %v1783
  %vm1786 = vc.u32 %v1784, %v1780
  %v1787 = vsel %vm1786, 1, 0
  %v1788 = vadd.s32 %v1784, %v1780
  %v1789 = vadd.s32 %v1785, %v1787
  %v1790 = vadd.s32 %v1789, %v1779
  %v1791 = vadd.s32 %v1790, %v1781
  %v1792 = vand.u32 %v1769, 65535
  %v1793 = vshrl.u32 %v1769, 16
  %v1794 = vand.u32 %v1764, 65535
  %v1795 = vshrl.u32 %v1764, 16
  %v1796 = vmul.u32 %v1792, %v1794
  %v1797 = vmul.u32 %v1792, %v1795
  %v1798 = vmul.u32 %v1793, %v1794
  %v1799 = vmul.u32 %v1793, %v1795
  %v1800 = vshll.u32 %v1797, 16
  %v1801 = vshrl.u32 %v1797, 16
  %v1802 = vshll.u32 %v1798, 16
  %v1803 = vshrl.u32 %v1798, 16
  %vm1804 = vc.u32 %v1796, %v1800
  %v1805 = vsel %vm1804, 1, 0
  %v1806 = vadd.s32 %v1796, %v1800
  %v1807 = vadd.s32 %v1799, %v1805
  %vm1808 = vc.u32 %v1806, %v1802
  %v1809 = vsel %vm1808, 1, 0
  %v1810 = vadd.s32 %v1806, %v1802
  %v1811 = vadd.s32 %v1807, %v1809
  %v1812 = vadd.s32 %v1811, %v1801
  %v1813 = vadd.s32 %v1812, %v1803
  %v1814 = vmul.u32 %v1769, %v1760
  %v1815 = vadd.s32 %v1791, %v1810
  %vm1816 = vc.u32 %v1791, %v1810
  %v1817 = vadd.s32 %v1813, 1
  %v1818 = vsel %vm1816, %v1817, %v1813
  %v1819 = vadd.s32 %v1814, %v1818
  %v1820 = vadd.s32 %v1819, 536870912
  %v1821 = vshrl.u32 %v1820, 30
  %v1822 = vshll.u32 %v1821, 30
  %v1823 = vsub.s32 %v1819, %v1822
  %vm1824 = vcmp.lt.s32.totalorder %v1823, 0
  %v1825 = vsub.s32 0, %v1823
  %v1826 = vsel %vm1824, %v1825, %v1823
  %v1827 = vclz %v1826
  %v1828 = vsub.s32 %v1827, 2
  %vm1829 = vcmp.gt.s32.totalorder 0, %v1828
  %v1830 = vsel %vm1829, 0, %v1828
  %v1831 = vsub.s32 32, %v1830
  %v1832 = vshll.u32 %v1823, %v1830
  %v1833 = vshrl.u32 %v1815, %v1831
  %v1834 = vor.u32 %v1832, %v1833
  %v1835 = vsub.s32 4294967266, %v1830
  %v1836 = vadd.s32 %v1835, 127
  %v1837 = vshll.u32 %v1836, 23
  %v1838 = vor.u32 4788187, %v1837
  %v1839 = vand.u32 2147483647, %v1838
  %v1841 = vcvt.s32.f32 %v1834
  %v1842 = vmul.f32 %v1841, %v1839
  %v1843 = vxor.u32 %v1842, 2147483648
  %v1844 = vsel %vm1723, %v1843, %v1842
  %v1845 = vsub.s32 4, %v1821
  %v1846 = vsel %vm1723, %v1845, %v1821
  %v1847 = vsel %vm1722, %v1255, %v1844
  %v1848 = vsel %vm1722, 0, %v1846
  %v1849 = vmul.f32 %v1847, %v1847
  %v1850 = vmul.f32 %v1849, -0.001358992
  %v1851 = vadd.f32 %v1850, 0.041655596
  %v1852 = vmul.f32 %v1849, %v1851
  %v1853 = vadd.f32 %v1852, -0.4999988
  %v1854 = vmul.f32 %v1849, %v1853
  %v1855 = vadd.f32 1.0, %v1854
  %v1856 = vmul.f32 %v1847, %v1847
  %v1857 = vmul.f32 %v1856, -0.00019511016
  %v1858 = vadd.f32 %v1857, 0.008332121
  %v1859 = vmul.f32 %v1856, %v1858
  %v1860 = vadd.f32 %v1859, -0.16666654
  %v1861 = vmul.f32 %v1856, %v1860
  %v1862 = vadd.f32 %v1861, 1.0
  %v1863 = vmul.f32 %v1862, %v1847
  %vm1864 = vweird.f32 %v1255
  %v1865 = vadd.s32 %v1848, 3
  %v1866 = vand.u32 %v1865, 3
  %vm1867 = vcmp.lt.s32.totalorder %v1866, 2
  %vm1868 = vcmp.eq.s32.totalorder %v1866, 0
  %v1869 = vxor.u32 %v1863, 2147483648
  %v1870 = vsel %vm1868, %v1855, %v1869
  %vm1871 = vcmp.eq.s32.totalorder %v1866, 2
  %v1872 = vxor.u32 %v1855, 2147483648
  %v1873 = vsel %vm1871, %v1872, %v1863
  %v1874 = vsel %vm1867, %v1870, %v1873
  %v1875 = vsel %vm1864, nan, %v1874
  %v1876 = vand.u32 2147483647, %v1252
  %vm1877 = vcmp.le.f32.partialorder %v1876, 0.7853982
  %vm1878 = vcmp.lt.s32.totalorder %v1252, 0
  %v1879 = vand.u32 %v1252, 2139095040
  %v1880 = vshrl.u32 %v1879, 23
  %v1881 = vsub.s32 %v1880, 127
  %v1882 = vand.u32 2147483647, %v1252
  %v1883 = vand.u32 %v1882, 8388607
  %v1884 = vor.u32 %v1883, 8388608
  %v1885 = vsub.s32 0, %v1884
  %v1886 = vadd.s32 %v1881, 1
  %vm1887 = vcmp.gt.s32.totalorder %v1886, 0
  %v1888 = vsel %vm1887, %v1886, 0
  %v1889 = vshrl.u32 %v1888, 5
  %v1890 = vand.u32 %v1888, 31
  %v1891 = vsub.s32 32, %v1890
  %v1892 = vshrl.u32 683565275, %v1891
  %v1893 = vshll.u32 683565275, %v1890
  %v1894 = vshrl.u32 2475754826, %v1891
  %v1895 = vor.u32 %v1893, %v1894
  %v1896 = vshll.u32 2475754826, %v1890
  %v1897 = vshrl.u32 2131351028, %v1891
  %v1898 = vor.u32 %v1896, %v1897
  %v1899 = vshll.u32 2131351028, %v1890
  %v1900 = vshrl.u32 2102212464, %v1891
  %v1901 = vor.u32 %v1899, %v1900
  %v1902 = vshll.u32 2102212464, %v1890
  %v1903 = vshrl.u32 920167782, %v1891
  %v1904 = vor.u32 %v1902, %v1903
  %v1905 = vshll.u32 920167782, %v1890
  %v1906 = vshrl.u32 1326507024, %v1891
  %v1907 = vor.u32 %v1905, %v1906
  %vm1908 = vcmp.lt.s32.totalorder %v1889, 1
  %vm1909 = vcmp.lt.s32.totalorder %v1889, 2
  %vm1910 = vcmp.lt.s32.totalorder %v1889, 3
  %vm1911 = vcmp.lt.s32.totalorder %v1889, 4
  %v1912 = vsel %vm1908, %v1892, %v1895
  %v1913 = vsel %vm1911, %v1901, 2102212464
  %v1914 = vsel %vm1910, %v1898, %v1913
  %v1915 = vsel %vm1909, %v1912, %v1914
  %v1916 = vsel %vm1908, %v1895, %v1898
  %v1917 = vsel %vm1911, %v1904, 920167782
  %v1918 = vsel %vm1910, %v1901, %v1917
  %v1919 = vsel %vm1909, %v1916, %v1918
  %v1920 = vsel %vm1908, %v1898, %v1901
  %v1921 = vsel %vm1911, %v1907, 1326507024
  %v1922 = vsel %vm1910, %v1904, %v1921
  %v1923 = vsel %vm1909, %v1920, %v1922
  %v1924 = vshll.u32 %v1884, 8
  %v1925 = vand.u32 %v1924, 65535
  %v1926 = vshrl.u32 %v1924, 16
  %v1927 = vand.u32 %v1923, 65535
  %v1928 = vshrl.u32 %v1923, 16
  %v1929 = vmul.u32 %v1925, %v1927
  %v1930 = vmul.u32 %v1925, %v1928
  %v1931 = vmul.u32 %v1926, %v1927
  %v1932 = vmul.u32 %v1926, %v1928
  %v1933 = vshll.u32 %v1930, 16
  %v1934 = vshrl.u32 %v1930, 16
  %v1935 = vshll.u32 %v1931, 16
  %v1936 = vshrl.u32 %v1931, 16
  %vm1937 = vc.u32 %v1929, %v1933
  %v1938 = vsel %vm1937, 1, 0
  %v1939 = vadd.s32 %v1929, %v1933
  %v1940 = vadd.s32 %v1932, %v1938
  %vm1941 = vc.u32 %v1939, %v1935
  %v1942 = vsel %vm1941, 1, 0
  %v1943 = vadd.s32 %v1939, %v1935
  %v1944 = vadd.s32 %v1940, %v1942
  %v1945 = vadd.s32 %v1944, %v1934
  %v1946 = vadd.s32 %v1945, %v1936
  %v1947 = vand.u32 %v1924, 65535
  %v1948 = vshrl.u32 %v1924, 16
  %v1949 = vand.u32 %v1919, 65535
  %v1950 = vshrl.u32 %v1919, 16
  %v1951 = vmul.u32 %v1947, %v1949
  %v1952 = vmul.u32 %v1947, %v1950
  %v1953 = vmul.u32 %v1948, %v1949
  %v1954 = vmul.u32 %v1948, %v1950
  %v1955 = vshll.u32 %v1952, 16
  %v1956 = vshrl.u32 %v1952, 16
  %v1957 = vshll.u32 %v1953, 16
  %v1958 = vshrl.u32 %v1953, 16
  %vm1959 = vc.u32 %v1951, %v1955
  %v1960 = vsel %vm1959, 1, 0
  %v1961 = vadd.s32 %v1951, %v1955
  %v1962 = vadd.s32 %v1954, %v1960
  %vm1963 = vc.u32 %v1961, %v1957
  %v1964 = vsel %vm1963, 1, 0
  %v1965 = vadd.s32 %v1961, %v1957
  %v1966 = vadd.s32 %v1962, %v1964
  %v1967 = vadd.s32 %v1966, %v1956
  %v1968 = vadd.s32 %v1967, %v1958
  %v1969 = vmul.u32 %v1924, %v1915
  %v1970 = vadd.s32 %v1946, %v1965
  %vm1971 = vc.u32 %v1946, %v1965
  %v1972 = vadd.s32 %v1968, 1
  %v1973 = vsel %vm1971, %v1972, %v1968
  %v1974 = vadd.s32 %v1969, %v1973
  %v1975 = vadd.s32 %v1974, 536870912
  %v1976 = vshrl.u32 %v1975, 30
  %v1977 = vshll.u32 %v1976, 30
  %v1978 = vsub.s32 %v1974, %v1977
  %vm1979 = vcmp.lt.s32.totalorder %v1978, 0
  %v1980 = vsub.s32 0, %v1978
  %v1981 = vsel %vm1979, %v1980, %v1978
  %v1982 = vclz %v1981
  %v1983 = vsub.s32 %v1982, 2
  %vm1984 = vcmp.gt.s32.totalorder 0, %v1983
  %v1985 = vsel %vm1984, 0, %v1983
  %v1986 = vsub.s32 32, %v1985
  %v1987 = vshll.u32 %v1978, %v1985
  %v1988 = vshrl.u32 %v1970, %v1986
  %v1989 = vor.u32 %v1987, %v1988
  %v1990 = vsub.s32 4294967266, %v1985
  %v1991 = vadd.s32 %v1990, 127
  %v1992 = vshll.u32 %v1991, 23
  %v1993 = vor.u32 4788187, %v1992
  %v1994 = vand.u32 2147483647, %v1993
  %v1996 = vcvt.s32.f32 %v1989
  %v1997 = vmul.f32 %v1996, %v1994
  %v1998 = vxor.u32 %v1997, 2147483648
  %v1999 = vsel %vm1878, %v1998, %v1997
  %v2000 = vsub.s32 4, %v1976
  %v2001 = vsel %vm1878, %v2000, %v1976
  %v2002 = vsel %vm1877, %v1252, %v1999
  %v2003 = vsel %vm1877, 0, %v2001
  %v2004 = vmul.f32 %v2002, %v2002
  %v2005 = vmul.f32 %v2004, -0.001358992
  %v2006 = vadd.f32 %v2005, 0.041655596
  %v2007 = vmul.f32 %v2004, %v2006
  %v2008 = vadd.f32 %v2007, -0.4999988
  %v2009 = vmul.f32 %v2004, %v2008
  %v2010 = vadd.f32 1.0, %v2009
  %v2011 = vmul.f32 %v2002, %v2002
  %v2012 = vmul.f32 %v2011, -0.00019511016
  %v2013 = vadd.f32 %v2012, 0.008332121
  %v2014 = vmul.f32 %v2011, %v2013
  %v2015 = vadd.f32 %v2014, -0.16666654
  %v2016 = vmul.f32 %v2011, %v2015
  %v2017 = vadd.f32 %v2016, 1.0
  %v2018 = vmul.f32 %v2017, %v2002
  %vm2019 = vweird.f32 %v1252
  %v2020 = vand.u32 %v2003, 3
  %vm2021 = vcmp.lt.s32.totalorder %v2020, 2
  %vm2022 = vcmp.eq.s32.totalorder %v2020, 0
  %v2023 = vxor.u32 %v2018, 2147483648
  %v2024 = vsel %vm2022, %v2010, %v2023
  %vm2025 = vcmp.eq.s32.totalorder %v2020, 2
  %v2026 = vxor.u32 %v2010, 2147483648
  %v2027 = vsel %vm2025, %v2026, %v2018
  %v2028 = vsel %vm2021, %v2024, %v2027
  %v2029 = vsel %vm2019, nan, %v2028
  %v2030 = vand.u32 2147483647, %v1253
  %vm2031 = vcmp.le.f32.partialorder %v2030, 0.7853982
  %vm2032 = vcmp.lt.s32.totalorder %v1253, 0
  %v2033 = vand.u32 %v1253, 2139095040
  %v2034 = vshrl.u32 %v2033, 23
  %v2035 = vsub.s32 %v2034, 127
  %v2036 = vand.u32 2147483647, %v1253
  %v2037 = vand.u32 %v2036, 8388607
  %v2038 = vor.u32 %v2037, 8388608
  %v2039 = vsub.s32 0, %v2038
  %v2040 = vadd.s32 %v2035, 1
  %vm2041 = vcmp.gt.s32.totalorder %v2040, 0
  %v2042 = vsel %vm2041, %v2040, 0
  %v2043 = vshrl.u32 %v2042, 5
  %v2044 = vand.u32 %v2042, 31
  %v2045 = vsub.s32 32, %v2044
  %v2046 = vshrl.u32 683565275, %v2045
  %v2047 = vshll.u32 683565275, %v2044
  %v2048 = vshrl.u32 2475754826, %v2045
  %v2049 = vor.u32 %v2047, %v2048
  %v2050 = vshll.u32 2475754826, %v2044
  %v2051 = vshrl.u32 2131351028, %v2045
  %v2052 = vor.u32 %v2050, %v2051
  %v2053 = vshll.u32 2131351028, %v2044
  %v2054 = vshrl.u32 2102212464, %v2045
  %v2055 = vor.u32 %v2053, %v2054
  %v2056 = vshll.u32 2102212464, %v2044
  %v2057 = vshrl.u32 920167782, %v2045
  %v2058 = vor.u32 %v2056, %v2057
  %v2059 = vshll.u32 920167782, %v2044
  %v2060 = vshrl.u32 1326507024, %v2045
  %v2061 = vor.u32 %v2059, %v2060
  %vm2062 = vcmp.lt.s32.totalorder %v2043, 1
  %vm2063 = vcmp.lt.s32.totalorder %v2043, 2
  %vm2064 = vcmp.lt.s32.totalorder %v2043, 3
  %vm2065 = vcmp.lt.s32.totalorder %v2043, 4
  %v2066 = vsel %vm2062, %v2046, %v2049
  %v2067 = vsel %vm2065, %v2055, 2102212464
  %v2068 = vsel %vm2064, %v2052, %v2067
  %v2069 = vsel %vm2063, %v2066, %v2068
  %v2070 = vsel %vm2062, %v2049, %v2052
  %v2071 = vsel %vm2065, %v2058, 920167782
  %v2072 = vsel %vm2064, %v2055, %v2071
  %v2073 = vsel %vm2063, %v2070, %v2072
  %v2074 = vsel %vm2062, %v2052, %v2055
  %v2075 = vsel %vm2065, %v2061, 1326507024
  %v2076 = vsel %vm2064, %v2058, %v2075
  %v2077 = vsel %vm2063, %v2074, %v2076
  %v2078 = vshll.u32 %v2038, 8
  %v2079 = vand.u32 %v2078, 65535
  %v2080 = vshrl.u32 %v2078, 16
  %v2081 = vand.u32 %v2077, 65535
  %v2082 = vshrl.u32 %v2077, 16
  %v2083 = vmul.u32 %v2079, %v2081
  %v2084 = vmul.u32 %v2079, %v2082
  %v2085 = vmul.u32 %v2080, %v2081
  %v2086 = vmul.u32 %v2080, %v2082
  %v2087 = vshll.u32 %v2084, 16
  %v2088 = vshrl.u32 %v2084, 16
  %v2089 = vshll.u32 %v2085, 16
  %v2090 = vshrl.u32 %v2085, 16
  %vm2091 = vc.u32 %v2083, %v2087
  %v2092 = vsel %vm2091, 1, 0
  %v2093 = vadd.s32 %v2083, %v2087
  %v2094 = vadd.s32 %v2086, %v2092
  %vm2095 = vc.u32 %v2093, %v2089
  %v2096 = vsel %vm2095, 1, 0
  %v2097 = vadd.s32 %v2093, %v2089
  %v2098 = vadd.s32 %v2094, %v2096
  %v2099 = vadd.s32 %v2098, %v2088
  %v2100 = vadd.s32 %v2099, %v2090
  %v2101 = vand.u32 %v2078, 65535
  %v2102 = vshrl.u32 %v2078, 16
  %v2103 = vand.u32 %v2073, 65535
  %v2104 = vshrl.u32 %v2073, 16
  %v2105 = vmul.u32 %v2101, %v2103
  %v2106 = vmul.u32 %v2101, %v2104
  %v2107 = vmul.u32 %v2102, %v2103
  %v2108 = vmul.u32 %v2102, %v2104
  %v2109 = vshll.u32 %v2106, 16
  %v2110 = vshrl.u32 %v2106, 16
  %v2111 = vshll.u32 %v2107, 16
  %v2112 = vshrl.u32 %v2107, 16
  %vm2113 = vc.u32 %v2105, %v2109
  %v2114 = vsel %vm2113, 1, 0
  %v2115 = vadd.s32 %v2105, %v2109
  %v2116 = vadd.s32 %v2108, %v2114
  %vm2117 = vc.u32 %v2115, %v2111
  %v2118 = vsel %vm2117, 1, 0
  %v2119 = vadd.s32 %v2115, %v2111
  %v2120 = vadd.s32 %v2116, %v2118
  %v2121 = vadd.s32 %v2120, %v2110
  %v2122 = vadd.s32 %v2121, %v2112
  %v2123 = vmul.u32 %v2078, %v2069
  %v2124 = vadd.s32 %v2100, %v2119
  %vm2125 = vc.u32 %v2100, %v2119
  %v2126 = vadd.s32 %v2122, 1
  %v2127 = vsel %vm2125, %v2126, %v2122
  %v2128 = vadd.s32 %v2123, %v2127
  %v2129 = vadd.s32 %v2128, 536870912
  %v2130 = vshrl.u32 %v2129, 30
  %v2131 = vshll.u32 %v2130, 30
  %v2132 = vsub.s32 %v2128, %v2131
  %vm2133 = vcmp.lt.s32.totalorder %v2132, 0
  %v2134 = vsub.s32 0, %v2132
  %v2135 = vsel %vm2133, %v2134, %v2132
  %v2136 = vclz %v2135
  %v2137 = vsub.s32 %v2136, 2
  %vm2138 = vcmp.gt.s32.totalorder 0, %v2137
  %v2139 = vsel %vm2138, 0, %v2137
  %v2140 = vsub.s32 32, %v2139
  %v2141 = vshll.u32 %v2132, %v2139
  %v2142 = vshrl.u32 %v2124, %v2140
  %v2143 = vor.u32 %v2141, %v2142
  %v2144 = vsub.s32 4294967266, %v2139
  %v2145 = vadd.s32 %v2144, 127
  %v2146 = vshll.u32 %v2145, 23
  %v2147 = vor.u32 4788187, %v2146
  %v2148 = vand.u32 2147483647, %v2147
  %v2150 = vcvt.s32.f32 %v2143
  %v2151 = vmul.f32 %v2150, %v2148
  %v2152 = vxor.u32 %v2151, 2147483648
  %v2153 = vsel %vm2032, %v2152, %v2151
  %v2154 = vsub.s32 4, %v2130
  %v2155 = vsel %vm2032, %v2154, %v2130
  %v2156 = vsel %vm2031, %v1253, %v2153
  %v2157 = vsel %vm2031, 0, %v2155
  %v2158 = vmul.f32 %v2156, %v2156
  %v2159 = vmul.f32 %v2158, -0.001358992
  %v2160 = vadd.f32 %v2159, 0.041655596
  %v2161 = vmul.f32 %v2158, %v2160
  %v2162 = vadd.f32 %v2161, -0.4999988
  %v2163 = vmul.f32 %v2158, %v2162
  %v2164 = vadd.f32 1.0, %v2163
  %v2165 = vmul.f32 %v2156, %v2156
  %v2166 = vmul.f32 %v2165, -0.00019511016
  %v2167 = vadd.f32 %v2166, 0.008332121
  %v2168 = vmul.f32 %v2165, %v2167
  %v2169 = vadd.f32 %v2168, -0.16666654
  %v2170 = vmul.f32 %v2165, %v2169
  %v2171 = vadd.f32 %v2170, 1.0
  %v2172 = vmul.f32 %v2171, %v2156
  %vm2173 = vweird.f32 %v1253
  %v2174 = vand.u32 %v2157, 3
  %vm2175 = vcmp.lt.s32.totalorder %v2174, 2
  %vm2176 = vcmp.eq.s32.totalorder %v2174, 0
  %v2177 = vxor.u32 %v2172, 2147483648
  %v2178 = vsel %vm2176, %v2164, %v2177
  %vm2179 = vcmp.eq.s32.totalorder %v2174, 2
  %v2180 = vxor.u32 %v2164, 2147483648
  %v2181 = vsel %vm2179, %v2180, %v2172
  %v2182 = vsel %vm2175, %v2178, %v2181
  %v2183 = vsel %vm2173, nan, %v2182
  %v2184 = vand.u32 2147483647, %v1254
  %vm2185 = vcmp.le.f32.partialorder %v2184, 0.7853982
  %vm2186 = vcmp.lt.s32.totalorder %v1254, 0
  %v2187 = vand.u32 %v1254, 2139095040
  %v2188 = vshrl.u32 %v2187, 23
  %v2189 = vsub.s32 %v2188, 127
  %v2190 = vand.u32 2147483647, %v1254
  %v2191 = vand.u32 %v2190, 8388607
  %v2192 = vor.u32 %v2191, 8388608
  %v2193 = vsub.s32 0, %v2192
  %v2194 = vadd.s32 %v2189, 1
  %vm2195 = vcmp.gt.s32.totalorder %v2194, 0
  %v2196 = vsel %vm2195, %v2194, 0
  %v2197 = vshrl.u32 %v2196, 5
  %v2198 = vand.u32 %v2196, 31
  %v2199 = vsub.s32 32, %v2198
  %v2200 = vshrl.u32 683565275, %v2199
  %v2201 = vshll.u32 683565275, %v2198
  %v2202 = vshrl.u32 2475754826, %v2199
  %v2203 = vor.u32 %v2201, %v2202
  %v2204 = vshll.u32 2475754826, %v2198
  %v2205 = vshrl.u32 2131351028, %v2199
  %v2206 = vor.u32 %v2204, %v2205
  %v2207 = vshll.u32 2131351028, %v2198
  %v2208 = vshrl.u32 2102212464, %v2199
  %v2209 = vor.u32 %v2207, %v2208
  %v2210 = vshll.u32 2102212464, %v2198
  %v2211 = vshrl.u32 920167782, %v2199
  %v2212 = vor.u32 %v2210, %v2211
  %v2213 = vshll.u32 920167782, %v2198
  %v2214 = vshrl.u32 1326507024, %v2199
  %v2215 = vor.u32 %v2213, %v2214
  %vm2216 = vcmp.lt.s32.totalorder %v2197, 1
  %vm2217 = vcmp.lt.s32.totalorder %v2197, 2
  %vm2218 = vcmp.lt.s32.totalorder %v2197, 3
  %vm2219 = vcmp.lt.s32.totalorder %v2197, 4
  %v2220 = vsel %vm2216, %v2200, %v2203
  %v2221 = vsel %vm2219, %v2209, 2102212464
  %v2222 = vsel %vm2218, %v2206, %v2221
  %v2223 = vsel %vm2217, %v2220, %v2222
  %v2224 = vsel %vm2216, %v2203, %v2206
  %v2225 = vsel %vm2219, %v2212, 920167782
  %v2226 = vsel %vm2218, %v2209, %v2225
  %v2227 = vsel %vm2217, %v2224, %v2226
  %v2228 = vsel %vm2216, %v2206, %v2209
  %v2229 = vsel %vm2219, %v2215, 1326507024
  %v2230 = vsel %vm2218, %v2212, %v2229
  %v2231 = vsel %vm2217, %v2228, %v2230
  %v2232 = vshll.u32 %v2192, 8
  %v2233 = vand.u32 %v2232, 65535
  %v2234 = vshrl.u32 %v2232, 16
  %v2235 = vand.u32 %v2231, 65535
  %v2236 = vshrl.u32 %v2231, 16
  %v2237 = vmul.u32 %v2233, %v2235
  %v2238 = vmul.u32 %v2233, %v2236
  %v2239 = vmul.u32 %v2234, %v2235
  %v2240 = vmul.u32 %v2234, %v2236
  %v2241 = vshll.u32 %v2238, 16
  %v2242 = vshrl.u32 %v2238, 16
  %v2243 = vshll.u32 %v2239, 16
  %v2244 = vshrl.u32 %v2239, 16
  %vm2245 = vc.u32 %v2237, %v2241
  %v2246 = vsel %vm2245, 1, 0
  %v2247 = vadd.s32 %v2237, %v2241
  %v2248 = vadd.s32 %v2240, %v2246
  %vm2249 = vc.u32 %v2247, %v2243
  %v2250 = vsel %vm2249, 1, 0
  %v2251 = vadd.s32 %v2247, %v2243
  %v2252 = vadd.s32 %v2248, %v2250
  %v2253 = vadd.s32 %v2252, %v2242
  %v2254 = vadd.s32 %v2253, %v2244
  %v2255 = vand.u32 %v2232, 65535
  %v2256 = vshrl.u32 %v2232, 16
  %v2257 = vand.u32 %v2227, 65535
  %v2258 = vshrl.u32 %v2227, 16
  %v2259 = vmul.u32 %v2255, %v2257
  %v2260 = vmul.u32 %v2255, %v2258
  %v2261 = vmul.u32 %v2256, %v2257
  %v2262 = vmul.u32 %v2256, %v2258
  %v2263 = vshll.u32 %v2260, 16
  %v2264 = vshrl.u32 %v2260, 16
  %v2265 = vshll.u32 %v2261, 16
  %v2266 = vshrl.u32 %v2261, 16
  %vm2267 = vc.u32 %v2259, %v2263
  %v2268 = vsel %vm2267, 1, 0
  %v2269 = vadd.s32 %v2259, %v2263
  %v2270 = vadd.s32 %v2262, %v2268
  %vm2271 = vc.u32 %v2269, %v2265
  %v2272 = vsel %vm2271, 1, 0
  %v2273 = vadd.s32 %v2269, %v2265
  %v2274 = vadd.s32 %v2270, %v2272
  %v2275 = vadd.s32 %v2274, %v2264
  %v2276 = vadd.s32 %v2275, %v2266
  %v2277 = vmul.u32 %v2232, %v2223
  %v2278 = vadd.s32 %v2254, %v2273
  %vm2279 = vc.u32 %v2254, %v2273
  %v2280 = vadd.s32 %v2276, 1
  %v2281 = vsel %vm2279, %v2280, %v2276
  %v2282 = vadd.s32 %v2277, %v2281
  %v2283 = vadd.s32 %v2282, 536870912
  %v2284 = vshrl.u32 %v2283, 30
  %v2285 = vshll.u32 %v2284, 30
  %v2286 = vsub.s32 %v2282, %v2285
  %vm2287 = vcmp.lt.s32.totalorder %v2286, 0
  %v2288 = vsub.s32 0, %v2286
  %v2289 = vsel %vm2287, %v2288, %v2286
  %v2290 = vclz %v2289
  %v2291 = vsub.s32 %v2290, 2
  %vm2292 = vcmp.gt.s32.totalorder 0, %v2291
  %v2293 = vsel %vm2292, 0, %v2291
  %v2294 = vsub.s32 32, %v2293
  %v2295 = vshll.u32 %v2286, %v2293
  %v2296 = vshrl.u32 %v2278, %v2294
  %v2297 = vor.u32 %v2295, %v2296
  %v2298 = vsub.s32 4294967266, %v2293
  %v2299 = vadd.s32 %v2298, 127
  %v2300 = vshll.u32 %v2299, 23
  %v2301 = vor.u32 4788187, %v2300
  %v2302 = vand.u32 2147483647, %v2301
  %v2304 = vcvt.s32.f32 %v2297
  %v2305 = vmul.f32 %v2304, %v2302
  %v2306 = vxor.u32 %v2305, 2147483648
  %v2307 = vsel %vm2186, %v2306, %v2305
  %v2308 = vsub.s32 4, %v2284
  %v2309 = vsel %vm2186, %v2308, %v2284
  %v2310 = vsel %vm2185, %v1254, %v2307
  %v2311 = vsel %vm2185, 0, %v2309
  %v2312 = vmul.f32 %v2310, %v2310
  %v2313 = vmul.f32 %v2312, -0.001358992
  %v2314 = vadd.f32 %v2313, 0.041655596
  %v2315 = vmul.f32 %v2312, %v2314
  %v2316 = vadd.f32 %v2315, -0.4999988
  %v2317 = vmul.f32 %v2312, %v2316
  %v2318 = vadd.f32 1.0, %v2317
  %v2319 = vmul.f32 %v2310, %v2310
  %v2320 = vmul.f32 %v2319, -0.00019511016
  %v2321 = vadd.f32 %v2320, 0.008332121
  %v2322 = vmul.f32 %v2319, %v2321
  %v2323 = vadd.f32 %v2322, -0.16666654
  %v2324 = vmul.f32 %v2319, %v2323
  %v2325 = vadd.f32 %v2324, 1.0
  %v2326 = vmul.f32 %v2325, %v2310
  %vm2327 = vweird.f32 %v1254
  %v2328 = vand.u32 %v2311, 3
  %vm2329 = vcmp.lt.s32.totalorder %v2328, 2
  %vm2330 = vcmp.eq.s32.totalorder %v2328, 0
  %v2331 = vxor.u32 %v2326, 2147483648
  %v2332 = vsel %vm2330, %v2318, %v2331
  %vm2333 = vcmp.eq.s32.totalorder %v2328, 2
  %v2334 = vxor.u32 %v2318, 2147483648
  %v2335 = vsel %vm2333, %v2334, %v2326
  %v2336 = vsel %vm2329, %v2332, %v2335
  %v2337 = vsel %vm2327, nan, %v2336
  %v2338 = vand.u32 2147483647, %v1255
  %vm2339 = vcmp.le.f32.partialorder %v2338, 0.7853982
  %vm2340 = vcmp.lt.s32.totalorder %v1255, 0
  %v2341 = vand.u32 %v1255, 2139095040
  %v2342 = vshrl.u32 %v2341, 23
  %v2343 = vsub.s32 %v2342, 127
  %v2344 = vand.u32 2147483647, %v1255
  %v2345 = vand.u32 %v2344, 8388607
  %v2346 = vor.u32 %v2345, 8388608
  %v2347 = vsub.s32 0, %v2346
  %v2348 = vadd.s32 %v2343, 1
  %vm2349 = vcmp.gt.s32.totalorder %v2348, 0
  %v2350 = vsel %vm2349, %v2348, 0
  %v2351 = vshrl.u32 %v2350, 5
  %v2352 = vand.u32 %v2350, 31
  %v2353 = vsub.s32 32, %v2352
  %v2354 = vshrl.u32 683565275, %v2353
  %v2355 = vshll.u32 683565275, %v2352
  %v2356 = vshrl.u32 2475754826, %v2353
  %v2357 = vor.u32 %v2355, %v2356
  %v2358 = vshll.u32 2475754826, %v2352
  %v2359 = vshrl.u32 2131351028, %v2353
  %v2360 = vor.u32 %v2358, %v2359
  %v2361 = vshll.u32 2131351028, %v2352
  %v2362 = vshrl.u32 2102212464, %v2353
  %v2363 = vor.u32 %v2361, %v2362
  %v2364 = vshll.u32 2102212464, %v2352
  %v2365 = vshrl.u32 920167782, %v2353
  %v2366 = vor.u32 %v2364, %v2365
  %v2367 = vshll.u32 920167782, %v2352
  %v2368 = vshrl.u32 1326507024, %v2353
  %v2369 = vor.u32 %v2367, %v2368
  %vm2370 = vcmp.lt.s32.totalorder %v2351, 1
  %vm2371 = vcmp.lt.s32.totalorder %v2351, 2
  %vm2372 = vcmp.lt.s32.totalorder %v2351, 3
  %vm2373 = vcmp.lt.s32.totalorder %v2351, 4
  %v2374 = vsel %vm2370, %v2354, %v2357
  %v2375 = vsel %vm2373, %v2363, 2102212464
  %v2376 = vsel %vm2372, %v2360, %v2375
  %v2377 = vsel %vm2371, %v2374, %v2376
  %v2378 = vsel %vm2370, %v2357, %v2360
  %v2379 = vsel %vm2373, %v2366, 920167782
  %v2380 = vsel %vm2372, %v2363, %v2379
  %v2381 = vsel %vm2371, %v2378, %v2380
  %v2382 = vsel %vm2370, %v2360, %v2363
  %v2383 = vsel %vm2373, %v2369, 1326507024
  %v2384 = vsel %vm2372, %v2366, %v2383
  %v2385 = vsel %vm2371, %v2382, %v2384
  %v2386 = vshll.u32 %v2346, 8
  %v2387 = vand.u32 %v2386, 65535
  %v2388 = vshrl.u32 %v2386, 16
  %v2389 = vand.u32 %v2385, 65535
  %v2390 = vshrl.u32 %v2385, 16
  %v2391 = vmul.u32 %v2387, %v2389
  %v2392 = vmul.u32 %v2387, %v2390
  %v2393 = vmul.u32 %v2388, %v2389
  %v2394 = vmul.u32 %v2388, %v2390
  %v2395 = vshll.u32 %v2392, 16
  %v2396 = vshrl.u32 %v2392, 16
  %v2397 = vshll.u32 %v2393, 16
  %v2398 = vshrl.u32 %v2393, 16
  %vm2399 = vc.u32 %v2391, %v2395
  %v2400 = vsel %vm2399, 1, 0
  %v2401 = vadd.s32 %v2391, %v2395
  %v2402 = vadd.s32 %v2394, %v2400
  %vm2403 = vc.u32 %v2401, %v2397
  %v2404 = vsel %vm2403, 1, 0
  %v2405 = vadd.s32 %v2401, %v2397
  %v2406 = vadd.s32 %v2402, %v2404
  %v2407 = vadd.s32 %v2406, %v2396
  %v2408 = vadd.s32 %v2407, %v2398
  %v2409 = vand.u32 %v2386, 65535
  %v2410 = vshrl.u32 %v2386, 16
  %v2411 = vand.u32 %v2381, 65535
  %v2412 = vshrl.u32 %v2381, 16
  %v2413 = vmul.u32 %v2409, %v2411
  %v2414 = vmul.u32 %v2409, %v2412
  %v2415 = vmul.u32 %v2410, %v2411
  %v2416 = vmul.u32 %v2410, %v2412
  %v2417 = vshll.u32 %v2414, 16
  %v2418 = vshrl.u32 %v2414, 16
  %v2419 = vshll.u32 %v2415, 16
  %v2420 = vshrl.u32 %v2415, 16
  %vm2421 = vc.u32 %v2413, %v2417
  %v2422 = vsel %vm2421, 1, 0
  %v2423 = vadd.s32 %v2413, %v2417
  %v2424 = vadd.s32 %v2416, %v2422
  %vm2425 = vc.u32 %v2423, %v2419
  %v2426 = vsel %vm2425, 1, 0
  %v2427 = vadd.s32 %v2423, %v2419
  %v2428 = vadd.s32 %v2424, %v2426
  %v2429 = vadd.s32 %v2428, %v2418
  %v2430 = vadd.s32 %v2429, %v2420
  %v2431 = vmul.u32 %v2386, %v2377
  %v2432 = vadd.s32 %v2408, %v2427
  %vm2433 = vc.u32 %v2408, %v2427
  %v2434 = vadd.s32 %v2430, 1
  %v2435 = vsel %vm2433, %v2434, %v2430
  %v2436 = vadd.s32 %v2431, %v2435
  %v2437 = vadd.s32 %v2436, 536870912
  %v2438 = vshrl.u32 %v2437, 30
  %v2439 = vshll.u32 %v2438, 30
  %v2440 = vsub.s32 %v2436, %v2439
  %vm2441 = vcmp.lt.s32.totalorder %v2440, 0
  %v2442 = vsub.s32 0, %v2440
  %v2443 = vsel %vm2441, %v2442, %v2440
  %v2444 = vclz %v2443
  %v2445 = vsub.s32 %v2444, 2
  %vm2446 = vcmp.gt.s32.totalorder 0, %v2445
  %v2447 = vsel %vm2446, 0, %v2445
  %v2448 = vsub.s32 32, %v2447
  %v2449 = vshll.u32 %v2440, %v2447
  %v2450 = vshrl.u32 %v2432, %v2448
  %v2451 = vor.u32 %v2449, %v2450
  %v2452 = vsub.s32 4294967266, %v2447
  %v2453 = vadd.s32 %v2452, 127
  %v2454 = vshll.u32 %v2453, 23
  %v2455 = vor.u32 4788187, %v2454
  %v2456 = vand.u32 2147483647, %v2455
  %v2458 = vcvt.s32.f32 %v2451
  %v2459 = vmul.f32 %v2458, %v2456
  %v2460 = vxor.u32 %v2459, 2147483648
  %v2461 = vsel %vm2340, %v2460, %v2459
  %v2462 = vsub.s32 4, %v2438
  %v2463 = vsel %vm2340, %v2462, %v2438
  %v2464 = vsel %vm2339, %v1255, %v2461
  %v2465 = vsel %vm2339, 0, %v2463
  %v2466 = vmul.f32 %v2464, %v2464
  %v2467 = vmul.f32 %v2466, -0.001358992
  %v2468 = vadd.f32 %v2467, 0.041655596
  %v2469 = vmul.f32 %v2466, %v2468
  %v2470 = vadd.f32 %v2469, -0.4999988
  %v2471 = vmul.f32 %v2466, %v2470
  %v2472 = vadd.f32 1.0, %v2471
  %v2473 = vmul.f32 %v2464, %v2464
  %v2474 = vmul.f32 %v2473, -0.00019511016
  %v2475 = vadd.f32 %v2474, 0.008332121
  %v2476 = vmul.f32 %v2473, %v2475
  %v2477 = vadd.f32 %v2476, -0.16666654
  %v2478 = vmul.f32 %v2473, %v2477
  %v2479 = vadd.f32 %v2478, 1.0
  %v2480 = vmul.f32 %v2479, %v2464
  %vm2481 = vweird.f32 %v1255
  %v2482 = vand.u32 %v2465, 3
  %vm2483 = vcmp.lt.s32.totalorder %v2482, 2
  %vm2484 = vcmp.eq.s32.totalorder %v2482, 0
  %v2485 = vxor.u32 %v2480, 2147483648
  %v2486 = vsel %vm2484, %v2472, %v2485
  %vm2487 = vcmp.eq.s32.totalorder %v2482, 2
  %v2488 = vxor.u32 %v2472, 2147483648
  %v2489 = vsel %vm2487, %v2488, %v2480
  %v2490 = vsel %vm2483, %v2486, %v2489
  %v2491 = vsel %vm2481, nan, %v2490
  %v2492 = vmul.f32 %v8, 12.566371
  %v2493 = vmul.f32 %v9, 12.566371
  %v2494 = vmul.f32 %v10, 12.566371
  %v2495 = vmul.f32 %v11, 12.566371
  %v2496 = vand.u32 2147483647, %v2492
  %vm2497 = vcmp.le.f32.partialorder %v2496, 0.7853982
  %vm2498 = vcmp.lt.s32.totalorder %v2492, 0
  %v2499 = vand.u32 %v2492, 2139095040
  %v2500 = vshrl.u32 %v2499, 23
  %v2501 = vsub.s32 %v2500, 127
  %v2502 = vand.u32 2147483647, %v2492
  %v2503 = vand.u32 %v2502, 8388607
  %v2504 = vor.u32 %v2503, 8388608
  %v2505 = vsub.s32 0, %v2504
  %v2506 = vadd.s32 %v2501, 1
  %vm2507 = vcmp.gt.s32.totalorder %v2506, 0
  %v2508 = vsel %vm2507, %v2506, 0
  %v2509 = vshrl.u32 %v2508, 5
  %v2510 = vand.u32 %v2508, 31
  %v2511 = vsub.s32 32, %v2510
  %v2512 = vshrl.u32 683565275, %v2511
  %v2513 = vshll.u32 683565275, %v2510
  %v2514 = vshrl.u32 2475754826, %v2511
  %v2515 = vor.u32 %v2513, %v2514
  %v2516 = vshll.u32 2475754826, %v2510
  %v2517 = vshrl.u32 2131351028, %v2511
  %v2518 = vor.u32 %v2516, %v2517
  %v2519 = vshll.u32 2131351028, %v2510
  %v2520 = vshrl.u32 2102212464, %v2511
  %v2521 = vor.u32 %v2519, %v2520
  %v2522 = vshll.u32 2102212464, %v2510
  %v2523 = vshrl.u32 920167782, %v2511
  %v2524 = vor.u32 %v2522, %v2523
  %v2525 = vshll.u32 920167782, %v2510
  %v2526 = vshrl.u32 1326507024, %v2511
  %v2527 = vor.u32 %v2525, %v2526
  %vm2528 = vcmp.lt.s32.totalorder %v2509, 1
  %vm2529 = vcmp.lt.s32.totalorder %v2509, 2
  %vm2530 = vcmp.lt.s32.totalorder %v2509, 3
  %vm2531 = vcmp.lt.s32.totalorder %v2509, 4
  %v2532 = vsel %vm2528, %v2512, %v2515
  %v2533 = vsel %vm2531, %v2521, 2102212464
  %v2534 = vsel %vm2530, %v2518, %v2533
  %v2535 = vsel %vm2529, %v2532, %v2534
  %v2536 = vsel %vm2528, %v2515, %v2518
  %v2537 = vsel %vm2531, %v2524, 920167782
  %v2538 = vsel %vm2530, %v2521, %v2537
  %v2539 = vsel %vm2529, %v2536, %v2538
  %v2540 = vsel %vm2528, %v2518, %v2521
  %v2541 = vsel %vm2531, %v2527, 1326507024
  %v2542 = vsel %vm2530, %v2524, %v2541
  %v2543 = vsel %vm2529, %v2540, %v2542
  %v2544 = vshll.u32 %v2504, 8
  %v2545 = vand.u32 %v2544, 65535
  %v2546 = vshrl.u32 %v2544, 16
  %v2547 = vand.u32 %v2543, 65535
  %v2548 = vshrl.u32 %v2543, 16
  %v2549 = vmul.u32 %v2545, %v2547
  %v2550 = vmul.u32 %v2545, %v2548
  %v2551 = vmul.u32 %v2546, %v2547
  %v2552 = vmul.u32 %v2546, %v2548
  %v2553 = vshll.u32 %v2550, 16
  %v2554 = vshrl.u32 %v2550, 16
  %v2555 = vshll.u32 %v2551, 16
  %v2556 = vshrl.u32 %v2551, 16
  %vm2557 = vc.u32 %v2549, %v2553
  %v2558 = vsel %vm2557, 1, 0
  %v2559 = vadd.s32 %v2549, %v2553
  %v2560 = vadd.s32 %v2552, %v2558
  %vm2561 = vc.u32 %v2559, %v2555
  %v2562 = vsel %vm2561, 1, 0
  %v2563 = vadd.s32 %v2559, %v2555
  %v2564 = vadd.s32 %v2560, %v2562
  %v2565 = vadd.s32 %v2564, %v2554
  %v2566 = vadd.s32 %v2565, %v2556
  %v2567 = vand.u32 %v2544, 65535
  %v2568 = vshrl.u32 %v2544, 16
  %v2569 = vand.u32 %v2539, 65535
  %v2570 = vshrl.u32 %v2539, 16
  %v2571 = vmul.u32 %v2567, %v2569
  %v2572 = vmul.u32 %v2567, %v2570
  %v2573 = vmul.u32 %v2568, %v2569
  %v2574 = vmul.u32 %v2568, %v2570
  %v2575 = vshll.u32 %v2572, 16
  %v2576 = vshrl.u32 %v2572, 16
  %v2577 = vshll.u32 %v2573, 16
  %v2578 = vshrl.u32 %v2573, 16
  %vm2579 = vc.u32 %v2571, %v2575
  %v2580 = vsel %vm2579, 1, 0
  %v2581 = vadd.s32 %v2571, %v2575
  %v2582 = vadd.s32 %v2574, %v2580
  %vm2583 = vc.u32 %v2581, %v2577
  %v2584 = vsel %vm2583, 1, 0
  %v2585 = vadd.s32 %v2581, %v2577
  %v2586 = vadd.s32 %v2582, %v2584
  %v2587 = vadd.s32 %v2586, %v2576
  %v2588 = vadd.s32 %v2587, %v2578
  %v2589 = vmul.u32 %v2544, %v2535
  %v2590 = vadd.s32 %v2566, %v2585
  %vm2591 = vc.u32 %v2566, %v2585
  %v2592 = vadd.s32 %v2588, 1
  %v2593 = vsel %vm2591, %v2592, %v2588
  %v2594 = vadd.s32 %v2589, %v2593
  %v2595 = vadd.s32 %v2594, 536870912
  %v2596 = vshrl.u32 %v2595, 30
  %v2597 = vshll.u32 %v2596, 30
  %v2598 = vsub.s32 %v2594, %v2597
  %vm2599 = vcmp.lt.s32.totalorder %v2598, 0
  %v2600 = vsub.s32 0, %v2598
  %v2601 = vsel %vm2599, %v2600, %v2598
  %v2602 = vclz %v2601
  %v2603 = vsub.s32 %v2602, 2
  %vm2604 = vcmp.gt.s32.totalorder 0, %v2603
  %v2605 = vsel %vm2604, 0, %v2603
  %v2606 = vsub.s32 32, %v2605
  %v2607 = vshll.u32 %v2598, %v2605
  %v2608 = vshrl.u32 %v2590, %v2606
  %v2609 = vor.u32 %v2607, %v2608
  %v2610 = vsub.s32 4294967266, %v2605
  %v2611 = vadd.s32 %v2610, 127
  %v2612 = vshll.u32 %v2611, 23
  %v2613 = vor.u32 4788187, %v2612
  %v2614 = vand.u32 2147483647, %v2613
  %v2616 = vcvt.s32.f32 %v2609
  %v2617 = vmul.f32 %v2616, %v2614
  %v2618 = vxor.u32 %v2617, 2147483648
  %v2619 = vsel %vm2498, %v2618, %v2617
  %v2620 = vsub.s32 4, %v2596
  %v2621 = vsel %vm2498, %v2620, %v2596
  %v2622 = vsel %vm2497, %v2492, %v2619
  %v2623 = vsel %vm2497, 0, %v2621
  %v2624 = vmul.f32 %v2622, %v2622
  %v2625 = vmul.f32 %v2624, -0.001358992
  %v2626 = vadd.f32 %v2625, 0.041655596
  %v2627 = vmul.f32 %v2624, %v2626
  %v2628 = vadd.f32 %v2627, -0.4999988
  %v2629 = vmul.f32 %v2624, %v2628
  %v2630 = vadd.f32 1.0, %v2629
  %v2631 = vmul.f32 %v2622, %v2622
  %v2632 = vmul.f32 %v2631, -0.00019511016
  %v2633 = vadd.f32 %v2632, 0.008332121
  %v2634 = vmul.f32 %v2631, %v2633
  %v2635 = vadd.f32 %v2634, -0.16666654
  %v2636 = vmul.f32 %v2631, %v2635
  %v2637 = vadd.f32 %v2636, 1.0
  %v2638 = vmul.f32 %v2637, %v2622
  %vm2639 = vweird.f32 %v2492
  %v2640 = vadd.s32 %v2623, 3
  %v2641 = vand.u32 %v2640, 3
  %vm2642 = vcmp.lt.s32.totalorder %v2641, 2
  %vm2643 = vcmp.eq.s32.totalorder %v2641, 0
  %v2644 = vxor.u32 %v2638, 2147483648
  %v2645 = vsel %vm2643, %v2630, %v2644
  %vm2646 = vcmp.eq.s32.totalorder %v2641, 2
  %v2647 = vxor.u32 %v2630, 2147483648
  %v2648 = vsel %vm2646, %v2647, %v2638
  %v2649 = vsel %vm2642, %v2645, %v2648
  %v2650 = vsel %vm2639, nan, %v2649
  %v2651 = vand.u32 2147483647, %v2493
  %vm2652 = vcmp.le.f32.partialorder %v2651, 0.7853982
  %vm2653 = vcmp.lt.s32.totalorder %v2493, 0
  %v2654 = vand.u32 %v2493, 2139095040
  %v2655 = vshrl.u32 %v2654, 23
  %v2656 = vsub.s32 %v2655, 127
  %v2657 = vand.u32 2147483647, %v2493
  %v2658 = vand.u32 %v2657, 8388607
  %v2659 = vor.u32 %v2658, 8388608
  %v2660 = vsub.s32 0, %v2659
  %v2661 = vadd.s32 %v2656, 1
  %vm2662 = vcmp.gt.s32.totalorder %v2661, 0
  %v2663 = vsel %vm2662, %v2661, 0
  %v2664 = vshrl.u32 %v2663, 5
  %v2665 = vand.u32 %v2663, 31
  %v2666 = vsub.s32 32, %v2665
  %v2667 = vshrl.u32 683565275, %v2666
  %v2668 = vshll.u32 683565275, %v2665
  %v2669 = vshrl.u32 2475754826, %v2666
  %v2670 = vor.u32 %v2668, %v2669
  %v2671 = vshll.u32 2475754826, %v2665
  %v2672 = vshrl.u32 2131351028, %v2666
  %v2673 = vor.u32 %v2671, %v2672
  %v2674 = vshll.u32 2131351028, %v2665
  %v2675 = vshrl.u32 2102212464, %v2666
  %v2676 = vor.u32 %v2674, %v2675
  %v2677 = vshll.u32 2102212464, %v2665
  %v2678 = vshrl.u32 920167782, %v2666
  %v2679 = vor.u32 %v2677, %v2678
  %v2680 = vshll.u32 920167782, %v2665
  %v2681 = vshrl.u32 1326507024, %v2666
  %v2682 = vor.u32 %v2680, %v2681
  %vm2683 = vcmp.lt.s32.totalorder %v2664, 1
  %vm2684 = vcmp.lt.s32.totalorder %v2664, 2
  %vm2685 = vcmp.lt.s32.totalorder %v2664, 3
  %vm2686 = vcmp.lt.s32.totalorder %v2664, 4
  %v2687 = vsel %vm2683, %v2667, %v2670
  %v2688 = vsel %vm2686, %v2676, 2102212464
  %v2689 = vsel %vm2685, %v2673, %v2688
  %v2690 = vsel %vm2684, %v2687, %v2689
  %v2691 = vsel %vm2683, %v2670, %v2673
  %v2692 = vsel %vm2686, %v2679, 920167782
  %v2693 = vsel %vm2685, %v2676, %v2692
  %v2694 = vsel %vm2684, %v2691, %v2693
  %v2695 = vsel %vm2683, %v2673, %v2676
  %v2696 = vsel %vm2686, %v2682, 1326507024
  %v2697 = vsel %vm2685, %v2679, %v2696
  %v2698 = vsel %vm2684, %v2695, %v2697
  %v2699 = vshll.u32 %v2659, 8
  %v2700 = vand.u32 %v2699, 65535
  %v2701 = vshrl.u32 %v2699, 16
  %v2702 = vand.u32 %v2698, 65535
  %v2703 = vshrl.u32 %v2698, 16
  %v2704 = vmul.u32 %v2700, %v2702
  %v2705 = vmul.u32 %v2700, %v2703
  %v2706 = vmul.u32 %v2701, %v2702
  %v2707 = vmul.u32 %v2701, %v2703
  %v2708 = vshll.u32 %v2705, 16
  %v2709 = vshrl.u32 %v2705, 16
  %v2710 = vshll.u32 %v2706, 16
  %v2711 = vshrl.u32 %v2706, 16
  %vm2712 = vc.u32 %v2704, %v2708
  %v2713 = vsel %vm2712, 1, 0
  %v2714 = vadd.s32 %v2704, %v2708
  %v2715 = vadd.s32 %v2707, %v2713
  %vm2716 = vc.u32 %v2714, %v2710
  %v2717 = vsel %vm2716, 1, 0
  %v2718 = vadd.s32 %v2714, %v2710
  %v2719 = vadd.s32 %v2715, %v2717
  %v2720 = vadd.s32 %v2719, %v2709
  %v2721 = vadd.s32 %v2720, %v2711
  %v2722 = vand.u32 %v2699, 65535
  %v2723 = vshrl.u32 %v2699, 16
  %v2724 = vand.u32 %v2694, 65535
  %v2725 = vshrl.u32 %v2694, 16
  %v2726 = vmul.u32 %v2722, %v2724
  %v2727 = vmul.u32 %v2722, %v2725
  %v2728 = vmul.u32 %v2723, %v2724
  %v2729 = vmul.u32 %v2723, %v2725
  %v2730 = vshll.u32 %v2727, 16
  %v2731 = vshrl.u32 %v2727, 16
  %v2732 = vshll.u32 %v2728, 16
  %v2733 = vshrl.u32 %v2728, 16
  %vm2734 = vc.u32 %v2726, %v2730
  %v2735 = vsel %vm2734, 1, 0
  %v2736 = vadd.s32 %v2726, %v2730
  %v2737 = vadd.s32 %v2729, %v2735
  %vm2738 = vc.u32 %v2736, %v2732
  %v2739 = vsel %vm2738, 1, 0
  %v2740 = vadd.s32 %v2736, %v2732
  %v2741 = vadd.s32 %v2737, %v2739
  %v2742 = vadd.s32 %v2741, %v2731
  %v2743 = vadd.s32 %v2742, %v2733
  %v2744 = vmul.u32 %v2699, %v2690
  %v2745 = vadd.s32 %v2721, %v2740
  %vm2746 = vc.u32 %v2721, %v2740
  %v2747 = vadd.s32 %v2743, 1
  %v2748 = vsel %vm2746, %v2747, %v2743
  %v2749 = vadd.s32 %v2744, %v2748
  %v2750 = vadd.s32 %v2749, 536870912
  %v2751 = vshrl.u32 %v2750, 30
  %v2752 = vshll.u32 %v2751, 30
  %v2753 = vsub.s32 %v2749, %v2752
  %vm2754 = vcmp.lt.s32.totalorder %v2753, 0
  %v2755 = vsub.s32 0, %v2753
  %v2756 = vsel %vm2754, %v2755, %v2753
  %v2757 = vclz %v2756
  %v2758 = vsub.s32 %v2757, 2
  %vm2759 = vcmp.gt.s32.totalorder 0, %v2758
  %v2760 = vsel %vm2759, 0, %v2758
  %v2761 = vsub.s32 32, %v2760
  %v2762 = vshll.u32 %v2753, %v2760
  %v2763 = vshrl.u32 %v2745, %v2761
  %v2764 = vor.u32 %v2762, %v2763
  %v2765 = vsub.s32 4294967266, %v2760
  %v2766 = vadd.s32 %v2765, 127
  %v2767 = vshll.u32 %v2766, 23
  %v2768 = vor.u32 4788187, %v2767
  %v2769 = vand.u32 2147483647, %v2768
  %v2771 = vcvt.s32.f32 %v2764
  %v2772 = vmul.f32 %v2771, %v2769
  %v2773 = vxor.u32 %v2772, 2147483648
  %v2774 = vsel %vm2653, %v2773, %v2772
  %v2775 = vsub.s32 4, %v2751
  %v2776 = vsel %vm2653, %v2775, %v2751
  %v2777 = vsel %vm2652, %v2493, %v2774
  %v2778 = vsel %vm2652, 0, %v2776
  %v2779 = vmul.f32 %v2777, %v2777
  %v2780 = vmul.f32 %v2779, -0.001358992
  %v2781 = vadd.f32 %v2780, 0.041655596
  %v2782 = vmul.f32 %v2779, %v2781
  %v2783 = vadd.f32 %v2782, -0.4999988
  %v2784 = vmul.f32 %v2779, %v2783
  %v2785 = vadd.f32 1.0, %v2784
  %v2786 = vmul.f32 %v2777, %v2777
  %v2787 = vmul.f32 %v2786, -0.00019511016
  %v2788 = vadd.f32 %v2787, 0.008332121
  %v2789 = vmul.f32 %v2786, %v2788
  %v2790 = vadd.f32 %v2789, -0.16666654
  %v2791 = vmul.f32 %v2786, %v2790
  %v2792 = vadd.f32 %v2791, 1.0
  %v2793 = vmul.f32 %v2792, %v2777
  %vm2794 = vweird.f32 %v2493
  %v2795 = vadd.s32 %v2778, 3
  %v2796 = vand.u32 %v2795, 3
  %vm2797 = vcmp.lt.s32.totalorder %v2796, 2
  %vm2798 = vcmp.eq.s32.totalorder %v2796, 0
  %v2799 = vxor.u32 %v2793, 2147483648
  %v2800 = vsel %vm2798, %v2785, %v2799
  %vm2801 = vcmp.eq.s32.totalorder %v2796, 2
  %v2802 = vxor.u32 %v2785, 2147483648
  %v2803 = vsel %vm2801, %v2802, %v2793
  %v2804 = vsel %vm2797, %v2800, %v2803
  %v2805 = vsel %vm2794, nan, %v2804
  %v2806 = vand.u32 2147483647, %v2494
  %vm2807 = vcmp.le.f32.partialorder %v2806, 0.7853982
  %vm2808 = vcmp.lt.s32.totalorder %v2494, 0
  %v2809 = vand.u32 %v2494, 2139095040
  %v2810 = vshrl.u32 %v2809, 23
  %v2811 = vsub.s32 %v2810, 127
  %v2812 = vand.u32 2147483647, %v2494
  %v2813 = vand.u32 %v2812, 8388607
  %v2814 = vor.u32 %v2813, 8388608
  %v2815 = vsub.s32 0, %v2814
  %v2816 = vadd.s32 %v2811, 1
  %vm2817 = vcmp.gt.s32.totalorder %v2816, 0
  %v2818 = vsel %vm2817, %v2816, 0
  %v2819 = vshrl.u32 %v2818, 5
  %v2820 = vand.u32 %v2818, 31
  %v2821 = vsub.s32 32, %v2820
  %v2822 = vshrl.u32 683565275, %v2821
  %v2823 = vshll.u32 683565275, %v2820
  %v2824 = vshrl.u32 2475754826, %v2821
  %v2825 = vor.u32 %v2823, %v2824
  %v2826 = vshll.u32 2475754826, %v2820
  %v2827 = vshrl.u32 2131351028, %v2821
  %v2828 = vor.u32 %v2826, %v2827
  %v2829 = vshll.u32 2131351028, %v2820
  %v2830 = vshrl.u32 2102212464, %v2821
  %v2831 = vor.u32 %v2829, %v2830
  %v2832 = vshll.u32 2102212464, %v2820
  %v2833 = vshrl.u32 920167782, %v2821
  %v2834 = vor.u32 %v2832, %v2833
  %v2835 = vshll.u32 920167782, %v2820
  %v2836 = vshrl.u32 1326507024, %v2821
  %v2837 = vor.u32 %v2835, %v2836
  %vm2838 = vcmp.lt.s32.totalorder %v2819, 1
  %vm2839 = vcmp.lt.s32.totalorder %v2819, 2
  %vm2840 = vcmp.lt.s32.totalorder %v2819, 3
  %vm2841 = vcmp.lt.s32.totalorder %v2819, 4
  %v2842 = vsel %vm2838, %v2822, %v2825
  %v2843 = vsel %vm2841, %v2831, 2102212464
  %v2844 = vsel %vm2840, %v2828, %v2843
  %v2845 = vsel %vm2839, %v2842, %v2844
  %v2846 = vsel %vm2838, %v2825, %v2828
  %v2847 = vsel %vm2841, %v2834, 920167782
  %v2848 = vsel %vm2840, %v2831, %v2847
  %v2849 = vsel %vm2839, %v2846, %v2848
  %v2850 = vsel %vm2838, %v2828, %v2831
  %v2851 = vsel %vm2841, %v2837, 1326507024
  %v2852 = vsel %vm2840, %v2834, %v2851
  %v2853 = vsel %vm2839, %v2850, %v2852
  %v2854 = vshll.u32 %v2814, 8
  %v2855 = vand.u32 %v2854, 65535
  %v2856 = vshrl.u32 %v2854, 16
  %v2857 = vand.u32 %v2853, 65535
  %v2858 = vshrl.u32 %v2853, 16
  %v2859 = vmul.u32 %v2855, %v2857
  %v2860 = vmul.u32 %v2855, %v2858
  %v2861 = vmul.u32 %v2856, %v2857
  %v2862 = vmul.u32 %v2856, %v2858
  %v2863 = vshll.u32 %v2860, 16
  %v2864 = vshrl.u32 %v2860, 16
  %v2865 = vshll.u32 %v2861, 16
  %v2866 = vshrl.u32 %v2861, 16
  %vm2867 = vc.u32 %v2859, %v2863
  %v2868 = vsel %vm2867, 1, 0
  %v2869 = vadd.s32 %v2859, %v2863
  %v2870 = vadd.s32 %v2862, %v2868
  %vm2871 = vc.u32 %v2869, %v2865
  %v2872 = vsel %vm2871, 1, 0
  %v2873 = vadd.s32 %v2869, %v2865
  %v2874 = vadd.s32 %v2870, %v2872
  %v2875 = vadd.s32 %v2874, %v2864
  %v2876 = vadd.s32 %v2875, %v2866
  %v2877 = vand.u32 %v2854, 65535
  %v2878 = vshrl.u32 %v2854, 16
  %v2879 = vand.u32 %v2849, 65535
  %v2880 = vshrl.u32 %v2849, 16
  %v2881 = vmul.u32 %v2877, %v2879
  %v2882 = vmul.u32 %v2877, %v2880
  %v2883 = vmul.u32 %v2878, %v2879
  %v2884 = vmul.u32 %v2878, %v2880
  %v2885 = vshll.u32 %v2882, 16
  %v2886 = vshrl.u32 %v2882, 16
  %v2887 = vshll.u32 %v2883, 16
  %v2888 = vshrl.u32 %v2883, 16
  %vm2889 = vc.u32 %v2881, %v2885
  %v2890 = vsel %vm2889, 1, 0
  %v2891 = vadd.s32 %v2881, %v2885
  %v2892 = vadd.s32 %v2884, %v2890
  %vm2893 = vc.u32 %v2891, %v2887
  %v2894 = vsel %vm2893, 1, 0
  %v2895 = vadd.s32 %v2891, %v2887
  %v2896 = vadd.s32 %v2892, %v2894
  %v2897 = vadd.s32 %v2896, %v2886
  %v2898 = vadd.s32 %v2897, %v2888
  %v2899 = vmul.u32 %v2854, %v2845
  %v2900 = vadd.s32 %v2876, %v2895
  %vm2901 = vc.u32 %v2876, %v2895
  %v2902 = vadd.s32 %v2898, 1
  %v2903 = vsel %vm2901, %v2902, %v2898
  %v2904 = vadd.s32 %v2899, %v2903
  %v2905 = vadd.s32 %v2904, 536870912
  %v2906 = vshrl.u32 %v2905, 30
  %v2907 = vshll.u32 %v2906, 30
  %v2908 = vsub.s32 %v2904, %v2907
  %vm2909 = vcmp.lt.s32.totalorder %v2908, 0
  %v2910 = vsub.s32 0, %v2908
  %v2911 = vsel %vm2909, %v2910, %v2908
  %v2912 = vclz %v2911
  %v2913 = vsub.s32 %v2912, 2
  %vm2914 = vcmp.gt.s32.totalorder 0, %v2913
  %v2915 = vsel %vm2914, 0, %v2913
  %v2916 = vsub.s32 32, %v2915
  %v2917 = vshll.u32 %v2908, %v2915
  %v2918 = vshrl.u32 %v2900, %v2916
  %v2919 = vor.u32 %v2917, %v2918
  %v2920 = vsub.s32 4294967266, %v2915
  %v2921 = vadd.s32 %v2920, 127
  %v2922 = vshll.u32 %v2921, 23
  %v2923 = vor.u32 4788187, %v2922
  %v2924 = vand.u32 2147483647, %v2923
  %v2926 = vcvt.s32.f32 %v2919
  %v2927 = vmul.f32 %v2926, %v2924
  %v2928 = vxor.u32 %v2927, 2147483648
  %v2929 = vsel %vm2808, %v2928, %v2927
  %v2930 = vsub.s32 4, %v2906
  %v2931 = vsel %vm2808, %v2930, %v2906
  %v2932 = vsel %vm2807, %v2494, %v2929
  %v2933 = vsel %vm2807, 0, %v2931
  %v2934 = vmul.f32 %v2932, %v2932
  %v2935 = vmul.f32 %v2934, -0.001358992
  %v2936 = vadd.f32 %v2935, 0.041655596
  %v2937 = vmul.f32 %v2934, %v2936
  %v2938 = vadd.f32 %v2937, -0.4999988
  %v2939 = vmul.f32 %v2934, %v2938
  %v2940 = vadd.f32 1.0, %v2939
  %v2941 = vmul.f32 %v2932, %v2932
  %v2942 = vmul.f32 %v2941, -0.00019511016
  %v2943 = vadd.f32 %v2942, 0.008332121
  %v2944 = vmul.f32 %v2941, %v2943
  %v2945 = vadd.f32 %v2944, -0.16666654
  %v2946 = vmul.f32 %v2941, %v2945
  %v2947 = vadd.f32 %v2946, 1.0
  %v2948 = vmul.f32 %v2947, %v2932
  %vm2949 = vweird.f32 %v2494
  %v2950 = vadd.s32 %v2933, 3
  %v2951 = vand.u32 %v2950, 3
  %vm2952 = vcmp.lt.s32.totalorder %v2951, 2
  %vm2953 = vcmp.eq.s32.totalorder %v2951, 0
  %v2954 = vxor.u32 %v2948, 2147483648
  %v2955 = vsel %vm2953, %v2940, %v2954
  %vm2956 = vcmp.eq.s32.totalorder %v2951, 2
  %v2957 = vxor.u32 %v2940, 2147483648
  %v2958 = vsel %vm2956, %v2957, %v2948
  %v2959 = vsel %vm2952, %v2955, %v2958
  %v2960 = vsel %vm2949, nan, %v2959
  %v2961 = vand.u32 2147483647, %v2495
  %vm2962 = vcmp.le.f32.partialorder %v2961, 0.7853982
  %vm2963 = vcmp.lt.s32.totalorder %v2495, 0
  %v2964 = vand.u32 %v2495, 2139095040
  %v2965 = vshrl.u32 %v2964, 23
  %v2966 = vsub.s32 %v2965, 127
  %v2967 = vand.u32 2147483647, %v2495
  %v2968 = vand.u32 %v2967, 8388607
  %v2969 = vor.u32 %v2968, 8388608
  %v2970 = vsub.s32 0, %v2969
  %v2971 = vadd.s32 %v2966, 1
  %vm2972 = vcmp.gt.s32.totalorder %v2971, 0
  %v2973 = vsel %vm2972, %v2971, 0
  %v2974 = vshrl.u32 %v2973, 5
  %v2975 = vand.u32 %v2973, 31
  %v2976 = vsub.s32 32, %v2975
  %v2977 = vshrl.u32 683565275, %v2976
  %v2978 = vshll.u32 683565275, %v2975
  %v2979 = vshrl.u32 2475754826, %v2976
  %v2980 = vor.u32 %v2978, %v2979
  %v2981 = vshll.u32 2475754826, %v2975
  %v2982 = vshrl.u32 2131351028, %v2976
  %v2983 = vor.u32 %v2981, %v2982
  %v2984 = vshll.u32 2131351028, %v2975
  %v2985 = vshrl.u32 2102212464, %v2976
  %v2986 = vor.u32 %v2984, %v2985
  %v2987 = vshll.u32 2102212464, %v2975
  %v2988 = vshrl.u32 920167782, %v2976
  %v2989 = vor.u32 %v2987, %v2988
  %v2990 = vshll.u32 920167782, %v2975
  %v2991 = vshrl.u32 1326507024, %v2976
  %v2992 = vor.u32 %v2990, %v2991
  %vm2993 = vcmp.lt.s32.totalorder %v2974, 1
  %vm2994 = vcmp.lt.s32.totalorder %v2974, 2
  %vm2995 = vcmp.lt.s32.totalorder %v2974, 3
  %vm2996 = vcmp.lt.s32.totalorder %v2974, 4
  %v2997 = vsel %vm2993, %v2977, %v2980
  %v2998 = vsel %vm2996, %v2986, 2102212464
  %v2999 = vsel %vm2995, %v2983, %v2998
  %v3000 = vsel %vm2994, %v2997, %v2999
  %v3001 = vsel %vm2993, %v2980, %v2983
  %v3002 = vsel %vm2996, %v2989, 920167782
  %v3003 = vsel %vm2995, %v2986, %v3002
  %v3004 = vsel %vm2994, %v3001, %v3003
  %v3005 = vsel %vm2993, %v2983, %v2986
  %v3006 = vsel %vm2996, %v2992, 1326507024
  %v3007 = vsel %vm2995, %v2989, %v3006
  %v3008 = vsel %vm2994, %v3005, %v3007
  %v3009 = vshll.u32 %v2969, 8
  %v3010 = vand.u32 %v3009, 65535
  %v3011 = vshrl.u32 %v3009, 16
  %v3012 = vand.u32 %v3008, 65535
  %v3013 = vshrl.u32 %v3008, 16
  %v3014 = vmul.u32 %v3010, %v3012
  %v3015 = vmul.u32 %v3010, %v3013
  %v3016 = vmul.u32 %v3011, %v3012
  %v3017 = vmul.u32 %v3011, %v3013
  %v3018 = vshll.u32 %v3015, 16
  %v3019 = vshrl.u32 %v3015, 16
  %v3020 = vshll.u32 %v3016, 16
  %v3021 = vshrl.u32 %v3016, 16
  %vm3022 = vc.u32 %v3014, %v3018
  %v3023 = vsel %vm3022, 1, 0
  %v3024 = vadd.s32 %v3014, %v3018
  %v3025 = vadd.s32 %v3017, %v3023
  %vm3026 = vc.u32 %v3024, %v3020
  %v3027 = vsel %vm3026, 1, 0
  %v3028 = vadd.s32 %v3024, %v3020
  %v3029 = vadd.s32 %v3025, %v3027
  %v3030 = vadd.s32 %v3029, %v3019
  %v3031 = vadd.s32 %v3030, %v3021
  %v3032 = vand.u32 %v3009, 65535
  %v3033 = vshrl.u32 %v3009, 16
  %v3034 = vand.u32 %v3004, 65535
  %v3035 = vshrl.u32 %v3004, 16
  %v3036 = vmul.u32 %v3032, %v3034
  %v3037 = vmul.u32 %v3032, %v3035
  %v3038 = vmul.u32 %v3033, %v3034
  %v3039 = vmul.u32 %v3033, %v3035
  %v3040 = vshll.u32 %v3037, 16
  %v3041 = vshrl.u32 %v3037, 16
  %v3042 = vshll.u32 %v3038, 16
  %v3043 = vshrl.u32 %v3038, 16
  %vm3044 = vc.u32 %v3036, %v3040
  %v3045 = vsel %vm3044, 1, 0
  %v3046 = vadd.s32 %v3036, %v3040
  %v3047 = vadd.s32 %v3039, %v3045
  %vm3048 = vc.u32 %v3046, %v3042
  %v3049 = vsel %vm3048, 1, 0
  %v3050 = vadd.s32 %v3046, %v3042
  %v3051 = vadd.s32 %v3047, %v3049
  %v3052 = vadd.s32 %v3051, %v3041
  %v3053 = vadd.s32 %v3052, %v3043
  %v3054 = vmul.u32 %v3009, %v3000
  %v3055 = vadd.s32 %v3031, %v3050
  %vm3056 = vc.u32 %v3031, %v3050
  %v3057 = vadd.s32 %v3053, 1
  %v3058 = vsel %vm3056, %v3057, %v3053
  %v3059 = vadd.s32 %v3054, %v3058
  %v3060 = vadd.s32 %v3059, 536870912
  %v3061 = vshrl.u32 %v3060, 30
  %v3062 = vshll.u32 %v3061, 30
  %v3063 = vsub.s32 %v3059, %v3062
  %vm3064 = vcmp.lt.s32.totalorder %v3063, 0
  %v3065 = vsub.s32 0, %v3063
  %v3066 = vsel %vm3064, %v3065, %v3063
  %v3067 = vclz %v3066
  %v3068 = vsub.s32 %v3067, 2
  %vm3069 = vcmp.gt.s32.totalorder 0, %v3068
  %v3070 = vsel %vm3069, 0, %v3068
  %v3071 = vsub.s32 32, %v3070
  %v3072 = vshll.u32 %v3063, %v3070
  %v3073 = vshrl.u32 %v3055, %v3071
  %v3074 = vor.u32 %v3072, %v3073
  %v3075 = vsub.s32 4294967266, %v3070
  %v3076 = vadd.s32 %v3075, 127
  %v3077 = vshll.u32 %v3076, 23
  %v3078 = vor.u32 4788187, %v3077
  %v3079 = vand.u32 2147483647, %v3078
  %v3081 = vcvt.s32.f32 %v3074
  %v3082 = vmul.f32 %v3081, %v3079
  %v3083 = vxor.u32 %v3082, 2147483648
  %v3084 = vsel %vm2963, %v3083, %v3082
  %v3085 = vsub.s32 4, %v3061
  %v3086 = vsel %vm2963, %v3085, %v3061
  %v3087 = vsel %vm2962, %v2495, %v3084
  %v3088 = vsel %vm2962, 0, %v3086
  %v3089 = vmul.f32 %v3087, %v3087
  %v3090 = vmul.f32 %v3089, -0.001358992
  %v3091 = vadd.f32 %v3090, 0.041655596
  %v3092 = vmul.f32 %v3089, %v3091
  %v3093 = vadd.f32 %v3092, -0.4999988
  %v3094 = vmul.f32 %v3089, %v3093
  %v3095 = vadd.f32 1.0, %v3094
  %v3096 = vmul.f32 %v3087, %v3087
  %v3097 = vmul.f32 %v3096, -0.00019511016
  %v3098 = vadd.f32 %v3097, 0.008332121
  %v3099 = vmul.f32 %v3096, %v3098
  %v3100 = vadd.f32 %v3099, -0.16666654
  %v3101 = vmul.f32 %v3096, %v3100
  %v3102 = vadd.f32 %v3101, 1.0
  %v3103 = vmul.f32 %v3102, %v3087
  %vm3104 = vweird.f32 %v2495
  %v3105 = vadd.s32 %v3088, 3
  %v3106 = vand.u32 %v3105, 3
  %vm3107 = vcmp.lt.s32.totalorder %v3106, 2
  %vm3108 = vcmp.eq.s32.totalorder %v3106, 0
  %v3109 = vxor.u32 %v3103, 2147483648
  %v3110 = vsel %vm3108, %v3095, %v3109
  %vm3111 = vcmp.eq.s32.totalorder %v3106, 2
  %v3112 = vxor.u32 %v3095, 2147483648
  %v3113 = vsel %vm3111, %v3112, %v3103
  %v3114 = vsel %vm3107, %v3110, %v3113
  %v3115 = vsel %vm3104, nan, %v3114
  %v3116 = vand.u32 2147483647, %v2492
  %vm3117 = vcmp.le.f32.partialorder %v3116, 0.7853982
  %vm3118 = vcmp.lt.s32.totalorder %v2492, 0
  %v3119 = vand.u32 %v2492, 2139095040
  %v3120 = vshrl.u32 %v3119, 23
  %v3121 = vsub.s32 %v3120, 127
  %v3122 = vand.u32 2147483647, %v2492
  %v3123 = vand.u32 %v3122, 8388607
  %v3124 = vor.u32 %v3123, 8388608
  %v3125 = vsub.s32 0, %v3124
  %v3126 = vadd.s32 %v3121, 1
  %vm3127 = vcmp.gt.s32.totalorder %v3126, 0
  %v3128 = vsel %vm3127, %v3126, 0
  %v3129 = vshrl.u32 %v3128, 5
  %v3130 = vand.u32 %v3128, 31
  %v3131 = vsub.s32 32, %v3130
  %v3132 = vshrl.u32 683565275, %v3131
  %v3133 = vshll.u32 683565275, %v3130
  %v3134 = vshrl.u32 2475754826, %v3131
  %v3135 = vor.u32 %v3133, %v3134
  %v3136 = vshll.u32 2475754826, %v3130
  %v3137 = vshrl.u32 2131351028, %v3131
  %v3138 = vor.u32 %v3136, %v3137
  %v3139 = vshll.u32 2131351028, %v3130
  %v3140 = vshrl.u32 2102212464, %v3131
  %v3141 = vor.u32 %v3139, %v3140
  %v3142 = vshll.u32 2102212464, %v3130
  %v3143 = vshrl.u32 920167782, %v3131
  %v3144 = vor.u32 %v3142, %v3143
  %v3145 = vshll.u32 920167782, %v3130
  %v3146 = vshrl.u32 1326507024, %v3131
  %v3147 = vor.u32 %v3145, %v3146
  %vm3148 = vcmp.lt.s32.totalorder %v3129, 1
  %vm3149 = vcmp.lt.s32.totalorder %v3129, 2
  %vm3150 = vcmp.lt.s32.totalorder %v3129, 3
  %vm3151 = vcmp.lt.s32.totalorder %v3129, 4
  %v3152 = vsel %vm3148, %v3132, %v3135
  %v3153 = vsel %vm3151, %v3141, 2102212464
  %v3154 = vsel %vm3150, %v3138, %v3153
  %v3155 = vsel %vm3149, %v3152, %v3154
  %v3156 = vsel %vm3148, %v3135, %v3138
  %v3157 = vsel %vm3151, %v3144, 920167782
  %v3158 = vsel %vm3150, %v3141, %v3157
  %v3159 = vsel %vm3149, %v3156, %v3158
  %v3160 = vsel %vm3148, %v3138, %v3141
  %v3161 = vsel %vm3151, %v3147, 1326507024
  %v3162 = vsel %vm3150, %v3144, %v3161
  %v3163 = vsel %vm3149, %v3160, %v3162
  %v3164 = vshll.u32 %v3124, 8
  %v3165 = vand.u32 %v3164, 65535
  %v3166 = vshrl.u32 %v3164, 16
  %v3167 = vand.u32 %v3163, 65535
  %v3168 = vshrl.u32 %v3163, 16
  %v3169 = vmul.u32 %v3165, %v3167
  %v3170 = vmul.u32 %v3165, %v3168
  %v3171 = vmul.u32 %v3166, %v3167
  %v3172 = vmul.u32 %v3166, %v3168
  %v3173 = vshll.u32 %v3170, 16
  %v3174 = vshrl.u32 %v3170, 16
  %v3175 = vshll.u32 %v3171, 16
  %v3176 = vshrl.u32 %v3171, 16
  %vm3177 = vc.u32 %v3169, %v3173
  %v3178 = vsel %vm3177, 1, 0
  %v3179 = vadd.s32 %v3169, %v3173
  %v3180 = vadd.s32 %v3172, %v3178
  %vm3181 = vc.u32 %v3179, %v3175
  %v3182 = vsel %vm3181, 1, 0
  %v3183 = vadd.s32 %v3179, %v3175
  %v3184 = vadd.s32 %v3180, %v3182
  %v3185 = vadd.s32 %v3184, %v3174
  %v3186 = vadd.s32 %v3185, %v3176
  %v3187 = vand.u32 %v3164, 65535
  %v3188 = vshrl.u32 %v3164, 16
  %v3189 = vand.u32 %v3159, 65535
  %v3190 = vshrl.u32 %v3159, 16
  %v3191 = vmul.u32 %v3187, %v3189
  %v3192 = vmul.u32 %v3187, %v3190
  %v3193 = vmul.u32 %v3188, %v3189
  %v3194 = vmul.u32 %v3188, %v3190
  %v3195 = vshll.u32 %v3192, 16
  %v3196 = vshrl.u32 %v3192, 16
  %v3197 = vshll.u32 %v3193, 16
  %v3198 = vshrl.u32 %v3193, 16
  %vm3199 = vc.u32 %v3191, %v3195
  %v3200 = vsel %vm3199, 1, 0
  %v3201 = vadd.s32 %v3191, %v3195
  %v3202 = vadd.s32 %v3194, %v3200
  %vm3203 = vc.u32 %v3201, %v3197
  %v3204 = vsel %vm3203, 1, 0
  %v3205 = vadd.s32 %v3201, %v3197
  %v3206 = vadd.s32 %v3202, %v3204
  %v3207 = vadd.s32 %v3206, %v3196
  %v3208 = vadd.s32 %v3207, %v3198
  %v3209 = vmul.u32 %v3164, %v3155
  %v3210 = vadd.s32 %v3186, %v3205
  %vm3211 = vc.u32 %v3186, %v3205
  %v3212 = vadd.s32 %v3208, 1
  %v3213 = vsel %vm3211, %v3212, %v3208
  %v3214 = vadd.s32 %v3209, %v3213
  %v3215 = vadd.s32 %v3214, 536870912
  %v3216 = vshrl.u32 %v3215, 30
  %v3217 = vshll.u32 %v3216, 30
  %v3218 = vsub.s32 %v3214, %v3217
  %vm3219 = vcmp.lt.s32.totalorder %v3218, 0
  %v3220 = vsub.s32 0, %v3218
  %v3221 = vsel %vm3219, %v3220, %v3218
  %v3222 = vclz %v3221
  %v3223 = vsub.s32 %v3222, 2
  %vm3224 = vcmp.gt.s32.totalorder 0, %v3223
  %v3225 = vsel %vm3224, 0, %v3223
  %v3226 = vsub.s32 32, %v3225
  %v3227 = vshll.u32 %v3218, %v3225
  %v3228 = vshrl.u32 %v3210, %v3226
  %v3229 = vor.u32 %v3227, %v3228
  %v3230 = vsub.s32 4294967266, %v3225
  %v3231 = vadd.s32 %v3230, 127
  %v3232 = vshll.u32 %v3231, 23
  %v3233 = vor.u32 4788187, %v3232
  %v3234 = vand.u32 2147483647, %v3233
  %v3236 = vcvt.s32.f32 %v3229
  %v3237 = vmul.f32 %v3236, %v3234
  %v3238 = vxor.u32 %v3237, 2147483648
  %v3239 = vsel %vm3118, %v3238, %v3237
  %v3240 = vsub.s32 4, %v3216
  %v3241 = vsel %vm3118, %v3240, %v3216
  %v3242 = vsel %vm3117, %v2492, %v3239
  %v3243 = vsel %vm3117, 0, %v3241
  %v3244 = vmul.f32 %v3242, %v3242
  %v3245 = vmul.f32 %v3244, -0.001358992
  %v3246 = vadd.f32 %v3245, 0.041655596
  %v3247 = vmul.f32 %v3244, %v3246
  %v3248 = vadd.f32 %v3247, -0.4999988
  %v3249 = vmul.f32 %v3244, %v3248
  %v3250 = vadd.f32 1.0, %v3249
  %v3251 = vmul.f32 %v3242, %v3242
  %v3252 = vmul.f32 %v3251, -0.00019511016
  %v3253 = vadd.f32 %v3252, 0.008332121
  %v3254 = vmul.f32 %v3251, %v3253
  %v3255 = vadd.f32 %v3254, -0.16666654
  %v3256 = vmul.f32 %v3251, %v3255
  %v3257 = vadd.f32 %v3256, 1.0
  %v3258 = vmul.f32 %v3257, %v3242
  %vm3259 = vweird.f32 %v2492
  %v3260 = vand.u32 %v3243, 3
  %vm3261 = vcmp.lt.s32.totalorder %v3260, 2
  %vm3262 = vcmp.eq.s32.totalorder %v3260, 0
  %v3263 = vxor.u32 %v3258, 2147483648
  %v3264 = vsel %vm3262, %v3250, %v3263
  %vm3265 = vcmp.eq.s32.totalorder %v3260, 2
  %v3266 = vxor.u32 %v3250, 2147483648
  %v3267 = vsel %vm3265, %v3266, %v3258
  %v3268 = vsel %vm3261, %v3264, %v3267
  %v3269 = vsel %vm3259, nan, %v3268
  %v3270 = vand.u32 2147483647, %v2493
  %vm3271 = vcmp.le.f32.partialorder %v3270, 0.7853982
  %vm3272 = vcmp.lt.s32.totalorder %v2493, 0
  %v3273 = vand.u32 %v2493, 2139095040
  %v3274 = vshrl.u32 %v3273, 23
  %v3275 = vsub.s32 %v3274, 127
  %v3276 = vand.u32 2147483647, %v2493
  %v3277 = vand.u32 %v3276, 8388607
  %v3278 = vor.u32 %v3277, 8388608
  %v3279 = vsub.s32 0, %v3278
  %v3280 = vadd.s32 %v3275, 1
  %vm3281 = vcmp.gt.s32.totalorder %v3280, 0
  %v3282 = vsel %vm3281, %v3280, 0
  %v3283 = vshrl.u32 %v3282, 5
  %v3284 = vand.u32 %v3282, 31
  %v3285 = vsub.s32 32, %v3284
  %v3286 = vshrl.u32 683565275, %v3285
  %v3287 = vshll.u32 683565275, %v3284
  %v3288 = vshrl.u32 2475754826, %v3285
  %v3289 = vor.u32 %v3287, %v3288
  %v3290 = vshll.u32 2475754826, %v3284
  %v3291 = vshrl.u32 2131351028, %v3285
  %v3292 = vor.u32 %v3290, %v3291
  %v3293 = vshll.u32 2131351028, %v3284
  %v3294 = vshrl.u32 2102212464, %v3285
  %v3295 = vor.u32 %v3293, %v3294
  %v3296 = vshll.u32 2102212464, %v3284
  %v3297 = vshrl.u32 920167782, %v3285
  %v3298 = vor.u32 %v3296, %v3297
  %v3299 = vshll.u32 920167782, %v3284
  %v3300 = vshrl.u32 1326507024, %v3285
  %v3301 = vor.u32 %v3299, %v3300
  %vm3302 = vcmp.lt.s32.totalorder %v3283, 1
  %vm3303 = vcmp.lt.s32.totalorder %v3283, 2
  %vm3304 = vcmp.lt.s32.totalorder %v3283, 3
  %vm3305 = vcmp.lt.s32.totalorder %v3283, 4
  %v3306 = vsel %vm3302, %v3286, %v3289
  %v3307 = vsel %vm3305, %v3295, 2102212464
  %v3308 = vsel %vm3304, %v3292, %v3307
  %v3309 = vsel %vm3303, %v3306, %v3308
  %v3310 = vsel %vm3302, %v3289, %v3292
  %v3311 = vsel %vm3305, %v3298, 920167782
  %v3312 = vsel %vm3304, %v3295, %v3311
  %v3313 = vsel %vm3303, %v3310, %v3312
  %v3314 = vsel %vm3302, %v3292, %v3295
  %v3315 = vsel %vm3305, %v3301, 1326507024
  %v3316 = vsel %vm3304, %v3298, %v3315
  %v3317 = vsel %vm3303, %v3314, %v3316
  %v3318 = vshll.u32 %v3278, 8
  %v3319 = vand.u32 %v3318, 65535
  %v3320 = vshrl.u32 %v3318, 16
  %v3321 = vand.u32 %v3317, 65535
  %v3322 = vshrl.u32 %v3317, 16
  %v3323 = vmul.u32 %v3319, %v3321
  %v3324 = vmul.u32 %v3319, %v3322
  %v3325 = vmul.u32 %v3320, %v3321
  %v3326 = vmul.u32 %v3320, %v3322
  %v3327 = vshll.u32 %v3324, 16
  %v3328 = vshrl.u32 %v3324, 16
  %v3329 = vshll.u32 %v3325, 16
  %v3330 = vshrl.u32 %v3325, 16
  %vm3331 = vc.u32 %v3323, %v3327
  %v3332 = vsel %vm3331, 1, 0
  %v3333 = vadd.s32 %v3323, %v3327
  %v3334 = vadd.s32 %v3326, %v3332
  %vm3335 = vc.u32 %v3333, %v3329
  %v3336 = vsel %vm3335, 1, 0
  %v3337 = vadd.s32 %v3333, %v3329
  %v3338 = vadd.s32 %v3334, %v3336
  %v3339 = vadd.s32 %v3338, %v3328
  %v3340 = vadd.s32 %v3339, %v3330
  %v3341 = vand.u32 %v3318, 65535
  %v3342 = vshrl.u32 %v3318, 16
  %v3343 = vand.u32 %v3313, 65535
  %v3344 = vshrl.u32 %v3313, 16
  %v3345 = vmul.u32 %v3341, %v3343
  %v3346 = vmul.u32 %v3341, %v3344
  %v3347 = vmul.u32 %v3342, %v3343
  %v3348 = vmul.u32 %v3342, %v3344
  %v3349 = vshll.u32 %v3346, 16
  %v3350 = vshrl.u32 %v3346, 16
  %v3351 = vshll.u32 %v3347, 16
  %v3352 = vshrl.u32 %v3347, 16
  %vm3353 = vc.u32 %v3345, %v3349
  %v3354 = vsel %vm3353, 1, 0
  %v3355 = vadd.s32 %v3345, %v3349
  %v3356 = vadd.s32 %v3348, %v3354
  %vm3357 = vc.u32 %v3355, %v3351
  %v3358 = vsel %vm3357, 1, 0
  %v3359 = vadd.s32 %v3355, %v3351
  %v3360 = vadd.s32 %v3356, %v3358
  %v3361 = vadd.s32 %v3360, %v3350
  %v3362 = vadd.s32 %v3361, %v3352
  %v3363 = vmul.u32 %v3318, %v3309
  %v3364 = vadd.s32 %v3340, %v3359
  %vm3365 = vc.u32 %v3340, %v3359
  %v3366 = vadd.s32 %v3362, 1
  %v3367 = vsel %vm3365, %v3366, %v3362
  %v3368 = vadd.s32 %v3363, %v3367
  %v3369 = vadd.s32 %v3368, 536870912
  %v3370 = vshrl.u32 %v3369, 30
  %v3371 = vshll.u32 %v3370, 30
  %v3372 = vsub.s32 %v3368, %v3371
  %vm3373 = vcmp.lt.s32.totalorder %v3372, 0
  %v3374 = vsub.s32 0, %v3372
  %v3375 = vsel %vm3373, %v3374, %v3372
  %v3376 = vclz %v3375
  %v3377 = vsub.s32 %v3376, 2
  %vm3378 = vcmp.gt.s32.totalorder 0, %v3377
  %v3379 = vsel %vm3378, 0, %v3377
  %v3380 = vsub.s32 32, %v3379
  %v3381 = vshll.u32 %v3372, %v3379
  %v3382 = vshrl.u32 %v3364, %v3380
  %v3383 = vor.u32 %v3381, %v3382
  %v3384 = vsub.s32 4294967266, %v3379
  %v3385 = vadd.s32 %v3384, 127
  %v3386 = vshll.u32 %v3385, 23
  %v3387 = vor.u32 4788187, %v3386
  %v3388 = vand.u32 2147483647, %v3387
  %v3390 = vcvt.s32.f32 %v3383
  %v3391 = vmul.f32 %v3390, %v3388
  %v3392 = vxor.u32 %v3391, 2147483648
  %v3393 = vsel %vm3272, %v3392, %v3391
  %v3394 = vsub.s32 4, %v3370
  %v3395 = vsel %vm3272, %v3394, %v3370
  %v3396 = vsel %vm3271, %v2493, %v3393
  %v3397 = vsel %vm3271, 0, %v3395
  %v3398 = vmul.f32 %v3396, %v3396
  %v3399 = vmul.f32 %v3398, -0.001358992
  %v3400 = vadd.f32 %v3399, 0.041655596
  %v3401 = vmul.f32 %v3398, %v3400
  %v3402 = vadd.f32 %v3401, -0.4999988
  %v3403 = vmul.f32 %v3398, %v3402
  %v3404 = vadd.f32 1.0, %v3403
  %v3405 = vmul.f32 %v3396, %v3396
  %v3406 = vmul.f32 %v3405, -0.00019511016
  %v3407 = vadd.f32 %v3406, 0.008332121
  %v3408 = vmul.f32 %v3405, %v3407
  %v3409 = vadd.f32 %v3408, -0.16666654
  %v3410 = vmul.f32 %v3405, %v3409
  %v3411 = vadd.f32 %v3410, 1.0
  %v3412 = vmul.f32 %v3411, %v3396
  %vm3413 = vweird.f32 %v2493
  %v3414 = vand.u32 %v3397, 3
  %vm3415 = vcmp.lt.s32.totalorder %v3414, 2
  %vm3416 = vcmp.eq.s32.totalorder %v3414, 0
  %v3417 = vxor.u32 %v3412, 2147483648
  %v3418 = vsel %vm3416, %v3404, %v3417
  %vm3419 = vcmp.eq.s32.totalorder %v3414, 2
  %v3420 = vxor.u32 %v3404, 2147483648
  %v3421 = vsel %vm3419, %v3420, %v3412
  %v3422 = vsel %vm3415, %v3418, %v3421
  %v3423 = vsel %vm3413, nan, %v3422
  %v3424 = vand.u32 2147483647, %v2494
  %vm3425 = vcmp.le.f32.partialorder %v3424, 0.7853982
  %vm3426 = vcmp.lt.s32.totalorder %v2494, 0
  %v3427 = vand.u32 %v2494, 2139095040
  %v3428 = vshrl.u32 %v3427, 23
  %v3429 = vsub.s32 %v3428, 127
  %v3430 = vand.u32 2147483647, %v2494
  %v3431 = vand.u32 %v3430, 8388607
  %v3432 = vor.u32 %v3431, 8388608
  %v3433 = vsub.s32 0, %v3432
  %v3434 = vadd.s32 %v3429, 1
  %vm3435 = vcmp.gt.s32.totalorder %v3434, 0
  %v3436 = vsel %vm3435, %v3434, 0
  %v3437 = vshrl.u32 %v3436, 5
  %v3438 = vand.u32 %v3436, 31
  %v3439 = vsub.s32 32, %v3438
  %v3440 = vshrl.u32 683565275, %v3439
  %v3441 = vshll.u32 683565275, %v3438
  %v3442 = vshrl.u32 2475754826, %v3439
  %v3443 = vor.u32 %v3441, %v3442
  %v3444 = vshll.u32 2475754826, %v3438
  %v3445 = vshrl.u32 2131351028, %v3439
  %v3446 = vor.u32 %v3444, %v3445
  %v3447 = vshll.u32 2131351028, %v3438
  %v3448 = vshrl.u32 2102212464, %v3439
  %v3449 = vor.u32 %v3447, %v3448
  %v3450 = vshll.u32 2102212464, %v3438
  %v3451 = vshrl.u32 920167782, %v3439
  %v3452 = vor.u32 %v3450, %v3451
  %v3453 = vshll.u32 920167782, %v3438
  %v3454 = vshrl.u32 1326507024, %v3439
  %v3455 = vor.u32 %v3453, %v3454
  %vm3456 = vcmp.lt.s32.totalorder %v3437, 1
  %vm3457 = vcmp.lt.s32.totalorder %v3437, 2
  %vm3458 = vcmp.lt.s32.totalorder %v3437, 3
  %vm3459 = vcmp.lt.s32.totalorder %v3437, 4
  %v3460 = vsel %vm3456, %v3440, %v3443
  %v3461 = vsel %vm3459, %v3449, 2102212464
  %v3462 = vsel %vm3458, %v3446, %v3461
  %v3463 = vsel %vm3457, %v3460, %v3462
  %v3464 = vsel %vm3456, %v3443, %v3446
  %v3465 = vsel %vm3459, %v3452, 920167782
  %v3466 = vsel %vm3458, %v3449, %v3465
  %v3467 = vsel %vm3457, %v3464, %v3466
  %v3468 = vsel %vm3456, %v3446, %v3449
  %v3469 = vsel %vm3459, %v3455, 1326507024
  %v3470 = vsel %vm3458, %v3452, %v3469
  %v3471 = vsel %vm3457, %v3468, %v3470
  %v3472 = vshll.u32 %v3432, 8
  %v3473 = vand.u32 %v3472, 65535
  %v3474 = vshrl.u32 %v3472, 16
  %v3475 = vand.u32 %v3471, 65535
  %v3476 = vshrl.u32 %v3471, 16
  %v3477 = vmul.u32 %v3473, %v3475
  %v3478 = vmul.u32 %v3473, %v3476
  %v3479 = vmul.u32 %v3474, %v3475
  %v3480 = vmul.u32 %v3474, %v3476
  %v3481 = vshll.u32 %v3478, 16
  %v3482 = vshrl.u32 %v3478, 16
  %v3483 = vshll.u32 %v3479, 16
  %v3484 = vshrl.u32 %v3479, 16
  %vm3485 = vc.u32 %v3477, %v3481
  %v3486 = vsel %vm3485, 1, 0
  %v3487 = vadd.s32 %v3477, %v3481
  %v3488 = vadd.s32 %v3480, %v3486
  %vm3489 = vc.u32 %v3487, %v3483
  %v3490 = vsel %vm3489, 1, 0
  %v3491 = vadd.s32 %v3487, %v3483
  %v3492 = vadd.s32 %v3488, %v3490
  %v3493 = vadd.s32 %v3492, %v3482
  %v3494 = vadd.s32 %v3493, %v3484
  %v3495 = vand.u32 %v3472, 65535
  %v3496 = vshrl.u32 %v3472, 16
  %v3497 = vand.u32 %v3467, 65535
  %v3498 = vshrl.u32 %v3467, 16
  %v3499 = vmul.u32 %v3495, %v3497
  %v3500 = vmul.u32 %v3495, %v3498
  %v3501 = vmul.u32 %v3496, %v3497
  %v3502 = vmul.u32 %v3496, %v3498
  %v3503 = vshll.u32 %v3500, 16
  %v3504 = vshrl.u32 %v3500, 16
  %v3505 = vshll.u32 %v3501, 16
  %v3506 = vshrl.u32 %v3501, 16
  %vm3507 = vc.u32 %v3499, %v3503
  %v3508 = vsel %vm3507, 1, 0
  %v3509 = vadd.s32 %v3499, %v3503
  %v3510 = vadd.s32 %v3502, %v3508
  %vm3511 = vc.u32 %v3509, %v3505
  %v3512 = vsel %vm3511, 1, 0
  %v3513 = vadd.s32 %v3509, %v3505
  %v3514 = vadd.s32 %v3510, %v3512
  %v3515 = vadd.s32 %v3514, %v3504
  %v3516 = vadd.s32 %v3515, %v3506
  %v3517 = vmul.u32 %v3472, %v3463
  %v3518 = vadd.s32 %v3494, %v3513
  %vm3519 = vc.u32 %v3494, %v3513
  %v3520 = vadd.s32 %v3516, 1
  %v3521 = vsel %vm3519, %v3520, %v3516
  %v3522 = vadd.s32 %v3517, %v3521
  %v3523 = vadd.s32 %v3522, 536870912
  %v3524 = vshrl.u32 %v3523, 30
  %v3525 = vshll.u32 %v3524, 30
  %v3526 = vsub.s32 %v3522, %v3525
  %vm3527 = vcmp.lt.s32.totalorder %v3526, 0
  %v3528 = vsub.s32 0, %v3526
  %v3529 = vsel %vm3527, %v3528, %v3526
  %v3530 = vclz %v3529
  %v3531 = vsub.s32 %v3530, 2
  %vm3532 = vcmp.gt.s32.totalorder 0, %v3531
  %v3533 = vsel %vm3532, 0, %v3531
  %v3534 = vsub.s32 32, %v3533
  %v3535 = vshll.u32 %v3526, %v3533
  %v3536 = vshrl.u32 %v3518, %v3534
  %v3537 = vor.u32 %v3535, %v3536
  %v3538 = vsub.s32 4294967266, %v3533
  %v3539 = vadd.s32 %v3538, 127
  %v3540 = vshll.u32 %v3539, 23
  %v3541 = vor.u32 4788187, %v3540
  %v3542 = vand.u32 2147483647, %v3541
  %v3544 = vcvt.s32.f32 %v3537
  %v3545 = vmul.f32 %v3544, %v3542
  %v3546 = vxor.u32 %v3545, 2147483648
  %v3547 = vsel %vm3426, %v3546, %v3545
  %v3548 = vsub.s32 4, %v3524
  %v3549 = vsel %vm3426, %v3548, %v3524
  %v3550 = vsel %vm3425, %v2494, %v3547
  %v3551 = vsel %vm3425, 0, %v3549
  %v3552 = vmul.f32 %v3550, %v3550
  %v3553 = vmul.f32 %v3552, -0.001358992
  %v3554 = vadd.f32 %v3553, 0.041655596
  %v3555 = vmul.f32 %v3552, %v3554
  %v3556 = vadd.f32 %v3555, -0.4999988
  %v3557 = vmul.f32 %v3552, %v3556
  %v3558 = vadd.f32 1.0, %v3557
  %v3559 = vmul.f32 %v3550, %v3550
  %v3560 = vmul.f32 %v3559, -0.00019511016
  %v3561 = vadd.f32 %v3560, 0.008332121
  %v3562 = vmul.f32 %v3559, %v3561
  %v3563 = vadd.f32 %v3562, -0.16666654
  %v3564 = vmul.f32 %v3559, %v3563
  %v3565 = vadd.f32 %v3564, 1.0
  %v3566 = vmul.f32 %v3565, %v3550
  %vm3567 = vweird.f32 %v2494
  %v3568 = vand.u32 %v3551, 3
  %vm3569 = vcmp.lt.s32.totalorder %v3568, 2
  %vm3570 = vcmp.eq.s32.totalorder %v3568, 0
  %v3571 = vxor.u32 %v3566, 2147483648
  %v3572 = vsel %vm3570, %v3558, %v3571
  %vm3573 = vcmp.eq.s32.totalorder %v3568, 2
  %v3574 = vxor.u32 %v3558, 2147483648
  %v3575 = vsel %vm3573, %v3574, %v3566
  %v3576 = vsel %vm3569, %v3572, %v3575
  %v3577 = vsel %vm3567, nan, %v3576
  %v3578 = vand.u32 2147483647, %v2495
  %vm3579 = vcmp.le.f32.partialorder %v3578, 0.7853982
  %vm3580 = vcmp.lt.s32.totalorder %v2495, 0
  %v3581 = vand.u32 %v2495, 2139095040
  %v3582 = vshrl.u32 %v3581, 23
  %v3583 = vsub.s32 %v3582, 127
  %v3584 = vand.u32 2147483647, %v2495
  %v3585 = vand.u32 %v3584, 8388607
  %v3586 = vor.u32 %v3585, 8388608
  %v3587 = vsub.s32 0, %v3586
  %v3588 = vadd.s32 %v3583, 1
  %vm3589 = vcmp.gt.s32.totalorder %v3588, 0
  %v3590 = vsel %vm3589, %v3588, 0
  %v3591 = vshrl.u32 %v3590, 5
  %v3592 = vand.u32 %v3590, 31
  %v3593 = vsub.s32 32, %v3592
  %v3594 = vshrl.u32 683565275, %v3593
  %v3595 = vshll.u32 683565275, %v3592
  %v3596 = vshrl.u32 2475754826, %v3593
  %v3597 = vor.u32 %v3595, %v3596
  %v3598 = vshll.u32 2475754826, %v3592
  %v3599 = vshrl.u32 2131351028, %v3593
  %v3600 = vor.u32 %v3598, %v3599
  %v3601 = vshll.u32 2131351028, %v3592
  %v3602 = vshrl.u32 2102212464, %v3593
  %v3603 = vor.u32 %v3601, %v3602
  %v3604 = vshll.u32 2102212464, %v3592
  %v3605 = vshrl.u32 920167782, %v3593
  %v3606 = vor.u32 %v3604, %v3605
  %v3607 = vshll.u32 920167782, %v3592
  %v3608 = vshrl.u32 1326507024, %v3593
  %v3609 = vor.u32 %v3607, %v3608
  %vm3610 = vcmp.lt.s32.totalorder %v3591, 1
  %vm3611 = vcmp.lt.s32.totalorder %v3591, 2
  %vm3612 = vcmp.lt.s32.totalorder %v3591, 3
  %vm3613 = vcmp.lt.s32.totalorder %v3591, 4
  %v3614 = vsel %vm3610, %v3594, %v3597
  %v3615 = vsel %vm3613, %v3603, 2102212464
  %v3616 = vsel %vm3612, %v3600, %v3615
  %v3617 = vsel %vm3611, %v3614, %v3616
  %v3618 = vsel %vm3610, %v3597, %v3600
  %v3619 = vsel %vm3613, %v3606, 920167782
  %v3620 = vsel %vm3612, %v3603, %v3619
  %v3621 = vsel %vm3611, %v3618, %v3620
  %v3622 = vsel %vm3610, %v3600, %v3603
  %v3623 = vsel %vm3613, %v3609, 1326507024
  %v3624 = vsel %vm3612, %v3606, %v3623
  %v3625 = vsel %vm3611, %v3622, %v3624
  %v3626 = vshll.u32 %v3586, 8
  %v3627 = vand.u32 %v3626, 65535
  %v3628 = vshrl.u32 %v3626, 16
  %v3629 = vand.u32 %v3625, 65535
  %v3630 = vshrl.u32 %v3625, 16
  %v3631 = vmul.u32 %v3627, %v3629
  %v3632 = vmul.u32 %v3627, %v3630
  %v3633 = vmul.u32 %v3628, %v3629
  %v3634 = vmul.u32 %v3628, %v3630
  %v3635 = vshll.u32 %v3632, 16
  %v3636 = vshrl.u32 %v3632, 16
  %v3637 = vshll.u32 %v3633, 16
  %v3638 = vshrl.u32 %v3633, 16
  %vm3639 = vc.u32 %v3631, %v3635
  %v3640 = vsel %vm3639, 1, 0
  %v3641 = vadd.s32 %v3631, %v3635
  %v3642 = vadd.s32 %v3634, %v3640
  %vm3643 = vc.u32 %v3641, %v3637
  %v3644 = vsel %vm3643, 1, 0
  %v3645 = vadd.s32 %v3641, %v3637
  %v3646 = vadd.s32 %v3642, %v3644
  %v3647 = vadd.s32 %v3646, %v3636
  %v3648 = vadd.s32 %v3647, %v3638
  %v3649 = vand.u32 %v3626, 65535
  %v3650 = vshrl.u32 %v3626, 16
  %v3651 = vand.u32 %v3621, 65535
  %v3652 = vshrl.u32 %v3621, 16
  %v3653 = vmul.u32 %v3649, %v3651
  %v3654 = vmul.u32 %v3649, %v3652
  %v3655 = vmul.u32 %v3650, %v3651
  %v3656 = vmul.u32 %v3650, %v3652
  %v3657 = vshll.u32 %v3654, 16
  %v3658 = vshrl.u32 %v3654, 16
  %v3659 = vshll.u32 %v3655, 16
  %v3660 = vshrl.u32 %v3655, 16
  %vm3661 = vc.u32 %v3653, %v3657
  %v3662 = vsel %vm3661, 1, 0
  %v3663 = vadd.s32 %v3653, %v3657
  %v3664 = vadd.s32 %v3656, %v3662
  %vm3665 = vc.u32 %v3663, %v3659
  %v3666 = vsel %vm3665, 1, 0
  %v3667 = vadd.s32 %v3663, %v3659
  %v3668 = vadd.s32 %v3664, %v3666
  %v3669 = vadd.s32 %v3668, %v3658
  %v3670 = vadd.s32 %v3669, %v3660
  %v3671 = vmul.u32 %v3626, %v3617
  %v3672 = vadd.s32 %v3648, %v3667
  %vm3673 = vc.u32 %v3648, %v3667
  %v3674 = vadd.s32 %v3670, 1
  %v3675 = vsel %vm3673, %v3674, %v3670
  %v3676 = vadd.s32 %v3671, %v3675
  %v3677 = vadd.s32 %v3676, 536870912
  %v3678 = vshrl.u32 %v3677, 30
  %v3679 = vshll.u32 %v3678, 30
  %v3680 = vsub.s32 %v3676, %v3679
  %vm3681 = vcmp.lt.s32.totalorder %v3680, 0
  %v3682 = vsub.s32 0, %v3680
  %v3683 = vsel %vm3681, %v3682, %v3680
  %v3684 = vclz %v3683
  %v3685 = vsub.s32 %v3684, 2
  %vm3686 = vcmp.gt.s32.totalorder 0, %v3685
  %v3687 = vsel %vm3686, 0, %v3685
  %v3688 = vsub.s32 32, %v3687
  %v3689 = vshll.u32 %v3680, %v3687
  %v3690 = vshrl.u32 %v3672, %v3688
  %v3691 = vor.u32 %v3689, %v3690
  %v3692 = vsub.s32 4294967266, %v3687
  %v3693 = vadd.s32 %v3692, 127
  %v3694 = vshll.u32 %v3693, 23
  %v3695 = vor.u32 4788187, %v3694
  %v3696 = vand.u32 2147483647, %v3695
  %v3698 = vcvt.s32.f32 %v3691
  %v3699 = vmul.f32 %v3698, %v3696
  %v3700 = vxor.u32 %v3699, 2147483648
  %v3701 = vsel %vm3580, %v3700, %v3699
  %v3702 = vsub.s32 4, %v3678
  %v3703 = vsel %vm3580, %v3702, %v3678
  %v3704 = vsel %vm3579, %v2495, %v3701
  %v3705 = vsel %vm3579, 0, %v3703
  %v3706 = vmul.f32 %v3704, %v3704
  %v3707 = vmul.f32 %v3706, -0.001358992
  %v3708 = vadd.f32 %v3707, 0.041655596
  %v3709 = vmul.f32 %v3706, %v3708
  %v3710 = vadd.f32 %v3709, -0.4999988
  %v3711 = vmul.f32 %v3706, %v3710
  %v3712 = vadd.f32 1.0, %v3711
  %v3713 = vmul.f32 %v3704, %v3704
  %v3714 = vmul.f32 %v3713, -0.00019511016
  %v3715 = vadd.f32 %v3714, 0.008332121
  %v3716 = vmul.f32 %v3713, %v3715
  %v3717 = vadd.f32 %v3716, -0.16666654
  %v3718 = vmul.f32 %v3713, %v3717
  %v3719 = vadd.f32 %v3718, 1.0
  %v3720 = vmul.f32 %v3719, %v3704
  %vm3721 = vweird.f32 %v2495
  %v3722 = vand.u32 %v3705, 3
  %vm3723 = vcmp.lt.s32.totalorder %v3722, 2
  %vm3724 = vcmp.eq.s32.totalorder %v3722, 0
  %v3725 = vxor.u32 %v3720, 2147483648
  %v3726 = vsel %vm3724, %v3712, %v3725
  %vm3727 = vcmp.eq.s32.totalorder %v3722, 2
  %v3728 = vxor.u32 %v3712, 2147483648
  %v3729 = vsel %vm3727, %v3728, %v3720
  %v3730 = vsel %vm3723, %v3726, %v3729
  %v3731 = vsel %vm3721, nan, %v3730
  %v3732 = vmul.f32 %v8, 25.132742
  %v3733 = vmul.f32 %v9, 25.132742
  %v3734 = vmul.f32 %v10, 25.132742
  %v3735 = vmul.f32 %v11, 25.132742
  %v3736 = vand.u32 2147483647, %v3732
  %vm3737 = vcmp.le.f32.partialorder %v3736, 0.7853982
  %vm3738 = vcmp.lt.s32.totalorder %v3732, 0
  %v3739 = vand.u32 %v3732, 2139095040
  %v3740 = vshrl.u32 %v3739, 23
  %v3741 = vsub.s32 %v3740, 127
  %v3742 = vand.u32 2147483647, %v3732
  %v3743 = vand.u32 %v3742, 8388607
  %v3744 = vor.u32 %v3743, 8388608
  %v3745 = vsub.s32 0, %v3744
  %v3746 = vadd.s32 %v3741, 1
  %vm3747 = vcmp.gt.s32.totalorder %v3746, 0
  %v3748 = vsel %vm3747, %v3746, 0
  %v3749 = vshrl.u32 %v3748, 5
  %v3750 = vand.u32 %v3748, 31
  %v3751 = vsub.s32 32, %v3750
  %v3752 = vshrl.u32 683565275, %v3751
  %v3753 = vshll.u32 683565275, %v3750
  %v3754 = vshrl.u32 2475754826, %v3751
  %v3755 = vor.u32 %v3753, %v3754
  %v3756 = vshll.u32 2475754826, %v3750
  %v3757 = vshrl.u32 2131351028, %v3751
  %v3758 = vor.u32 %v3756, %v3757
  %v3759 = vshll.u32 2131351028, %v3750
  %v3760 = vshrl.u32 2102212464, %v3751
  %v3761 = vor.u32 %v3759, %v3760
  %v3762 = vshll.u32 2102212464, %v3750
  %v3763 = vshrl.u32 920167782, %v3751
  %v3764 = vor.u32 %v3762, %v3763
  %v3765 = vshll.u32 920167782, %v3750
  %v3766 = vshrl.u32 1326507024, %v3751
  %v3767 = vor.u32 %v3765, %v3766
  %vm3768 = vcmp.lt.s32.totalorder %v3749, 1
  %vm3769 = vcmp.lt.s32.totalorder %v3749, 2
  %vm3770 = vcmp.lt.s32.totalorder %v3749, 3
  %vm3771 = vcmp.lt.s32.totalorder %v3749, 4
  %v3772 = vsel %vm3768, %v3752, %v3755
  %v3773 = vsel %vm3771, %v3761, 2102212464
  %v3774 = vsel %vm3770, %v3758, %v3773
  %v3775 = vsel %vm3769, %v3772, %v3774
  %v3776 = vsel %vm3768, %v3755, %v3758
  %v3777 = vsel %vm3771, %v3764, 920167782
  %v3778 = vsel %vm3770, %v3761, %v3777
  %v3779 = vsel %vm3769, %v3776, %v3778
  %v3780 = vsel %vm3768, %v3758, %v3761
  %v3781 = vsel %vm3771, %v3767, 1326507024
  %v3782 = vsel %vm3770, %v3764, %v3781
  %v3783 = vsel %vm3769, %v3780, %v3782
  %v3784 = vshll.u32 %v3744, 8
  %v3785 = vand.u32 %v3784, 65535
  %v3786 = vshrl.u32 %v3784, 16
  %v3787 = vand.u32 %v3783, 65535
  %v3788 = vshrl.u32 %v3783, 16
  %v3789 = vmul.u32 %v3785, %v3787
  %v3790 = vmul.u32 %v3785, %v3788
  %v3791 = vmul.u32 %v3786, %v3787
  %v3792 = vmul.u32 %v3786, %v3788
  %v3793 = vshll.u32 %v3790, 16
  %v3794 = vshrl.u32 %v3790, 16
  %v3795 = vshll.u32 %v3791, 16
  %v3796 = vshrl.u32 %v3791, 16
  %vm3797 = vc.u32 %v3789, %v3793
  %v3798 = vsel %vm3797, 1, 0
  %v3799 = vadd.s32 %v3789, %v3793
  %v3800 = vadd.s32 %v3792, %v3798
  %vm3801 = vc.u32 %v3799, %v3795
  %v3802 = vsel %vm3801, 1, 0
  %v3803 = vadd.s32 %v3799, %v3795
  %v3804 = vadd.s32 %v3800, %v3802
  %v3805 = vadd.s32 %v3804, %v3794
  %v3806 = vadd.s32 %v3805, %v3796
  %v3807 = vand.u32 %v3784, 65535
  %v3808 = vshrl.u32 %v3784, 16
  %v3809 = vand.u32 %v3779, 65535
  %v3810 = vshrl.u32 %v3779, 16
  %v3811 = vmul.u32 %v3807, %v3809
  %v3812 = vmul.u32 %v3807, %v3810
  %v3813 = vmul.u32 %v3808, %v3809
  %v3814 = vmul.u32 %v3808, %v3810
  %v3815 = vshll.u32 %v3812, 16
  %v3816 = vshrl.u32 %v3812, 16
  %v3817 = vshll.u32 %v3813, 16
  %v3818 = vshrl.u32 %v3813, 16
  %vm3819 = vc.u32 %v3811, %v3815
  %v3820 = vsel %vm3819, 1, 0
  %v3821 = vadd.s32 %v3811, %v3815
  %v3822 = vadd.s32 %v3814, %v3820
  %vm3823 = vc.u32 %v3821, %v3817
  %v3824 = vsel %vm3823, 1, 0
  %v3825 = vadd.s32 %v3821, %v3817
  %v3826 = vadd.s32 %v3822, %v3824
  %v3827 = vadd.s32 %v3826, %v3816
  %v3828 = vadd.s32 %v3827, %v3818
  %v3829 = vmul.u32 %v3784, %v3775
  %v3830 = vadd.s32 %v3806, %v3825
  %vm3831 = vc.u32 %v3806, %v3825
  %v3832 = vadd.s32 %v3828, 1
  %v3833 = vsel %vm3831, %v3832, %v3828
  %v3834 = vadd.s32 %v3829, %v3833
  %v3835 = vadd.s32 %v3834, 536870912
  %v3836 = vshrl.u32 %v3835, 30
  %v3837 = vshll.u32 %v3836, 30
  %v3838 = vsub.s32 %v3834, %v3837
  %vm3839 = vcmp.lt.s32.totalorder %v3838, 0
  %v3840 = vsub.s32 0, %v3838
  %v3841 = vsel %vm3839, %v3840, %v3838
  %v3842 = vclz %v3841
  %v3843 = vsub.s32 %v3842, 2
  %vm3844 = vcmp.gt.s32.totalorder 0, %v3843
  %v3845 = vsel %vm3844, 0, %v3843
  %v3846 = vsub.s32 32, %v3845
  %v3847 = vshll.u32 %v3838, %v3845
  %v3848 = vshrl.u32 %v3830, %v3846
  %v3849 = vor.u32 %v3847, %v3848
  %v3850 = vsub.s32 4294967266, %v3845
  %v3851 = vadd.s32 %v3850, 127
  %v3852 = vshll.u32 %v3851, 23
  %v3853 = vor.u32 4788187, %v3852
  %v3854 = vand.u32 2147483647, %v3853
  %v3856 = vcvt.s32.f32 %v3849
  %v3857 = vmul.f32 %v3856, %v3854
  %v3858 = vxor.u32 %v3857, 2147483648
  %v3859 = vsel %vm3738, %v3858, %v3857
  %v3860 = vsub.s32 4, %v3836
  %v3861 = vsel %vm3738, %v3860, %v3836
  %v3862 = vsel %vm3737, %v3732, %v3859
  %v3863 = vsel %vm3737, 0, %v3861
  %v3864 = vmul.f32 %v3862, %v3862
  %v3865 = vmul.f32 %v3864, -0.001358992
  %v3866 = vadd.f32 %v3865, 0.041655596
  %v3867 = vmul.f32 %v3864, %v3866
  %v3868 = vadd.f32 %v3867, -0.4999988
  %v3869 = vmul.f32 %v3864, %v3868
  %v3870 = vadd.f32 1.0, %v3869
  %v3871 = vmul.f32 %v3862, %v3862
  %v3872 = vmul.f32 %v3871, -0.00019511016
  %v3873 = vadd.f32 %v3872, 0.008332121
  %v3874 = vmul.f32 %v3871, %v3873
  %v3875 = vadd.f32 %v3874, -0.16666654
  %v3876 = vmul.f32 %v3871, %v3875
  %v3877 = vadd.f32 %v3876, 1.0
  %v3878 = vmul.f32 %v3877, %v3862
  %vm3879 = vweird.f32 %v3732
  %v3880 = vadd.s32 %v3863, 3
  %v3881 = vand.u32 %v3880, 3
  %vm3882 = vcmp.lt.s32.totalorder %v3881, 2
  %vm3883 = vcmp.eq.s32.totalorder %v3881, 0
  %v3884 = vxor.u32 %v3878, 2147483648
  %v3885 = vsel %vm3883, %v3870, %v3884
  %vm3886 = vcmp.eq.s32.totalorder %v3881, 2
  %v3887 = vxor.u32 %v3870, 2147483648
  %v3888 = vsel %vm3886, %v3887, %v3878
  %v3889 = vsel %vm3882, %v3885, %v3888
  %v3890 = vsel %vm3879, nan, %v3889
  %v3891 = vand.u32 2147483647, %v3733
  %vm3892 = vcmp.le.f32.partialorder %v3891, 0.7853982
  %vm3893 = vcmp.lt.s32.totalorder %v3733, 0
  %v3894 = vand.u32 %v3733, 2139095040
  %v3895 = vshrl.u32 %v3894, 23
  %v3896 = vsub.s32 %v3895, 127
  %v3897 = vand.u32 2147483647, %v3733
  %v3898 = vand.u32 %v3897, 8388607
  %v3899 = vor.u32 %v3898, 8388608
  %v3900 = vsub.s32 0, %v3899
  %v3901 = vadd.s32 %v3896, 1
  %vm3902 = vcmp.gt.s32.totalorder %v3901, 0
  %v3903 = vsel %vm3902, %v3901, 0
  %v3904 = vshrl.u32 %v3903, 5
  %v3905 = vand.u32 %v3903, 31
  %v3906 = vsub.s32 32, %v3905
  %v3907 = vshrl.u32 683565275, %v3906
  %v3908 = vshll.u32 683565275, %v3905
  %v3909 = vshrl.u32 2475754826, %v3906
  %v3910 = vor.u32 %v3908, %v3909
  %v3911 = vshll.u32 2475754826, %v3905
  %v3912 = vshrl.u32 2131351028, %v3906
  %v3913 = vor.u32 %v3911, %v3912
  %v3914 = vshll.u32 2131351028, %v3905
  %v3915 = vshrl.u32 2102212464, %v3906
  %v3916 = vor.u32 %v3914, %v3915
  %v3917 = vshll.u32 2102212464, %v3905
  %v3918 = vshrl.u32 920167782, %v3906
  %v3919 = vor.u32 %v3917, %v3918
  %v3920 = vshll.u32 920167782, %v3905
  %v3921 = vshrl.u32 1326507024, %v3906
  %v3922 = vor.u32 %v3920, %v3921
  %vm3923 = vcmp.lt.s32.totalorder %v3904, 1
  %vm3924 = vcmp.lt.s32.totalorder %v3904, 2
  %vm3925 = vcmp.lt.s32.totalorder %v3904, 3
  %vm3926 = vcmp.lt.s32.totalorder %v3904, 4
  %v3927 = vsel %vm3923, %v3907, %v3910
  %v3928 = vsel %vm3926, %v3916, 2102212464
  %v3929 = vsel %vm3925, %v3913, %v3928
  %v3930 = vsel %vm3924, %v3927, %v3929
  %v3931 = vsel %vm3923, %v3910, %v3913
  %v3932 = vsel %vm3926, %v3919, 920167782
  %v3933 = vsel %vm3925, %v3916, %v3932
  %v3934 = vsel %vm3924, %v3931, %v3933
  %v3935 = vsel %vm3923, %v3913, %v3916
  %v3936 = vsel %vm3926, %v3922, 1326507024
  %v3937 = vsel %vm3925, %v3919, %v3936
  %v3938 = vsel %vm3924, %v3935, %v3937
  %v3939 = vshll.u32 %v3899, 8
  %v3940 = vand.u32 %v3939, 65535
  %v3941 = vshrl.u32 %v3939, 16
  %v3942 = vand.u32 %v3938, 65535
  %v3943 = vshrl.u32 %v3938, 16
  %v3944 = vmul.u32 %v3940, %v3942
  %v3945 = vmul.u32 %v3940, %v3943
  %v3946 = vmul.u32 %v3941, %v3942
  %v3947 = vmul.u32 %v3941, %v3943
  %v3948 = vshll.u32 %v3945, 16
  %v3949 = vshrl.u32 %v3945, 16
  %v3950 = vshll.u32 %v3946, 16
  %v3951 = vshrl.u32 %v3946, 16
  %vm3952 = vc.u32 %v3944, %v3948
  %v3953 = vsel %vm3952, 1, 0
  %v3954 = vadd.s32 %v3944, %v3948
  %v3955 = vadd.s32 %v3947, %v3953
  %vm3956 = vc.u32 %v3954, %v3950
  %v3957 = vsel %vm3956, 1, 0
  %v3958 = vadd.s32 %v3954, %v3950
  %v3959 = vadd.s32 %v3955, %v3957
  %v3960 = vadd.s32 %v3959, %v3949
  %v3961 = vadd.s32 %v3960, %v3951
  %v3962 = vand.u32 %v3939, 65535
  %v3963 = vshrl.u32 %v3939, 16
  %v3964 = vand.u32 %v3934, 65535
  %v3965 = vshrl.u32 %v3934, 16
  %v3966 = vmul.u32 %v3962, %v3964
  %v3967 = vmul.u32 %v3962, %v3965
  %v3968 = vmul.u32 %v3963, %v3964
  %v3969 = vmul.u32 %v3963, %v3965
  %v3970 = vshll.u32 %v3967, 16
  %v3971 = vshrl.u32 %v3967, 16
  %v3972 = vshll.u32 %v3968, 16
  %v3973 = vshrl.u32 %v3968, 16
  %vm3974 = vc.u32 %v3966, %v3970
  %v3975 = vsel %vm3974, 1, 0
  %v3976 = vadd.s32 %v3966, %v3970
  %v3977 = vadd.s32 %v3969, %v3975
  %vm3978 = vc.u32 %v3976, %v3972
  %v3979 = vsel %vm3978, 1, 0
  %v3980 = vadd.s32 %v3976, %v3972
  %v3981 = vadd.s32 %v3977, %v3979
  %v3982 = vadd.s32 %v3981, %v3971
  %v3983 = vadd.s32 %v3982, %v3973
  %v3984 = vmul.u32 %v3939, %v3930
  %v3985 = vadd.s32 %v3961, %v3980
  %vm3986 = vc.u32 %v3961, %v3980
  %v3987 = vadd.s32 %v3983, 1
  %v3988 = vsel %vm3986, %v3987, %v3983
  %v3989 = vadd.s32 %v3984, %v3988
  %v3990 = vadd.s32 %v3989, 536870912
  %v3991 = vshrl.u32 %v3990, 30
  %v3992 = vshll.u32 %v3991, 30
  %v3993 = vsub.s32 %v3989, %v3992
  %vm3994 = vcmp.lt.s32.totalorder %v3993, 0
  %v3995 = vsub.s32 0, %v3993
  %v3996 = vsel %vm3994, %v3995, %v3993
  %v3997 = vclz %v3996
  %v3998 = vsub.s32 %v3997, 2
  %vm3999 = vcmp.gt.s32.totalorder 0, %v3998
  %v4000 = vsel %vm3999, 0, %v3998
  %v4001 = vsub.s32 32, %v4000
  %v4002 = vshll.u32 %v3993, %v4000
  %v4003 = vshrl.u32 %v3985, %v4001
  %v4004 = vor.u32 %v4002, %v4003
  %v4005 = vsub.s32 4294967266, %v4000
  %v4006 = vadd.s32 %v4005, 127
  %v4007 = vshll.u32 %v4006, 23
  %v4008 = vor.u32 4788187, %v4007
  %v4009 = vand.u32 2147483647, %v4008
  %v4011 = vcvt.s32.f32 %v4004
  %v4012 = vmul.f32 %v4011, %v4009
  %v4013 = vxor.u32 %v4012, 2147483648
  %v4014 = vsel %vm3893, %v4013, %v4012
  %v4015 = vsub.s32 4, %v3991
  %v4016 = vsel %vm3893, %v4015, %v3991
  %v4017 = vsel %vm3892, %v3733, %v4014
  %v4018 = vsel %vm3892, 0, %v4016
  %v4019 = vmul.f32 %v4017, %v4017
  %v4020 = vmul.f32 %v4019, -0.001358992
  %v4021 = vadd.f32 %v4020, 0.041655596
  %v4022 = vmul.f32 %v4019, %v4021
  %v4023 = vadd.f32 %v4022, -0.4999988
  %v4024 = vmul.f32 %v4019, %v4023
  %v4025 = vadd.f32 1.0, %v4024
  %v4026 = vmul.f32 %v4017, %v4017
  %v4027 = vmul.f32 %v4026, -0.00019511016
  %v4028 = vadd.f32 %v4027, 0.008332121
  %v4029 = vmul.f32 %v4026, %v4028
  %v4030 = vadd.f32 %v4029, -0.16666654
  %v4031 = vmul.f32 %v4026, %v4030
  %v4032 = vadd.f32 %v4031, 1.0
  %v4033 = vmul.f32 %v4032, %v4017
  %vm4034 = vweird.f32 %v3733
  %v4035 = vadd.s32 %v4018, 3
  %v4036 = vand.u32 %v4035, 3
  %vm4037 = vcmp.lt.s32.totalorder %v4036, 2
  %vm4038 = vcmp.eq.s32.totalorder %v4036, 0
  %v4039 = vxor.u32 %v4033, 2147483648
  %v4040 = vsel %vm4038, %v4025, %v4039
  %vm4041 = vcmp.eq.s32.totalorder %v4036, 2
  %v4042 = vxor.u32 %v4025, 2147483648
  %v4043 = vsel %vm4041, %v4042, %v4033
  %v4044 = vsel %vm4037, %v4040, %v4043
  %v4045 = vsel %vm4034, nan, %v4044
  %v4046 = vand.u32 2147483647, %v3734
  %vm4047 = vcmp.le.f32.partialorder %v4046, 0.7853982
  %vm4048 = vcmp.lt.s32.totalorder %v3734, 0
  %v4049 = vand.u32 %v3734, 2139095040
  %v4050 = vshrl.u32 %v4049, 23
  %v4051 = vsub.s32 %v4050, 127
  %v4052 = vand.u32 2147483647, %v3734
  %v4053 = vand.u32 %v4052, 8388607
  %v4054 = vor.u32 %v4053, 8388608
  %v4055 = vsub.s32 0, %v4054
  %v4056 = vadd.s32 %v4051, 1
  %vm4057 = vcmp.gt.s32.totalorder %v4056, 0
  %v4058 = vsel %vm4057, %v4056, 0
  %v4059 = vshrl.u32 %v4058, 5
  %v4060 = vand.u32 %v4058, 31
  %v4061 = vsub.s32 32, %v4060
  %v4062 = vshrl.u32 683565275, %v4061
  %v4063 = vshll.u32 683565275, %v4060
  %v4064 = vshrl.u32 2475754826, %v4061
  %v4065 = vor.u32 %v4063, %v4064
  %v4066 = vshll.u32 2475754826, %v4060
  %v4067 = vshrl.u32 2131351028, %v4061
  %v4068 = vor.u32 %v4066, %v4067
  %v4069 = vshll.u32 2131351028, %v4060
  %v4070 = vshrl.u32 2102212464, %v4061
  %v4071 = vor.u32 %v4069, %v4070
  %v4072 = vshll.u32 2102212464, %v4060
  %v4073 = vshrl.u32 920167782, %v4061
  %v4074 = vor.u32 %v4072, %v4073
  %v4075 = vshll.u32 920167782, %v4060
  %v4076 = vshrl.u32 1326507024, %v4061
  %v4077 = vor.u32 %v4075, %v4076
  %vm4078 = vcmp.lt.s32.totalorder %v4059, 1
  %vm4079 = vcmp.lt.s32.totalorder %v4059, 2
  %vm4080 = vcmp.lt.s32.totalorder %v4059, 3
  %vm4081 = vcmp.lt.s32.totalorder %v4059, 4
  %v4082 = vsel %vm4078, %v4062, %v4065
  %v4083 = vsel %vm4081, %v4071, 2102212464
  %v4084 = vsel %vm4080, %v4068, %v4083
  %v4085 = vsel %vm4079, %v4082, %v4084
  %v4086 = vsel %vm4078, %v4065, %v4068
  %v4087 = vsel %vm4081, %v4074, 920167782
  %v4088 = vsel %vm4080, %v4071, %v4087
  %v4089 = vsel %vm4079, %v4086, %v4088
  %v4090 = vsel %vm4078, %v4068, %v4071
  %v4091 = vsel %vm4081, %v4077, 1326507024
  %v4092 = vsel %vm4080, %v4074, %v4091
  %v4093 = vsel %vm4079, %v4090, %v4092
  %v4094 = vshll.u32 %v4054, 8
  %v4095 = vand.u32 %v4094, 65535
  %v4096 = vshrl.u32 %v4094, 16
  %v4097 = vand.u32 %v4093, 65535
  %v4098 = vshrl.u32 %v4093, 16
  %v4099 = vmul.u32 %v4095, %v4097
  %v4100 = vmul.u32 %v4095, %v4098
  %v4101 = vmul.u32 %v4096, %v4097
  %v4102 = vmul.u32 %v4096, %v4098
  %v4103 = vshll.u32 %v4100, 16
  %v4104 = vshrl.u32 %v4100, 16
  %v4105 = vshll.u32 %v4101, 16
  %v4106 = vshrl.u32 %v4101, 16
  %vm4107 = vc.u32 %v4099, %v4103
  %v4108 = vsel %vm4107, 1, 0
  %v4109 = vadd.s32 %v4099, %v4103
  %v4110 = vadd.s32 %v4102, %v4108
  %vm4111 = vc.u32 %v4109, %v4105
  %v4112 = vsel %vm4111, 1, 0
  %v4113 = vadd.s32 %v4109, %v4105
  %v4114 = vadd.s32 %v4110, %v4112
  %v4115 = vadd.s32 %v4114, %v4104
  %v4116 = vadd.s32 %v4115, %v4106
  %v4117 = vand.u32 %v4094, 65535
  %v4118 = vshrl.u32 %v4094, 16
  %v4119 = vand.u32 %v4089, 65535
  %v4120 = vshrl.u32 %v4089, 16
  %v4121 = vmul.u32 %v4117, %v4119
  %v4122 = vmul.u32 %v4117, %v4120
  %v4123 = vmul.u32 %v4118, %v4119
  %v4124 = vmul.u32 %v4118, %v4120
  %v4125 = vshll.u32 %v4122, 16
  %v4126 = vshrl.u32 %v4122, 16
  %v4127 = vshll.u32 %v4123, 16
  %v4128 = vshrl.u32 %v4123, 16
  %vm4129 = vc.u32 %v4121, %v4125
  %v4130 = vsel %vm4129, 1, 0
  %v4131 = vadd.s32 %v4121, %v4125
  %v4132 = vadd.s32 %v4124, %v4130
  %vm4133 = vc.u32 %v4131, %v4127
  %v4134 = vsel %vm4133, 1, 0
  %v4135 = vadd.s32 %v4131, %v4127
  %v4136 = vadd.s32 %v4132, %v4134
  %v4137 = vadd.s32 %v4136, %v4126
  %v4138 = vadd.s32 %v4137, %v4128
  %v4139 = vmul.u32 %v4094, %v4085
  %v4140 = vadd.s32 %v4116, %v4135
  %vm4141 = vc.u32 %v4116, %v4135
  %v4142 = vadd.s32 %v4138, 1
  %v4143 = vsel %vm4141, %v4142, %v4138
  %v4144 = vadd.s32 %v4139, %v4143
  %v4145 = vadd.s32 %v4144, 536870912
  %v4146 = vshrl.u32 %v4145, 30
  %v4147 = vshll.u32 %v4146, 30
  %v4148 = vsub.s32 %v4144, %v4147
  %vm4149 = vcmp.lt.s32.totalorder %v4148, 0
  %v4150 = vsub.s32 0, %v4148
  %v4151 = vsel %vm4149, %v4150, %v4148
  %v4152 = vclz %v4151
  %v4153 = vsub.s32 %v4152, 2
  %vm4154 = vcmp.gt.s32.totalorder 0, %v4153
  %v4155 = vsel %vm4154, 0, %v4153
  %v4156 = vsub.s32 32, %v4155
  %v4157 = vshll.u32 %v4148, %v4155
  %v4158 = vshrl.u32 %v4140, %v4156
  %v4159 = vor.u32 %v4157, %v4158
  %v4160 = vsub.s32 4294967266, %v4155
  %v4161 = vadd.s32 %v4160, 127
  %v4162 = vshll.u32 %v4161, 23
  %v4163 = vor.u32 4788187, %v4162
  %v4164 = vand.u32 2147483647, %v4163
  %v4166 = vcvt.s32.f32 %v4159
  %v4167 = vmul.f32 %v4166, %v4164
  %v4168 = vxor.u32 %v4167, 2147483648
  %v4169 = vsel %vm4048, %v4168, %v4167
  %v4170 = vsub.s32 4, %v4146
  %v4171 = vsel %vm4048, %v4170, %v4146
  %v4172 = vsel %vm4047, %v3734, %v4169
  %v4173 = vsel %vm4047, 0, %v4171
  %v4174 = vmul.f32 %v4172, %v4172
  %v4175 = vmul.f32 %v4174, -0.001358992
  %v4176 = vadd.f32 %v4175, 0.041655596
  %v4177 = vmul.f32 %v4174, %v4176
  %v4178 = vadd.f32 %v4177, -0.4999988
  %v4179 = vmul.f32 %v4174, %v4178
  %v4180 = vadd.f32 1.0, %v4179
  %v4181 = vmul.f32 %v4172, %v4172
  %v4182 = vmul.f32 %v4181, -0.00019511016
  %v4183 = vadd.f32 %v4182, 0.008332121
  %v4184 = vmul.f32 %v4181, %v4183
  %v4185 = vadd.f32 %v4184, -0.16666654
  %v4186 = vmul.f32 %v4181, %v4185
  %v4187 = vadd.f32 %v4186, 1.0
  %v4188 = vmul.f32 %v4187, %v4172
  %vm4189 = vweird.f32 %v3734
  %v4190 = vadd.s32 %v4173, 3
  %v4191 = vand.u32 %v4190, 3
  %vm4192 = vcmp.lt.s32.totalorder %v4191, 2
  %vm4193 = vcmp.eq.s32.totalorder %v4191, 0
  %v4194 = vxor.u32 %v4188, 2147483648
  %v4195 = vsel %vm4193, %v4180, %v4194
  %vm4196 = vcmp.eq.s32.totalorder %v4191, 2
  %v4197 = vxor.u32 %v4180, 2147483648
  %v4198 = vsel %vm4196, %v4197, %v4188
  %v4199 = vsel %vm4192, %v4195, %v4198
  %v4200 = vsel %vm4189, nan, %v4199
  %v4201 = vand.u32 2147483647, %v3735
  %vm4202 = vcmp.le.f32.partialorder %v4201, 0.7853982
  %vm4203 = vcmp.lt.s32.totalorder %v3735, 0
  %v4204 = vand.u32 %v3735, 2139095040
  %v4205 = vshrl.u32 %v4204, 23
  %v4206 = vsub.s32 %v4205, 127
  %v4207 = vand.u32 2147483647, %v3735
  %v4208 = vand.u32 %v4207, 8388607
  %v4209 = vor.u32 %v4208, 8388608
  %v4210 = vsub.s32 0, %v4209
  %v4211 = vadd.s32 %v4206, 1
  %vm4212 = vcmp.gt.s32.totalorder %v4211, 0
  %v4213 = vsel %vm4212, %v4211, 0
  %v4214 = vshrl.u32 %v4213, 5
  %v4215 = vand.u32 %v4213, 31
  %v4216 = vsub.s32 32, %v4215
  %v4217 = vshrl.u32 683565275, %v4216
  %v4218 = vshll.u32 683565275, %v4215
  %v4219 = vshrl.u32 2475754826, %v4216
  %v4220 = vor.u32 %v4218, %v4219
  %v4221 = vshll.u32 2475754826, %v4215
  %v4222 = vshrl.u32 2131351028, %v4216
  %v4223 = vor.u32 %v4221, %v4222
  %v4224 = vshll.u32 2131351028, %v4215
  %v4225 = vshrl.u32 2102212464, %v4216
  %v4226 = vor.u32 %v4224, %v4225
  %v4227 = vshll.u32 2102212464, %v4215
  %v4228 = vshrl.u32 920167782, %v4216
  %v4229 = vor.u32 %v4227, %v4228
  %v4230 = vshll.u32 920167782, %v4215
  %v4231 = vshrl.u32 1326507024, %v4216
  %v4232 = vor.u32 %v4230, %v4231
  %vm4233 = vcmp.lt.s32.totalorder %v4214, 1
  %vm4234 = vcmp.lt.s32.totalorder %v4214, 2
  %vm4235 = vcmp.lt.s32.totalorder %v4214, 3
  %vm4236 = vcmp.lt.s32.totalorder %v4214, 4
  %v4237 = vsel %vm4233, %v4217, %v4220
  %v4238 = vsel %vm4236, %v4226, 2102212464
  %v4239 = vsel %vm4235, %v4223, %v4238
  %v4240 = vsel %vm4234, %v4237, %v4239
  %v4241 = vsel %vm4233, %v4220, %v4223
  %v4242 = vsel %vm4236, %v4229, 920167782
  %v4243 = vsel %vm4235, %v4226, %v4242
  %v4244 = vsel %vm4234, %v4241, %v4243
  %v4245 = vsel %vm4233, %v4223, %v4226
  %v4246 = vsel %vm4236, %v4232, 1326507024
  %v4247 = vsel %vm4235, %v4229, %v4246
  %v4248 = vsel %vm4234, %v4245, %v4247
  %v4249 = vshll.u32 %v4209, 8
  %v4250 = vand.u32 %v4249, 65535
  %v4251 = vshrl.u32 %v4249, 16
  %v4252 = vand.u32 %v4248, 65535
  %v4253 = vshrl.u32 %v4248, 16
  %v4254 = vmul.u32 %v4250, %v4252
  %v4255 = vmul.u32 %v4250, %v4253
  %v4256 = vmul.u32 %v4251, %v4252
  %v4257 = vmul.u32 %v4251, %v4253
  %v4258 = vshll.u32 %v4255, 16
  %v4259 = vshrl.u32 %v4255, 16
  %v4260 = vshll.u32 %v4256, 16
  %v4261 = vshrl.u32 %v4256, 16
  %vm4262 = vc.u32 %v4254, %v4258
  %v4263 = vsel %vm4262, 1, 0
  %v4264 = vadd.s32 %v4254, %v4258
  %v4265 = vadd.s32 %v4257, %v4263
  %vm4266 = vc.u32 %v4264, %v4260
  %v4267 = vsel %vm4266, 1, 0
  %v4268 = vadd.s32 %v4264, %v4260
  %v4269 = vadd.s32 %v4265, %v4267
  %v4270 = vadd.s32 %v4269, %v4259
  %v4271 = vadd.s32 %v4270, %v4261
  %v4272 = vand.u32 %v4249, 65535
  %v4273 = vshrl.u32 %v4249, 16
  %v4274 = vand.u32 %v4244, 65535
  %v4275 = vshrl.u32 %v4244, 16
  %v4276 = vmul.u32 %v4272, %v4274
  %v4277 = vmul.u32 %v4272, %v4275
  %v4278 = vmul.u32 %v4273, %v4274
  %v4279 = vmul.u32 %v4273, %v4275
  %v4280 = vshll.u32 %v4277, 16
  %v4281 = vshrl.u32 %v4277, 16
  %v4282 = vshll.u32 %v4278, 16
  %v4283 = vshrl.u32 %v4278, 16
  %vm4284 = vc.u32 %v4276, %v4280
  %v4285 = vsel %vm4284, 1, 0
  %v4286 = vadd.s32 %v4276, %v4280
  %v4287 = vadd.s32 %v4279, %v4285
  %vm4288 = vc.u32 %v4286, %v4282
  %v4289 = vsel %vm4288, 1, 0
  %v4290 = vadd.s32 %v4286, %v4282
  %v4291 = vadd.s32 %v4287, %v4289
  %v4292 = vadd.s32 %v4291, %v4281
  %v4293 = vadd.s32 %v4292, %v4283
  %v4294 = vmul.u32 %v4249, %v4240
  %v4295 = vadd.s32 %v4271, %v4290
  %vm4296 = vc.u32 %v4271, %v4290
  %v4297 = vadd.s32 %v4293, 1
  %v4298 = vsel %vm4296, %v4297, %v4293
  %v4299 = vadd.s32 %v4294, %v4298
  %v4300 = vadd.s32 %v4299, 536870912
  %v4301 = vshrl.u32 %v4300, 30
  %v4302 = vshll.u32 %v4301, 30
  %v4303 = vsub.s32 %v4299, %v4302
  %vm4304 = vcmp.lt.s32.totalorder %v4303, 0
  %v4305 = vsub.s32 0, %v4303
  %v4306 = vsel %vm4304, %v4305, %v4303
  %v4307 = vclz %v4306
  %v4308 = vsub.s32 %v4307, 2
  %vm4309 = vcmp.gt.s32.totalorder 0, %v4308
  %v4310 = vsel %vm4309, 0, %v4308
  %v4311 = vsub.s32 32, %v4310
  %v4312 = vshll.u32 %v4303, %v4310
  %v4313 = vshrl.u32 %v4295, %v4311
  %v4314 = vor.u32 %v4312, %v4313
  %v4315 = vsub.s32 4294967266, %v4310
  %v4316 = vadd.s32 %v4315, 127
  %v4317 = vshll.u32 %v4316, 23
  %v4318 = vor.u32 4788187, %v4317
  %v4319 = vand.u32 2147483647, %v4318
  %v4321 = vcvt.s32.f32 %v4314
  %v4322 = vmul.f32 %v4321, %v4319
  %v4323 = vxor.u32 %v4322, 2147483648
  %v4324 = vsel %vm4203, %v4323, %v4322
  %v4325 = vsub.s32 4, %v4301
  %v4326 = vsel %vm4203, %v4325, %v4301
  %v4327 = vsel %vm4202, %v3735, %v4324
  %v4328 = vsel %vm4202, 0, %v4326
  %v4329 = vmul.f32 %v4327, %v4327
  %v4330 = vmul.f32 %v4329, -0.001358992
  %v4331 = vadd.f32 %v4330, 0.041655596
  %v4332 = vmul.f32 %v4329, %v4331
  %v4333 = vadd.f32 %v4332, -0.4999988
  %v4334 = vmul.f32 %v4329, %v4333
  %v4335 = vadd.f32 1.0, %v4334
  %v4336 = vmul.f32 %v4327, %v4327
  %v4337 = vmul.f32 %v4336, -0.00019511016
  %v4338 = vadd.f32 %v4337, 0.008332121
  %v4339 = vmul.f32 %v4336, %v4338
  %v4340 = vadd.f32 %v4339, -0.16666654
  %v4341 = vmul.f32 %v4336, %v4340
  %v4342 = vadd.f32 %v4341, 1.0
  %v4343 = vmul.f32 %v4342, %v4327
  %vm4344 = vweird.f32 %v3735
  %v4345 = vadd.s32 %v4328, 3
  %v4346 = vand.u32 %v4345, 3
  %vm4347 = vcmp.lt.s32.totalorder %v4346, 2
  %vm4348 = vcmp.eq.s32.totalorder %v4346, 0
  %v4349 = vxor.u32 %v4343, 2147483648
  %v4350 = vsel %vm4348, %v4335, %v4349
  %vm4351 = vcmp.eq.s32.totalorder %v4346, 2
  %v4352 = vxor.u32 %v4335, 2147483648
  %v4353 = vsel %vm4351, %v4352, %v4343
  %v4354 = vsel %vm4347, %v4350, %v4353
  %v4355 = vsel %vm4344, nan, %v4354
  %v4356 = vand.u32 2147483647, %v3732
  %vm4357 = vcmp.le.f32.partialorder %v4356, 0.7853982
  %vm4358 = vcmp.lt.s32.totalorder %v3732, 0
  %v4359 = vand.u32 %v3732, 2139095040
  %v4360 = vshrl.u32 %v4359, 23
  %v4361 = vsub.s32 %v4360, 127
  %v4362 = vand.u32 2147483647, %v3732
  %v4363 = vand.u32 %v4362, 8388607
  %v4364 = vor.u32 %v4363, 8388608
  %v4365 = vsub.s32 0, %v4364
  %v4366 = vadd.s32 %v4361, 1
  %vm4367 = vcmp.gt.s32.totalorder %v4366, 0
  %v4368 = vsel %vm4367, %v4366, 0
  %v4369 = vshrl.u32 %v4368, 5
  %v4370 = vand.u32 %v4368, 31
  %v4371 = vsub.s32 32, %v4370
  %v4372 = vshrl.u32 683565275, %v4371
  %v4373 = vshll.u32 683565275, %v4370
  %v4374 = vshrl.u32 2475754826, %v4371
  %v4375 = vor.u32 %v4373, %v4374
  %v4376 = vshll.u32 2475754826, %v4370
  %v4377 = vshrl.u32 2131351028, %v4371
  %v4378 = vor.u32 %v4376, %v4377
  %v4379 = vshll.u32 2131351028, %v4370
  %v4380 = vshrl.u32 2102212464, %v4371
  %v4381 = vor.u32 %v4379, %v4380
  %v4382 = vshll.u32 2102212464, %v4370
  %v4383 = vshrl.u32 920167782, %v4371
  %v4384 = vor.u32 %v4382, %v4383
  %v4385 = vshll.u32 920167782, %v4370
  %v4386 = vshrl.u32 1326507024, %v4371
  %v4387 = vor.u32 %v4385, %v4386
  %vm4388 = vcmp.lt.s32.totalorder %v4369, 1
  %vm4389 = vcmp.lt.s32.totalorder %v4369, 2
  %vm4390 = vcmp.lt.s32.totalorder %v4369, 3
  %vm4391 = vcmp.lt.s32.totalorder %v4369, 4
  %v4392 = vsel %vm4388, %v4372, %v4375
  %v4393 = vsel %vm4391, %v4381, 2102212464
  %v4394 = vsel %vm4390, %v4378, %v4393
  %v4395 = vsel %vm4389, %v4392, %v4394
  %v4396 = vsel %vm4388, %v4375, %v4378
  %v4397 = vsel %vm4391, %v4384, 920167782
  %v4398 = vsel %vm4390, %v4381, %v4397
  %v4399 = vsel %vm4389, %v4396, %v4398
  %v4400 = vsel %vm4388, %v4378, %v4381
  %v4401 = vsel %vm4391, %v4387, 1326507024
  %v4402 = vsel %vm4390, %v4384, %v4401
  %v4403 = vsel %vm4389, %v4400, %v4402
  %v4404 = vshll.u32 %v4364, 8
  %v4405 = vand.u32 %v4404, 65535
  %v4406 = vshrl.u32 %v4404, 16
  %v4407 = vand.u32 %v4403, 65535
  %v4408 = vshrl.u32 %v4403, 16
  %v4409 = vmul.u32 %v4405, %v4407
  %v4410 = vmul.u32 %v4405, %v4408
  %v4411 = vmul.u32 %v4406, %v4407
  %v4412 = vmul.u32 %v4406, %v4408
  %v4413 = vshll.u32 %v4410, 16
  %v4414 = vshrl.u32 %v4410, 16
  %v4415 = vshll.u32 %v4411, 16
  %v4416 = vshrl.u32 %v4411, 16
  %vm4417 = vc.u32 %v4409, %v4413
  %v4418 = vsel %vm4417, 1, 0
  %v4419 = vadd.s32 %v4409, %v4413
  %v4420 = vadd.s32 %v4412, %v4418
  %vm4421 = vc.u32 %v4419, %v4415
  %v4422 = vsel %vm4421, 1, 0
  %v4423 = vadd.s32 %v4419, %v4415
  %v4424 = vadd.s32 %v4420, %v4422
  %v4425 = vadd.s32 %v4424, %v4414
  %v4426 = vadd.s32 %v4425, %v4416
  %v4427 = vand.u32 %v4404, 65535
  %v4428 = vshrl.u32 %v4404, 16
  %v4429 = vand.u32 %v4399, 65535
  %v4430 = vshrl.u32 %v4399, 16
  %v4431 = vmul.u32 %v4427, %v4429
  %v4432 = vmul.u32 %v4427, %v4430
  %v4433 = vmul.u32 %v4428, %v4429
  %v4434 = vmul.u32 %v4428, %v4430
  %v4435 = vshll.u32 %v4432, 16
  %v4436 = vshrl.u32 %v4432, 16
  %v4437 = vshll.u32 %v4433, 16
  %v4438 = vshrl.u32 %v4433, 16
  %vm4439 = vc.u32 %v4431, %v4435
  %v4440 = vsel %vm4439, 1, 0
  %v4441 = vadd.s32 %v4431, %v4435
  %v4442 = vadd.s32 %v4434, %v4440
  %vm4443 = vc.u32 %v4441, %v4437
  %v4444 = vsel %vm4443, 1, 0
  %v4445 = vadd.s32 %v4441, %v4437
  %v4446 = vadd.s32 %v4442, %v4444
  %v4447 = vadd.s32 %v4446, %v4436
  %v4448 = vadd.s32 %v4447, %v4438
  %v4449 = vmul.u32 %v4404, %v4395
  %v4450 = vadd.s32 %v4426, %v4445
  %vm4451 = vc.u32 %v4426, %v4445
  %v4452 = vadd.s32 %v4448, 1
  %v4453 = vsel %vm4451, %v4452, %v4448
  %v4454 = vadd.s32 %v4449, %v4453
  %v4455 = vadd.s32 %v4454, 536870912
  %v4456 = vshrl.u32 %v4455, 30
  %v4457 = vshll.u32 %v4456, 30
  %v4458 = vsub.s32 %v4454, %v4457
  %vm4459 = vcmp.lt.s32.totalorder %v4458, 0
  %v4460 = vsub.s32 0, %v4458
  %v4461 = vsel %vm4459, %v4460, %v4458
  %v4462 = vclz %v4461
  %v4463 = vsub.s32 %v4462, 2
  %vm4464 = vcmp.gt.s32.totalorder 0, %v4463
  %v4465 = vsel %vm4464, 0, %v4463
  %v4466 = vsub.s32 32, %v4465
  %v4467 = vshll.u32 %v4458, %v4465
  %v4468 = vshrl.u32 %v4450, %v4466
  %v4469 = vor.u32 %v4467, %v4468
  %v4470 = vsub.s32 4294967266, %v4465
  %v4471 = vadd.s32 %v4470, 127
  %v4472 = vshll.u32 %v4471, 23
  %v4473 = vor.u32 4788187, %v4472
  %v4474 = vand.u32 2147483647, %v4473
  %v4476 = vcvt.s32.f32 %v4469
  %v4477 = vmul.f32 %v4476, %v4474
  %v4478 = vxor.u32 %v4477, 2147483648
  %v4479 = vsel %vm4358, %v4478, %v4477
  %v4480 = vsub.s32 4, %v4456
  %v4481 = vsel %vm4358, %v4480, %v4456
  %v4482 = vsel %vm4357, %v3732, %v4479
  %v4483 = vsel %vm4357, 0, %v4481
  %v4484 = vmul.f32 %v4482, %v4482
  %v4485 = vmul.f32 %v4484, -0.001358992
  %v4486 = vadd.f32 %v4485, 0.041655596
  %v4487 = vmul.f32 %v4484, %v4486
  %v4488 = vadd.f32 %v4487, -0.4999988
  %v4489 = vmul.f32 %v4484, %v4488
  %v4490 = vadd.f32 1.0, %v4489
  %v4491 = vmul.f32 %v4482, %v4482
  %v4492 = vmul.f32 %v4491, -0.00019511016
  %v4493 = vadd.f32 %v4492, 0.008332121
  %v4494 = vmul.f32 %v4491, %v4493
  %v4495 = vadd.f32 %v4494, -0.16666654
  %v4496 = vmul.f32 %v4491, %v4495
  %v4497 = vadd.f32 %v4496, 1.0
  %v4498 = vmul.f32 %v4497, %v4482
  %vm4499 = vweird.f32 %v3732
  %v4500 = vand.u32 %v4483, 3
  %vm4501 = vcmp.lt.s32.totalorder %v4500, 2
  %vm4502 = vcmp.eq.s32.totalorder %v4500, 0
  %v4503 = vxor.u32 %v4498, 2147483648
  %v4504 = vsel %vm4502, %v4490, %v4503
  %vm4505 = vcmp.eq.s32.totalorder %v4500, 2
  %v4506 = vxor.u32 %v4490, 2147483648
  %v4507 = vsel %vm4505, %v4506, %v4498
  %v4508 = vsel %vm4501, %v4504, %v4507
  %v4509 = vsel %vm4499, nan, %v4508
  %v4510 = vand.u32 2147483647, %v3733
  %vm4511 = vcmp.le.f32.partialorder %v4510, 0.7853982
  %vm4512 = vcmp.lt.s32.totalorder %v3733, 0
  %v4513 = vand.u32 %v3733, 2139095040
  %v4514 = vshrl.u32 %v4513, 23
  %v4515 = vsub.s32 %v4514, 127
  %v4516 = vand.u32 2147483647, %v3733
  %v4517 = vand.u32 %v4516, 8388607
  %v4518 = vor.u32 %v4517, 8388608
  %v4519 = vsub.s32 0, %v4518
  %v4520 = vadd.s32 %v4515, 1
  %vm4521 = vcmp.gt.s32.totalorder %v4520, 0
  %v4522 = vsel %vm4521, %v4520, 0
  %v4523 = vshrl.u32 %v4522, 5
  %v4524 = vand.u32 %v4522, 31
  %v4525 = vsub.s32 32, %v4524
  %v4526 = vshrl.u32 683565275, %v4525
  %v4527 = vshll.u32 683565275, %v4524
  %v4528 = vshrl.u32 2475754826, %v4525
  %v4529 = vor.u32 %v4527, %v4528
  %v4530 = vshll.u32 2475754826, %v4524
  %v4531 = vshrl.u32 2131351028, %v4525
  %v4532 = vor.u32 %v4530, %v4531
  %v4533 = vshll.u32 2131351028, %v4524
  %v4534 = vshrl.u32 2102212464, %v4525
  %v4535 = vor.u32 %v4533, %v4534
  %v4536 = vshll.u32 2102212464, %v4524
  %v4537 = vshrl.u32 920167782, %v4525
  %v4538 = vor.u32 %v4536, %v4537
  %v4539 = vshll.u32 920167782, %v4524
  %v4540 = vshrl.u32 1326507024, %v4525
  %v4541 = vor.u32 %v4539, %v4540
  %vm4542 = vcmp.lt.s32.totalorder %v4523, 1
  %vm4543 = vcmp.lt.s32.totalorder %v4523, 2
  %vm4544 = vcmp.lt.s32.totalorder %v4523, 3
  %vm4545 = vcmp.lt.s32.totalorder %v4523, 4
  %v4546 = vsel %vm4542, %v4526, %v4529
  %v4547 = vsel %vm4545, %v4535, 2102212464
  %v4548 = vsel %vm4544, %v4532, %v4547
  %v4549 = vsel %vm4543, %v4546, %v4548
  %v4550 = vsel %vm4542, %v4529, %v4532
  %v4551 = vsel %vm4545, %v4538, 920167782
  %v4552 = vsel %vm4544, %v4535, %v4551
  %v4553 = vsel %vm4543, %v4550, %v4552
  %v4554 = vsel %vm4542, %v4532, %v4535
  %v4555 = vsel %vm4545, %v4541, 1326507024
  %v4556 = vsel %vm4544, %v4538, %v4555
  %v4557 = vsel %vm4543, %v4554, %v4556
  %v4558 = vshll.u32 %v4518, 8
  %v4559 = vand.u32 %v4558, 65535
  %v4560 = vshrl.u32 %v4558, 16
  %v4561 = vand.u32 %v4557, 65535
  %v4562 = vshrl.u32 %v4557, 16
  %v4563 = vmul.u32 %v4559, %v4561
  %v4564 = vmul.u32 %v4559, %v4562
  %v4565 = vmul.u32 %v4560, %v4561
  %v4566 = vmul.u32 %v4560, %v4562
  %v4567 = vshll.u32 %v4564, 16
  %v4568 = vshrl.u32 %v4564, 16
  %v4569 = vshll.u32 %v4565, 16
  %v4570 = vshrl.u32 %v4565, 16
  %vm4571 = vc.u32 %v4563, %v4567
  %v4572 = vsel %vm4571, 1, 0
  %v4573 = vadd.s32 %v4563, %v4567
  %v4574 = vadd.s32 %v4566, %v4572
  %vm4575 = vc.u32 %v4573, %v4569
  %v4576 = vsel %vm4575, 1, 0
  %v4577 = vadd.s32 %v4573, %v4569
  %v4578 = vadd.s32 %v4574, %v4576
  %v4579 = vadd.s32 %v4578, %v4568
  %v4580 = vadd.s32 %v4579, %v4570
  %v4581 = vand.u32 %v4558, 65535
  %v4582 = vshrl.u32 %v4558, 16
  %v4583 = vand.u32 %v4553, 65535
  %v4584 = vshrl.u32 %v4553, 16
  %v4585 = vmul.u32 %v4581, %v4583
  %v4586 = vmul.u32 %v4581, %v4584
  %v4587 = vmul.u32 %v4582, %v4583
  %v4588 = vmul.u32 %v4582, %v4584
  %v4589 = vshll.u32 %v4586, 16
  %v4590 = vshrl.u32 %v4586, 16
  %v4591 = vshll.u32 %v4587, 16
  %v4592 = vshrl.u32 %v4587, 16
  %vm4593 = vc.u32 %v4585, %v4589
  %v4594 = vsel %vm4593, 1, 0
  %v4595 = vadd.s32 %v4585, %v4589
  %v4596 = vadd.s32 %v4588, %v4594
  %vm4597 = vc.u32 %v4595, %v4591
  %v4598 = vsel %vm4597, 1, 0
  %v4599 = vadd.s32 %v4595, %v4591
  %v4600 = vadd.s32 %v4596, %v4598
  %v4601 = vadd.s32 %v4600, %v4590
  %v4602 = vadd.s32 %v4601, %v4592
  %v4603 = vmul.u32 %v4558, %v4549
  %v4604 = vadd.s32 %v4580, %v4599
  %vm4605 = vc.u32 %v4580, %v4599
  %v4606 = vadd.s32 %v4602, 1
  %v4607 = vsel %vm4605, %v4606, %v4602
  %v4608 = vadd.s32 %v4603, %v4607
  %v4609 = vadd.s32 %v4608, 536870912
  %v4610 = vshrl.u32 %v4609, 30
  %v4611 = vshll.u32 %v4610, 30
  %v4612 = vsub.s32 %v4608, %v4611
  %vm4613 = vcmp.lt.s32.totalorder %v4612, 0
  %v4614 = vsub.s32 0, %v4612
  %v4615 = vsel %vm4613, %v4614, %v4612
  %v4616 = vclz %v4615
  %v4617 = vsub.s32 %v4616, 2
  %vm4618 = vcmp.gt.s32.totalorder 0, %v4617
  %v4619 = vsel %vm4618, 0, %v4617
  %v4620 = vsub.s32 32, %v4619
  %v4621 = vshll.u32 %v4612, %v4619
  %v4622 = vshrl.u32 %v4604, %v4620
  %v4623 = vor.u32 %v4621, %v4622
  %v4624 = vsub.s32 4294967266, %v4619
  %v4625 = vadd.s32 %v4624, 127
  %v4626 = vshll.u32 %v4625, 23
  %v4627 = vor.u32 4788187, %v4626
  %v4628 = vand.u32 2147483647, %v4627
  %v4630 = vcvt.s32.f32 %v4623
  %v4631 = vmul.f32 %v4630, %v4628
  %v4632 = vxor.u32 %v4631, 2147483648
  %v4633 = vsel %vm4512, %v4632, %v4631
  %v4634 = vsub.s32 4, %v4610
  %v4635 = vsel %vm4512, %v4634, %v4610
  %v4636 = vsel %vm4511, %v3733, %v4633
  %v4637 = vsel %vm4511, 0, %v4635
  %v4638 = vmul.f32 %v4636, %v4636
  %v4639 = vmul.f32 %v4638, -0.001358992
  %v4640 = vadd.f32 %v4639, 0.041655596
  %v4641 = vmul.f32 %v4638, %v4640
  %v4642 = vadd.f32 %v4641, -0.4999988
  %v4643 = vmul.f32 %v4638, %v4642
  %v4644 = vadd.f32 1.0, %v4643
  %v4645 = vmul.f32 %v4636, %v4636
  %v4646 = vmul.f32 %v4645, -0.00019511016
  %v4647 = vadd.f32 %v4646, 0.008332121
  %v4648 = vmul.f32 %v4645, %v4647
  %v4649 = vadd.f32 %v4648, -0.16666654
  %v4650 = vmul.f32 %v4645, %v4649
  %v4651 = vadd.f32 %v4650, 1.0
  %v4652 = vmul.f32 %v4651, %v4636
  %vm4653 = vweird.f32 %v3733
  %v4654 = vand.u32 %v4637, 3
  %vm4655 = vcmp.lt.s32.totalorder %v4654, 2
  %vm4656 = vcmp.eq.s32.totalorder %v4654, 0
  %v4657 = vxor.u32 %v4652, 2147483648
  %v4658 = vsel %vm4656, %v4644, %v4657
  %vm4659 = vcmp.eq.s32.totalorder %v4654, 2
  %v4660 = vxor.u32 %v4644, 2147483648
  %v4661 = vsel %vm4659, %v4660, %v4652
  %v4662 = vsel %vm4655, %v4658, %v4661
  %v4663 = vsel %vm4653, nan, %v4662
  %v4664 = vand.u32 2147483647, %v3734
  %vm4665 = vcmp.le.f32.partialorder %v4664, 0.7853982
  %vm4666 = vcmp.lt.s32.totalorder %v3734, 0
  %v4667 = vand.u32 %v3734, 2139095040
  %v4668 = vshrl.u32 %v4667, 23
  %v4669 = vsub.s32 %v4668, 127
  %v4670 = vand.u32 2147483647, %v3734
  %v4671 = vand.u32 %v4670, 8388607
  %v4672 = vor.u32 %v4671, 8388608
  %v4673 = vsub.s32 0, %v4672
  %v4674 = vadd.s32 %v4669, 1
  %vm4675 = vcmp.gt.s32.totalorder %v4674, 0
  %v4676 = vsel %vm4675, %v4674, 0
  %v4677 = vshrl.u32 %v4676, 5
  %v4678 = vand.u32 %v4676, 31
  %v4679 = vsub.s32 32, %v4678
  %v4680 = vshrl.u32 683565275, %v4679
  %v4681 = vshll.u32 683565275, %v4678
  %v4682 = vshrl.u32 2475754826, %v4679
  %v4683 = vor.u32 %v4681, %v4682
  %v4684 = vshll.u32 2475754826, %v4678
  %v4685 = vshrl.u32 2131351028, %v4679
  %v4686 = vor.u32 %v4684, %v4685
  %v4687 = vshll.u32 2131351028, %v4678
  %v4688 = vshrl.u32 2102212464, %v4679
  %v4689 = vor.u32 %v4687, %v4688
  %v4690 = vshll.u32 2102212464, %v4678
  %v4691 = vshrl.u32 920167782, %v4679
  %v4692 = vor.u32 %v4690, %v4691
  %v4693 = vshll.u32 920167782, %v4678
  %v4694 = vshrl.u32 1326507024, %v4679
  %v4695 = vor.u32 %v4693, %v4694
  %vm4696 = vcmp.lt.s32.totalorder %v4677, 1
  %vm4697 = vcmp.lt.s32.totalorder %v4677, 2
  %vm4698 = vcmp.lt.s32.totalorder %v4677, 3
  %vm4699 = vcmp.lt.s32.totalorder %v4677, 4
  %v4700 = vsel %vm4696, %v4680, %v4683
  %v4701 = vsel %vm4699, %v4689, 2102212464
  %v4702 = vsel %vm4698, %v4686, %v4701
  %v4703 = vsel %vm4697, %v4700, %v4702
  %v4704 = vsel %vm4696, %v4683, %v4686
  %v4705 = vsel %vm4699, %v4692, 920167782
  %v4706 = vsel %vm4698, %v4689, %v4705
  %v4707 = vsel %vm4697, %v4704, %v4706
  %v4708 = vsel %vm4696, %v4686, %v4689
  %v4709 = vsel %vm4699, %v4695, 1326507024
  %v4710 = vsel %vm4698, %v4692, %v4709
  %v4711 = vsel %vm4697, %v4708, %v4710
  %v4712 = vshll.u32 %v4672, 8
  %v4713 = vand.u32 %v4712, 65535
  %v4714 = vshrl.u32 %v4712, 16
  %v4715 = vand.u32 %v4711, 65535
  %v4716 = vshrl.u32 %v4711, 16
  %v4717 = vmul.u32 %v4713, %v4715
  %v4718 = vmul.u32 %v4713, %v4716
  %v4719 = vmul.u32 %v4714, %v4715
  %v4720 = vmul.u32 %v4714, %v4716
  %v4721 = vshll.u32 %v4718, 16
  %v4722 = vshrl.u32 %v4718, 16
  %v4723 = vshll.u32 %v4719, 16
  %v4724 = vshrl.u32 %v4719, 16
  %vm4725 = vc.u32 %v4717, %v4721
  %v4726 = vsel %vm4725, 1, 0
  %v4727 = vadd.s32 %v4717, %v4721
  %v4728 = vadd.s32 %v4720, %v4726
  %vm4729 = vc.u32 %v4727, %v4723
  %v4730 = vsel %vm4729, 1, 0
  %v4731 = vadd.s32 %v4727, %v4723
  %v4732 = vadd.s32 %v4728, %v4730
  %v4733 = vadd.s32 %v4732, %v4722
  %v4734 = vadd.s32 %v4733, %v4724
  %v4735 = vand.u32 %v4712, 65535
  %v4736 = vshrl.u32 %v4712, 16
  %v4737 = vand.u32 %v4707, 65535
  %v4738 = vshrl.u32 %v4707, 16
  %v4739 = vmul.u32 %v4735, %v4737
  %v4740 = vmul.u32 %v4735, %v4738
  %v4741 = vmul.u32 %v4736, %v4737
  %v4742 = vmul.u32 %v4736, %v4738
  %v4743 = vshll.u32 %v4740, 16
  %v4744 = vshrl.u32 %v4740, 16
  %v4745 = vshll.u32 %v4741, 16
  %v4746 = vshrl.u32 %v4741, 16
  %vm4747 = vc.u32 %v4739, %v4743
  %v4748 = vsel %vm4747, 1, 0
  %v4749 = vadd.s32 %v4739, %v4743
  %v4750 = vadd.s32 %v4742, %v4748
  %vm4751 = vc.u32 %v4749, %v4745
  %v4752 = vsel %vm4751, 1, 0
  %v4753 = vadd.s32 %v4749, %v4745
  %v4754 = vadd.s32 %v4750, %v4752
  %v4755 = vadd.s32 %v4754, %v4744
  %v4756 = vadd.s32 %v4755, %v4746
  %v4757 = vmul.u32 %v4712, %v4703
  %v4758 = vadd.s32 %v4734, %v4753
  %vm4759 = vc.u32 %v4734, %v4753
  %v4760 = vadd.s32 %v4756, 1
  %v4761 = vsel %vm4759, %v4760, %v4756
  %v4762 = vadd.s32 %v4757, %v4761
  %v4763 = vadd.s32 %v4762, 536870912
  %v4764 = vshrl.u32 %v4763, 30
  %v4765 = vshll.u32 %v4764, 30
  %v4766 = vsub.s32 %v4762, %v4765
  %vm4767 = vcmp.lt.s32.totalorder %v4766, 0
  %v4768 = vsub.s32 0, %v4766
  %v4769 = vsel %vm4767, %v4768, %v4766
  %v4770 = vclz %v4769
  %v4771 = vsub.s32 %v4770, 2
  %vm4772 = vcmp.gt.s32.totalorder 0, %v4771
  %v4773 = vsel %vm4772, 0, %v4771
  %v4774 = vsub.s32 32, %v4773
  %v4775 = vshll.u32 %v4766, %v4773
  %v4776 = vshrl.u32 %v4758, %v4774
  %v4777 = vor.u32 %v4775, %v4776
  %v4778 = vsub.s32 4294967266, %v4773
  %v4779 = vadd.s32 %v4778, 127
  %v4780 = vshll.u32 %v4779, 23
  %v4781 = vor.u32 4788187, %v4780
  %v4782 = vand.u32 2147483647, %v4781
  %v4784 = vcvt.s32.f32 %v4777
  %v4785 = vmul.f32 %v4784, %v4782
  %v4786 = vxor.u32 %v4785, 2147483648
  %v4787 = vsel %vm4666, %v4786, %v4785
  %v4788 = vsub.s32 4, %v4764
  %v4789 = vsel %vm4666, %v4788, %v4764
  %v4790 = vsel %vm4665, %v3734, %v4787
  %v4791 = vsel %vm4665, 0, %v4789
  %v4792 = vmul.f32 %v4790, %v4790
  %v4793 = vmul.f32 %v4792, -0.001358992
  %v4794 = vadd.f32 %v4793, 0.041655596
  %v4795 = vmul.f32 %v4792, %v4794
  %v4796 = vadd.f32 %v4795, -0.4999988
  %v4797 = vmul.f32 %v4792, %v4796
  %v4798 = vadd.f32 1.0, %v4797
  %v4799 = vmul.f32 %v4790, %v4790
  %v4800 = vmul.f32 %v4799, -0.00019511016
  %v4801 = vadd.f32 %v4800, 0.008332121
  %v4802 = vmul.f32 %v4799, %v4801
  %v4803 = vadd.f32 %v4802, -0.16666654
  %v4804 = vmul.f32 %v4799, %v4803
  %v4805 = vadd.f32 %v4804, 1.0
  %v4806 = vmul.f32 %v4805, %v4790
  %vm4807 = vweird.f32 %v3734
  %v4808 = vand.u32 %v4791, 3
  %vm4809 = vcmp.lt.s32.totalorder %v4808, 2
  %vm4810 = vcmp.eq.s32.totalorder %v4808, 0
  %v4811 = vxor.u32 %v4806, 2147483648
  %v4812 = vsel %vm4810, %v4798, %v4811
  %vm4813 = vcmp.eq.s32.totalorder %v4808, 2
  %v4814 = vxor.u32 %v4798, 2147483648
  %v4815 = vsel %vm4813, %v4814, %v4806
  %v4816 = vsel %vm4809, %v4812, %v4815
  %v4817 = vsel %vm4807, nan, %v4816
  %v4818 = vand.u32 2147483647, %v3735
  %vm4819 = vcmp.le.f32.partialorder %v4818, 0.7853982
  %vm4820 = vcmp.lt.s32.totalorder %v3735, 0
  %v4821 = vand.u32 %v3735, 2139095040
  %v4822 = vshrl.u32 %v4821, 23
  %v4823 = vsub.s32 %v4822, 127
  %v4824 = vand.u32 2147483647, %v3735
  %v4825 = vand.u32 %v4824, 8388607
  %v4826 = vor.u32 %v4825, 8388608
  %v4827 = vsub.s32 0, %v4826
  %v4828 = vadd.s32 %v4823, 1
  %vm4829 = vcmp.gt.s32.totalorder %v4828, 0
  %v4830 = vsel %vm4829, %v4828, 0
  %v4831 = vshrl.u32 %v4830, 5
  %v4832 = vand.u32 %v4830, 31
  %v4833 = vsub.s32 32, %v4832
  %v4834 = vshrl.u32 683565275, %v4833
  %v4835 = vshll.u32 683565275, %v4832
  %v4836 = vshrl.u32 2475754826, %v4833
  %v4837 = vor.u32 %v4835, %v4836
  %v4838 = vshll.u32 2475754826, %v4832
  %v4839 = vshrl.u32 2131351028, %v4833
  %v4840 = vor.u32 %v4838, %v4839
  %v4841 = vshll.u32 2131351028, %v4832
  %v4842 = vshrl.u32 2102212464, %v4833
  %v4843 = vor.u32 %v4841, %v4842
  %v4844 = vshll.u32 2102212464, %v4832
  %v4845 = vshrl.u32 920167782, %v4833
  %v4846 = vor.u32 %v4844, %v4845
  %v4847 = vshll.u32 920167782, %v4832
  %v4848 = vshrl.u32 1326507024, %v4833
  %v4849 = vor.u32 %v4847, %v4848
  %vm4850 = vcmp.lt.s32.totalorder %v4831, 1
  %vm4851 = vcmp.lt.s32.totalorder %v4831, 2
  %vm4852 = vcmp.lt.s32.totalorder %v4831, 3
  %vm4853 = vcmp.lt.s32.totalorder %v4831, 4
  %v4854 = vsel %vm4850, %v4834, %v4837
  %v4855 = vsel %vm4853, %v4843, 2102212464
  %v4856 = vsel %vm4852, %v4840, %v4855
  %v4857 = vsel %vm4851, %v4854, %v4856
  %v4858 = vsel %vm4850, %v4837, %v4840
  %v4859 = vsel %vm4853, %v4846, 920167782
  %v4860 = vsel %vm4852, %v4843, %v4859
  %v4861 = vsel %vm4851, %v4858, %v4860
  %v4862 = vsel %vm4850, %v4840, %v4843
  %v4863 = vsel %vm4853, %v4849, 1326507024
  %v4864 = vsel %vm4852, %v4846, %v4863
  %v4865 = vsel %vm4851, %v4862, %v4864
  %v4866 = vshll.u32 %v4826, 8
  %v4867 = vand.u32 %v4866, 65535
  %v4868 = vshrl.u32 %v4866, 16
  %v4869 = vand.u32 %v4865, 65535
  %v4870 = vshrl.u32 %v4865, 16
  %v4871 = vmul.u32 %v4867, %v4869
  %v4872 = vmul.u32 %v4867, %v4870
  %v4873 = vmul.u32 %v4868, %v4869
  %v4874 = vmul.u32 %v4868, %v4870
  %v4875 = vshll.u32 %v4872, 16
  %v4876 = vshrl.u32 %v4872, 16
  %v4877 = vshll.u32 %v4873, 16
  %v4878 = vshrl.u32 %v4873, 16
  %vm4879 = vc.u32 %v4871, %v4875
  %v4880 = vsel %vm4879, 1, 0
  %v4881 = vadd.s32 %v4871, %v4875
  %v4882 = vadd.s32 %v4874, %v4880
  %vm4883 = vc.u32 %v4881, %v4877
  %v4884 = vsel %vm4883, 1, 0
  %v4885 = vadd.s32 %v4881, %v4877
  %v4886 = vadd.s32 %v4882, %v4884
  %v4887 = vadd.s32 %v4886, %v4876
  %v4888 = vadd.s32 %v4887, %v4878
  %v4889 = vand.u32 %v4866, 65535
  %v4890 = vshrl.u32 %v4866, 16
  %v4891 = vand.u32 %v4861, 65535
  %v4892 = vshrl.u32 %v4861, 16
  %v4893 = vmul.u32 %v4889, %v4891
  %v4894 = vmul.u32 %v4889, %v4892
  %v4895 = vmul.u32 %v4890, %v4891
  %v4896 = vmul.u32 %v4890, %v4892
  %v4897 = vshll.u32 %v4894, 16
  %v4898 = vshrl.u32 %v4894, 16
  %v4899 = vshll.u32 %v4895, 16
  %v4900 = vshrl.u32 %v4895, 16
  %vm4901 = vc.u32 %v4893, %v4897
  %v4902 = vsel %vm4901, 1, 0
  %v4903 = vadd.s32 %v4893, %v4897
  %v4904 = vadd.s32 %v4896, %v4902
  %vm4905 = vc.u32 %v4903, %v4899
  %v4906 = vsel %vm4905, 1, 0
  %v4907 = vadd.s32 %v4903, %v4899
  %v4908 = vadd.s32 %v4904, %v4906
  %v4909 = vadd.s32 %v4908, %v4898
  %v4910 = vadd.s32 %v4909, %v4900
  %v4911 = vmul.u32 %v4866, %v4857
  %v4912 = vadd.s32 %v4888, %v4907
  %vm4913 = vc.u32 %v4888, %v4907
  %v4914 = vadd.s32 %v4910, 1
  %v4915 = vsel %vm4913, %v4914, %v4910
  %v4916 = vadd.s32 %v4911, %v4915
  %v4917 = vadd.s32 %v4916, 536870912
  %v4918 = vshrl.u32 %v4917, 30
  %v4919 = vshll.u32 %v4918, 30
  %v4920 = vsub.s32 %v4916, %v4919
  %vm4921 = vcmp.lt.s32.totalorder %v4920, 0
  %v4922 = vsub.s32 0, %v4920
  %v4923 = vsel %vm4921, %v4922, %v4920
  %v4924 = vclz %v4923
  %v4925 = vsub.s32 %v4924, 2
  %vm4926 = vcmp.gt.s32.totalorder 0, %v4925
  %v4927 = vsel %vm4926, 0, %v4925
  %v4928 = vsub.s32 32, %v4927
  %v4929 = vshll.u32 %v4920, %v4927
  %v4930 = vshrl.u32 %v4912, %v4928
  %v4931 = vor.u32 %v4929, %v4930
  %v4932 = vsub.s32 4294967266, %v4927
  %v4933 = vadd.s32 %v4932, 127
  %v4934 = vshll.u32 %v4933, 23
  %v4935 = vor.u32 4788187, %v4934
  %v4936 = vand.u32 2147483647, %v4935
  %v4938 = vcvt.s32.f32 %v4931
  %v4939 = vmul.f32 %v4938, %v4936
  %v4940 = vxor.u32 %v4939, 2147483648
  %v4941 = vsel %vm4820, %v4940, %v4939
  %v4942 = vsub.s32 4, %v4918
  %v4943 = vsel %vm4820, %v4942, %v4918
  %v4944 = vsel %vm4819, %v3735, %v4941
  %v4945 = vsel %vm4819, 0, %v4943
  %v4946 = vmul.f32 %v4944, %v4944
  %v4947 = vmul.f32 %v4946, -0.001358992
  %v4948 = vadd.f32 %v4947, 0.041655596
  %v4949 = vmul.f32 %v4946, %v4948
  %v4950 = vadd.f32 %v4949, -0.4999988
  %v4951 = vmul.f32 %v4946, %v4950
  %v4952 = vadd.f32 1.0, %v4951
  %v4953 = vmul.f32 %v4944, %v4944
  %v4954 = vmul.f32 %v4953, -0.00019511016
  %v4955 = vadd.f32 %v4954, 0.008332121
  %v4956 = vmul.f32 %v4953, %v4955
  %v4957 = vadd.f32 %v4956, -0.16666654
  %v4958 = vmul.f32 %v4953, %v4957
  %v4959 = vadd.f32 %v4958, 1.0
  %v4960 = vmul.f32 %v4959, %v4944
  %vm4961 = vweird.f32 %v3735
  %v4962 = vand.u32 %v4945, 3
  %vm4963 = vcmp.lt.s32.totalorder %v4962, 2
  %vm4964 = vcmp.eq.s32.totalorder %v4962, 0
  %v4965 = vxor.u32 %v4960, 2147483648
  %v4966 = vsel %vm4964, %v4952, %v4965
  %vm4967 = vcmp.eq.s32.totalorder %v4962, 2
  %v4968 = vxor.u32 %v4952, 2147483648
  %v4969 = vsel %vm4967, %v4968, %v4960
  %v4970 = vsel %vm4963, %v4966, %v4969
  %v4971 = vsel %vm4961, nan, %v4970
  %4976 = vst [vmem:[#allocation1] ss:$2 sm:$0xff] %v170
  %s4977 = scalar_lea.vmem [#allocation1], 16
  %4978 = vst [vmem:[%s4977] ss:$2 sm:$0xff] %v325
  %s4979 = scalar_lea.vmem [#allocation1], 32
  %4980 = vst [vmem:[%s4979] ss:$2 sm:$0xff] %v480
  %s4981 = scalar_lea.vmem [#allocation1], 48
  %4982 = vst [vmem:[%s4981] ss:$2 sm:$0xff] %v635
  %v4983 = vld.sshfl [vmem:[#allocation1] sm:$0xff pattern:$0x75316420]
  %v4984 = vld.sshfl [vmem:[#allocation1 + $0x8] sm:$0xff pattern:$0x75316420]
  %v4985 = vld.sshfl [vmem:[#allocation1 + $0x10] sm:$0xff pattern:$0x75316420]
  %v4986 = vld.sshfl [vmem:[#allocation1 + $0x18] sm:$0xff pattern:$0x75316420]
  %v4987 = vld.sshfl [vmem:[#allocation1 + $0x20] sm:$0xff pattern:$0x75316420]
  %v4988 = vld.sshfl [vmem:[#allocation1 + $0x28] sm:$0xff pattern:$0x75316420]
  %v4989 = vld.sshfl [vmem:[#allocation1 + $0x30] sm:$0xff pattern:$0x75316420]
  %v4990 = vld.sshfl [vmem:[#allocation1 + $0x38] sm:$0xff pattern:$0x75316420]
  %5003 = vst [vmem:[#allocation1] ss:$2 sm:$0xff] %v789
  %s5004 = scalar_lea.vmem [#allocation1], 16
  %5005 = vst [vmem:[%s5004] ss:$2 sm:$0xff] %v943
  %s5006 = scalar_lea.vmem [#allocation1], 32
  %5007 = vst [vmem:[%s5006] ss:$2 sm:$0xff] %v1097
  %s5008 = scalar_lea.vmem [#allocation1], 48
  %5009 = vst [vmem:[%s5008] ss:$2 sm:$0xff] %v1251
  %v5010 = vld.sshfl [vmem:[#allocation1] sm:$0xff pattern:$0x75316420]
  %v5011 = vld.sshfl [vmem:[#allocation1 + $0x8] sm:$0xff pattern:$0x75316420]
  %v5012 = vld.sshfl [vmem:[#allocation1 + $0x10] sm:$0xff pattern:$0x75316420]
  %v5013 = vld.sshfl [vmem:[#allocation1 + $0x18] sm:$0xff pattern:$0x75316420]
  %v5014 = vld.sshfl [vmem:[#allocation1 + $0x20] sm:$0xff pattern:$0x75316420]
  %v5015 = vld.sshfl [vmem:[#allocation1 + $0x28] sm:$0xff pattern:$0x75316420]
  %v5016 = vld.sshfl [vmem:[#allocation1 + $0x30] sm:$0xff pattern:$0x75316420]
  %v5017 = vld.sshfl [vmem:[#allocation1 + $0x38] sm:$0xff pattern:$0x75316420]
  %v5018 = vrot.slane %v5010, 5
  %v5019 = vrot.slane %v5011, 5
  %v5020 = vrot.slane %v5012, 5
  %v5021 = vrot.slane %v5013, 5
  %v5022 = vrot.slane %v5014, 5
  %v5023 = vrot.slane %v5015, 5
  %v5024 = vrot.slane %v5016, 5
  %v5025 = vrot.slane %v5017, 5
  %5038 = vst [vmem:[#allocation1] ss:$2 sm:$0xff] %v1410
  %s5039 = scalar_lea.vmem [#allocation1], 16
  %5040 = vst [vmem:[%s5039] ss:$2 sm:$0xff] %v1565
  %s5041 = scalar_lea.vmem [#allocation1], 32
  %5042 = vst [vmem:[%s5041] ss:$2 sm:$0xff] %v1720
  %s5043 = scalar_lea.vmem [#allocation1], 48
  %5044 = vst [vmem:[%s5043] ss:$2 sm:$0xff] %v1875
  %v5045 = vld.sshfl [vmem:[#allocation1] sm:$0xff pattern:$0x75316420]
  %v5046 = vld.sshfl [vmem:[#allocation1 + $0x8] sm:$0xff pattern:$0x75316420]
  %v5047 = vld.sshfl [vmem:[#allocation1 + $0x10] sm:$0xff pattern:$0x75316420]
  %v5048 = vld.sshfl [vmem:[#allocation1 + $0x18] sm:$0xff pattern:$0x75316420]
  %v5049 = vld.sshfl [vmem:[#allocation1 + $0x20] sm:$0xff pattern:$0x75316420]
  %v5050 = vld.sshfl [vmem:[#allocation1 + $0x28] sm:$0xff pattern:$0x75316420]
  %v5051 = vld.sshfl [vmem:[#allocation1 + $0x30] sm:$0xff pattern:$0x75316420]
  %v5052 = vld.sshfl [vmem:[#allocation1 + $0x38] sm:$0xff pattern:$0x75316420]
  %v5053 = vrot.slane %v5045, 2
  %v5054 = vrot.slane %v5046, 2
  %v5055 = vrot.slane %v5047, 2
  %v5056 = vrot.slane %v5048, 2
  %v5057 = vrot.slane %v5049, 2
  %v5058 = vrot.slane %v5050, 2
  %v5059 = vrot.slane %v5051, 2
  %v5060 = vrot.slane %v5052, 2
  %5073 = vst [vmem:[#allocation1] ss:$2 sm:$0xff] %v2029
  %s5074 = scalar_lea.vmem [#allocation1], 16
  %5075 = vst [vmem:[%s5074] ss:$2 sm:$0xff] %v2183
  %s5076 = scalar_lea.vmem [#allocation1], 32
  %5077 = vst [vmem:[%s5076] ss:$2 sm:$0xff] %v2337
  %s5078 = scalar_lea.vmem [#allocation1], 48
  %5079 = vst [vmem:[%s5078] ss:$2 sm:$0xff] %v2491
  %v5080 = vld.sshfl [vmem:[#allocation1] sm:$0xff pattern:$0x75316420]
  %v5081 = vld.sshfl [vmem:[#allocation1 + $0x8] sm:$0xff pattern:$0x75316420]
  %v5082 = vld.sshfl [vmem:[#allocation1 + $0x10] sm:$0xff pattern:$0x75316420]
  %v5083 = vld.sshfl [vmem:[#allocation1 + $0x18] sm:$0xff pattern:$0x75316420]
  %v5084 = vld.sshfl [vmem:[#allocation1 + $0x20] sm:$0xff pattern:$0x75316420]
  %v5085 = vld.sshfl [vmem:[#allocation1 + $0x28] sm:$0xff pattern:$0x75316420]
  %v5086 = vld.sshfl [vmem:[#allocation1 + $0x30] sm:$0xff pattern:$0x75316420]
  %v5087 = vld.sshfl [vmem:[#allocation1 + $0x38] sm:$0xff pattern:$0x75316420]
  %v5088 = vrot.slane %v5080, 7
  %v5089 = vrot.slane %v5081, 7
  %v5090 = vrot.slane %v5082, 7
  %v5091 = vrot.slane %v5083, 7
  %v5092 = vrot.slane %v5084, 7
  %v5093 = vrot.slane %v5085, 7
  %v5094 = vrot.slane %v5086, 7
  %v5095 = vrot.slane %v5087, 7
  %s5108 = scalar_lea.vmem [#allocation1], 1
  %5109 = vst [vmem:[%s5108] ss:$2 sm:$0xff] %v2650
  %s5110 = scalar_lea.vmem [#allocation1], 17
  %5111 = vst [vmem:[%s5110] ss:$2 sm:$0xff] %v2805
  %s5112 = scalar_lea.vmem [#allocation1], 33
  %5113 = vst [vmem:[%s5112] ss:$2 sm:$0xff] %v2960
  %s5114 = scalar_lea.vmem [#allocation1], 49
  %5115 = vst [vmem:[%s5114] ss:$2 sm:$0xff] %v3115
  %v5116 = vld.sshfl [vmem:[#allocation1] sm:$0xff pattern:$0x75316420]
  %v5117 = vld.sshfl [vmem:[#allocation1 + $0x8] sm:$0xff pattern:$0x75316420]
  %v5118 = vld.sshfl [vmem:[#allocation1 + $0x10] sm:$0xff pattern:$0x75316420]
  %v5119 = vld.sshfl [vmem:[#allocation1 + $0x18] sm:$0xff pattern:$0x75316420]
  %v5120 = vld.sshfl [vmem:[#allocation1 + $0x20] sm:$0xff pattern:$0x75316420]
  %v5121 = vld.sshfl [vmem:[#allocation1 + $0x28] sm:$0xff pattern:$0x75316420]
  %v5122 = vld.sshfl [vmem:[#allocation1 + $0x30] sm:$0xff pattern:$0x75316420]
  %v5123 = vld.sshfl [vmem:[#allocation1 + $0x38] sm:$0xff pattern:$0x75316420]
  %5136 = vst [vmem:[#allocation1] ss:$2 sm:$0xff] %v3269
  %s5137 = scalar_lea.vmem [#allocation1], 16
  %5138 = vst [vmem:[%s5137] ss:$2 sm:$0xff] %v3423
  %s5139 = scalar_lea.vmem [#allocation1], 32
  %5140 = vst [vmem:[%s5139] ss:$2 sm:$0xff] %v3577
  %s5141 = scalar_lea.vmem [#allocation1], 48
  %5142 = vst [vmem:[%s5141] ss:$2 sm:$0xff] %v3731
  %v5143 = vld.sshfl [vmem:[#allocation1] sm:$0xff pattern:$0x75316420]
  %v5144 = vld.sshfl [vmem:[#allocation1 + $0x8] sm:$0xff pattern:$0x75316420]
  %v5145 = vld.sshfl [vmem:[#allocation1 + $0x10] sm:$0xff pattern:$0x75316420]
  %v5146 = vld.sshfl [vmem:[#allocation1 + $0x18] sm:$0xff pattern:$0x75316420]
  %v5147 = vld.sshfl [vmem:[#allocation1 + $0x20] sm:$0xff pattern:$0x75316420]
  %v5148 = vld.sshfl [vmem:[#allocation1 + $0x28] sm:$0xff pattern:$0x75316420]
  %v5149 = vld.sshfl [vmem:[#allocation1 + $0x30] sm:$0xff pattern:$0x75316420]
  %v5150 = vld.sshfl [vmem:[#allocation1 + $0x38] sm:$0xff pattern:$0x75316420]
  %v5151 = vrot.slane %v5143, 1
  %v5152 = vrot.slane %v5144, 1
  %v5153 = vrot.slane %v5145, 1
  %v5154 = vrot.slane %v5146, 1
  %v5155 = vrot.slane %v5147, 1
  %v5156 = vrot.slane %v5148, 1
  %v5157 = vrot.slane %v5149, 1
  %v5158 = vrot.slane %v5150, 1
  %5171 = vst [vmem:[#allocation1] ss:$2 sm:$0xff] %v3890
  %s5172 = scalar_lea.vmem [#allocation1], 16
  %5173 = vst [vmem:[%s5172] ss:$2 sm:$0xff] %v4045
  %s5174 = scalar_lea.vmem [#allocation1], 32
  %5175 = vst [vmem:[%s5174] ss:$2 sm:$0xff] %v4200
  %s5176 = scalar_lea.vmem [#allocation1], 48
  %5177 = vst [vmem:[%s5176] ss:$2 sm:$0xff] %v4355
  %v5178 = vld.sshfl [vmem:[#allocation1] sm:$0xff pattern:$0x75316420]
  %v5179 = vld.sshfl [vmem:[#allocation1 + $0x8] sm:$0xff pattern:$0x75316420]
  %v5180 = vld.sshfl [vmem:[#allocation1 + $0x10] sm:$0xff pattern:$0x75316420]
  %v5181 = vld.sshfl [vmem:[#allocation1 + $0x18] sm:$0xff pattern:$0x75316420]
  %v5182 = vld.sshfl [vmem:[#allocation1 + $0x20] sm:$0xff pattern:$0x75316420]
  %v5183 = vld.sshfl [vmem:[#allocation1 + $0x28] sm:$0xff pattern:$0x75316420]
  %v5184 = vld.sshfl [vmem:[#allocation1 + $0x30] sm:$0xff pattern:$0x75316420]
  %v5185 = vld.sshfl [vmem:[#allocation1 + $0x38] sm:$0xff pattern:$0x75316420]
  %v5186 = vrot.slane %v5178, 6
  %v5187 = vrot.slane %v5179, 6
  %v5188 = vrot.slane %v5180, 6
  %v5189 = vrot.slane %v5181, 6
  %v5190 = vrot.slane %v5182, 6
  %v5191 = vrot.slane %v5183, 6
  %v5192 = vrot.slane %v5184, 6
  %v5193 = vrot.slane %v5185, 6
  %5206 = vst [vmem:[#allocation1] ss:$2 sm:$0xff] %v4509
  %s5207 = scalar_lea.vmem [#allocation1], 16
  %5208 = vst [vmem:[%s5207] ss:$2 sm:$0xff] %v4663
  %s5209 = scalar_lea.vmem [#allocation1], 32
  %5210 = vst [vmem:[%s5209] ss:$2 sm:$0xff] %v4817
  %s5211 = scalar_lea.vmem [#allocation1], 48
  %5212 = vst [vmem:[%s5211] ss:$2 sm:$0xff] %v4971
  %v5213 = vld.sshfl [vmem:[#allocation1] sm:$0xff pattern:$0x75316420]
  %v5214 = vld.sshfl [vmem:[#allocation1 + $0x8] sm:$0xff pattern:$0x75316420]
  %v5215 = vld.sshfl [vmem:[#allocation1 + $0x10] sm:$0xff pattern:$0x75316420]
  %v5216 = vld.sshfl [vmem:[#allocation1 + $0x18] sm:$0xff pattern:$0x75316420]
  %v5217 = vld.sshfl [vmem:[#allocation1 + $0x20] sm:$0xff pattern:$0x75316420]
  %v5218 = vld.sshfl [vmem:[#allocation1 + $0x28] sm:$0xff pattern:$0x75316420]
  %v5219 = vld.sshfl [vmem:[#allocation1 + $0x30] sm:$0xff pattern:$0x75316420]
  %v5220 = vld.sshfl [vmem:[#allocation1 + $0x38] sm:$0xff pattern:$0x75316420]
  %v5221 = vrot.slane %v5213, 3
  %v5222 = vrot.slane %v5214, 3
  %v5223 = vrot.slane %v5215, 3
  %v5224 = vrot.slane %v5216, 3
  %v5225 = vrot.slane %v5217, 3
  %v5226 = vrot.slane %v5218, 3
  %v5227 = vrot.slane %v5219, 3
  %v5228 = vrot.slane %v5220, 3
  %5241 = vst [vmem:[#allocation1] ss:$2 sm:$0xff] %v8
  %s5242 = scalar_lea.vmem [#allocation1], 16
  %5243 = vst [vmem:[%s5242] ss:$2 sm:$0xff] %v9
  %s5244 = scalar_lea.vmem [#allocation1], 32
  %5245 = vst [vmem:[%s5244] ss:$2 sm:$0xff] %v10
  %s5246 = scalar_lea.vmem [#allocation1], 48
  %5247 = vst [vmem:[%s5246] ss:$2 sm:$0xff] %v11
  %v5248 = vld.sshfl [vmem:[#allocation1] sm:$0xff pattern:$0x75316420]
  %v5249 = vld.sshfl [vmem:[#allocation1 + $0x8] sm:$0xff pattern:$0x75316420]
  %v5250 = vld.sshfl [vmem:[#allocation1 + $0x10] sm:$0xff pattern:$0x75316420]
  %v5251 = vld.sshfl [vmem:[#allocation1 + $0x18] sm:$0xff pattern:$0x75316420]
  %v5252 = vld.sshfl [vmem:[#allocation1 + $0x20] sm:$0xff pattern:$0x75316420]
  %v5253 = vld.sshfl [vmem:[#allocation1 + $0x28] sm:$0xff pattern:$0x75316420]
  %v5254 = vld.sshfl [vmem:[#allocation1 + $0x30] sm:$0xff pattern:$0x75316420]
  %v5255 = vld.sshfl [vmem:[#allocation1 + $0x38] sm:$0xff pattern:$0x75316420]
  %vm5264 = vcmask 1042432
  %v5265 = vsel %vm5264, %v4983, %v5018
  %v5266 = vsel %vm5264, %v4984, %v5019
  %v5267 = vsel %vm5264, %v4985, %v5020
  %v5268 = vsel %vm5264, %v4986, %v5021
  %v5269 = vsel %vm5264, %v4987, %v5022
  %v5270 = vsel %vm5264, %v4988, %v5023
  %v5271 = vsel %vm5264, %v4989, %v5024
  %v5272 = vsel %vm5264, %v4990, %v5025
  %vm5273 = vcmask 1045504
  %v5274 = vsel %vm5273, %v5265, %v5053
  %v5275 = vsel %vm5273, %v5266, %v5054
  %v5276 = vsel %vm5273, %v5267, %v5055
  %v5277 = vsel %vm5273, %v5268, %v5056
  %v5278 = vsel %vm5273, %v5269, %v5057
  %v5279 = vsel %vm5273, %v5270, %v5058
  %v5280 = vsel %vm5273, %v5271, %v5059
  %v5281 = vsel %vm5273, %v5272, %v5060
  %vm5282 = vcmask 1040384
  %v5283 = vsel %vm5282, %v5053, %v5088
  %v5284 = vsel %vm5282, %v5054, %v5089
  %v5285 = vsel %vm5282, %v5055, %v5090
  %v5286 = vsel %vm5282, %v5056, %v5091
  %v5287 = vsel %vm5282, %v5057, %v5092
  %v5288 = vsel %vm5282, %v5058, %v5093
  %v5289 = vsel %vm5282, %v5059, %v5094
  %v5290 = vsel %vm5282, %v5060, %v5095
  %vm5291 = vcmask 1043456
  %v5292 = vsel %vm5291, %v5283, %v5116
  %v5293 = vsel %vm5291, %v5284, %v5117
  %v5294 = vsel %vm5291, %v5285, %v5118
  %v5295 = vsel %vm5291, %v5286, %v5119
  %v5296 = vsel %vm5291, %v5287, %v5120
  %v5297 = vsel %vm5291, %v5288, %v5121
  %v5298 = vsel %vm5291, %v5289, %v5122
  %v5299 = vsel %vm5291, %v5290, %v5123
  %vm5300 = vcmask 1046528
  %v5301 = vsel %vm5300, %v5292, %v5151
  %v5302 = vsel %vm5300, %v5293, %v5152
  %v5303 = vsel %vm5300, %v5294, %v5153
  %v5304 = vsel %vm5300, %v5295, %v5154
  %v5305 = vsel %vm5300, %v5296, %v5155
  %v5306 = vsel %vm5300, %v5297, %v5156
  %v5307 = vsel %vm5300, %v5298, %v5157
  %v5308 = vsel %vm5300, %v5299, %v5158
  %vm5309 = vcmask 1041408
  %v5310 = vsel %vm5309, %v5151, %v5186
  %v5311 = vsel %vm5309, %v5152, %v5187
  %v5312 = vsel %vm5309, %v5153, %v5188
  %v5313 = vsel %vm5309, %v5154, %v5189
  %v5314 = vsel %vm5309, %v5155, %v5190
  %v5315 = vsel %vm5309, %v5156, %v5191
  %v5316 = vsel %vm5309, %v5157, %v5192
  %v5317 = vsel %vm5309, %v5158, %v5193
  %vm5318 = vcmask 1044480
  %v5319 = vsel %vm5318, %v5310, %v5221
  %v5320 = vsel %vm5318, %v5311, %v5222
  %v5321 = vsel %vm5318, %v5312, %v5223
  %v5322 = vsel %vm5318, %v5313, %v5224
  %v5323 = vsel %vm5318, %v5314, %v5225
  %v5324 = vsel %vm5318, %v5315, %v5226
  %v5325 = vsel %vm5318, %v5316, %v5227
  %v5326 = vsel %vm5318, %v5317, %v5228
  %5327 = vst [vmem:[%s1] sm:$0xff] %v5274
  %5328 = vst [vmem:[%s1 + $0x8] sm:$0xff] %v5275
  %5329 = vst [vmem:[%s1 + $0x10] sm:$0xff] %v5276
  %5330 = vst [vmem:[%s1 + $0x18] sm:$0xff] %v5277
  %5331 = vst [vmem:[%s1 + $0x20] sm:$0xff] %v5278
  %5332 = vst [vmem:[%s1 + $0x28] sm:$0xff] %v5279
  %5333 = vst [vmem:[%s1 + $0x30] sm:$0xff] %v5280
  %5334 = vst [vmem:[%s1 + $0x38] sm:$0xff] %v5281
  %5335 = vst [vmem:[%s1 + $0x40] sm:$0xff] %v5301
  %5336 = vst [vmem:[%s1 + $0x48] sm:$0xff] %v5302
  %5337 = vst [vmem:[%s1 + $0x50] sm:$0xff] %v5303
  %5338 = vst [vmem:[%s1 + $0x58] sm:$0xff] %v5304
  %5339 = vst [vmem:[%s1 + $0x60] sm:$0xff] %v5305
  %5340 = vst [vmem:[%s1 + $0x68] sm:$0xff] %v5306
  %5341 = vst [vmem:[%s1 + $0x70] sm:$0xff] %v5307
  %5342 = vst [vmem:[%s1 + $0x78] sm:$0xff] %v5308
  %5343 = vst [vmem:[%s1 + $0x80] sm:$0xff] %v5319
  %5344 = vst [vmem:[%s1 + $0x88] sm:$0xff] %v5320
  %5345 = vst [vmem:[%s1 + $0x90] sm:$0xff] %v5321
  %5346 = vst [vmem:[%s1 + $0x98] sm:$0xff] %v5322
  %5347 = vst [vmem:[%s1 + $0xa0] sm:$0xff] %v5323
  %5348 = vst [vmem:[%s1 + $0xa8] sm:$0xff] %v5324
  %5349 = vst [vmem:[%s1 + $0xb0] sm:$0xff] %v5325
  %5350 = vst [vmem:[%s1 + $0xb8] sm:$0xff] %v5326
  %5351 = vst [vmem:[%s1 + $0xc0] sm:$0x7] %v5248
  %5352 = vst [vmem:[%s1 + $0xc8] sm:$0x7] %v5249
  %5353 = vst [vmem:[%s1 + $0xd0] sm:$0x7] %v5250
  %5354 = vst [vmem:[%s1 + $0xd8] sm:$0x7] %v5251
  %5355 = vst [vmem:[%s1 + $0xe0] sm:$0x7] %v5252
  %5356 = vst [vmem:[%s1 + $0xe8] sm:$0x7] %v5253
  %5357 = vst [vmem:[%s1 + $0xf0] sm:$0x7] %v5254
  %5358 = vst [vmem:[%s1 + $0xf8] sm:$0x7] %v5255
  // Predicated region
  $region6: #{fourier_embedding_pallas.1} parent=0 // pred_check
    _
  $region7: #{fourier_embedding_pallas.1} parent=0 // pred_check_branch
    %5360 = sbr.rel (0) target = $region9
  $region8: #{fourier_embedding_pallas.1} parent=0 // pred_region
    _
  $region9: #{fourier_embedding_pallas.1} parent=0 // pred_fallthru
    _
  // Predicated region
  $region10: #{fourier_embedding_pallas.1} parent=0 // pred_check
    _
  $region11: #{fourier_embedding_pallas.1} parent=0 // pred_check_branch
    %5362 = sbr.rel (0) target = $region13
  $region12: #{fourier_embedding_pallas.1} parent=0 // pred_region
    _
  $region13: #{fourier_embedding_pallas.1} parent=0 // pred_fallthru
    _

</llo_original>
